<compile_context>
chip_gen: v7x
topology: tpu7x:2x2x1
jax: 0.10.0
libtpu: 0.0.40
codegen_flags: <defaults>
</compile_context>

<pallas_src>
import functools

import jax
import jax.numpy as jnp
import numpy as np
from jax import lax
from jax.experimental import pallas as pl
from jax.experimental.pallas import tpu as pltpu

BN_EPS = 1e-5
OUT_PAD = 128   # fc3 output padded 9 -> 128 lanes (lane-dense store)
TILE_N = 2048   # points per tile; VMEM-safe on v5e/v6e/v7x with head split out


# ----------------------------------------------------------------------------
# Kernel 1: per-point MLP (3->64->128->1024) + running max over point tiles.
# grid = (B, num_point_tiles); one program = one (batch row, points tile).
# Emits the (1, 1024) global feature for the row on the last points tile.
# ----------------------------------------------------------------------------
def point_feat_kernel(x_ref,
                      w1_ref, b1_ref, w2_ref, b2_ref, w3_ref, b3_ref,
                      g_ref, acc_ref, *, n_points, n_padded):
    n = pl.program_id(1)
    tile = x_ref.shape[1]
    is_last = n == pl.num_programs(1) - 1

    @pl.when(n == 0)
    def _init():
        # 0 is a valid identity for the max because every layer ends in ReLU
        # and every batch row has >= 1 real (unmasked) point.
        acc_ref[...] = jnp.zeros_like(acc_ref)

    x = x_ref[0]                                  # (tile, C) f32, C == 3
    c_in = x.shape[1]

    # Layer 1 (C -> 64) on the VPU: K=3 is ~1% MXU utilization, so three
    # broadcast multiply-adds are cheaper than an MXU pass.
    h = x[:, 0:1] * w1_ref[0:1, :]
    for c in range(1, c_in):
        h = h + x[:, c:c + 1] * w1_ref[c:c + 1, :]
    h = jnp.maximum(h + b1_ref[...], 0.0)         # (tile, 64) f32

    # Layers 2 and 3 on the MXU: bf16 operands, f32 accumulate.
    h = jnp.dot(h.astype(jnp.bfloat16), w2_ref[...],
                preferred_element_type=jnp.float32)
    h = jnp.maximum(h + b2_ref[...], 0.0)         # (tile, 128) f32
    h = jnp.dot(h.astype(jnp.bfloat16), w3_ref[...],
                preferred_element_type=jnp.float32)
    h = jnp.maximum(h + b3_ref[...], 0.0)         # (tile, 1024) f32

    def accumulate(hv):
        # Blocked VALU reduction into the (8, 1024) accumulator: no per-tile
        # cross-sublane reduce; the 8->1 reduce happens once in _emit.
        blocked = hv.reshape(tile // 8, 8, hv.shape[-1])
        acc_ref[...] = jnp.maximum(acc_ref[...], jnp.max(blocked, axis=0))

    if n_padded != n_points:
        # Ragged N: the mask only ever matters on the final points tile, so
        # gate it there instead of paying iota+cmp+select on every tile.
        @pl.when(is_last)
        def _acc_masked():
            rows = lax.broadcasted_iota(jnp.int32, (tile, 1), 0) + n * tile
            accumulate(jnp.where(rows < n_points, h, 0.0))

        @pl.when(n < pl.num_programs(1) - 1)
        def _acc_full():
            accumulate(h)
    else:
        accumulate(h)

    @pl.when(is_last)
    def _emit():
        g_ref[0] = jnp.max(acc_ref[...], axis=0, keepdims=True)   # (1, 1024)


# ----------------------------------------------------------------------------
# Kernel 2: global head, batched over B: (B,1024)->512->256->128(=9 padded).
# Whole arrays live in VMEM (no grid); weights stay f32 (tiny, runs once).
# ----------------------------------------------------------------------------
def head_kernel(g_ref, w4_ref, b4_ref, w5_ref, b5_ref, w6_ref, b6_ref, o_ref):
    h = jnp.dot(g_ref[...], w4_ref[...], preferred_element_type=jnp.float32)
    h = jnp.maximum(h + b4_ref[...], 0.0)                       # (B, 512)
    h = jnp.dot(h, w5_ref[...], preferred_element_type=jnp.float32)
    h = jnp.maximum(h + b5_ref[...], 0.0)                       # (B, 256)
    y = jnp.dot(h, w6_ref[...], preferred_element_type=jnp.float32)
    o_ref[...] = y + b6_ref[...]                                # (B, OUT_PAD)


# ----------------------------------------------------------------------------
# Wrapper
# ----------------------------------------------------------------------------
def _fold_bn(lin, bn):
    """Fold inference-mode BatchNorm + bias into (W', b')."""
    w, b = lin
    gamma, beta, mean, var = bn
    scale = gamma / jnp.sqrt(var + BN_EPS)
    shift = beta - mean * scale
    return w * scale[None, :], b.reshape(1, -1) * scale[None, :] + shift[None, :]


def _round_up(x, m):
    return (x + m - 1) // m * m


@functools.partial(jax.jit, static_argnames=("init_iden",))
def pointnet_pose_forward(x_ncw, params, init_iden=False):
    """x_ncw: (B, 3, N) float32, PyTorch NCW layout."""
    B, C, N = x_ncw.shape
    # Points-last-channel layout so every 1x1 conv is a per-point matmul.
    x = jnp.transpose(x_ncw, (0, 2, 1))            # (B, N, C)

    w1, b1 = _fold_bn(params["conv1"], params["bn1"])
    w2, b2 = _fold_bn(params["conv2"], params["bn2"])
    w3, b3 = _fold_bn(params["conv3"], params["bn3"])
    w4, b4 = _fold_bn(params["fc1"], params["bn4"])
    w5, b5 = _fold_bn(params["fc2"], params["bn5"])
    w6, b6 = params["fc3"]
    b6 = b6.reshape(1, -1)
    w6 = jnp.pad(w6, ((0, 0), (0, OUT_PAD - w6.shape[1])))   # (256, 128)
    b6 = jnp.pad(b6, ((0, 0), (0, OUT_PAD - b6.shape[1])))   # (1, 128)

    # bf16 storage for the big per-point weights; biases/accumulation stay f32.
    w2 = w2.astype(jnp.bfloat16)
    w3 = w3.astype(jnp.bfloat16)

    # Tile the points axis; zero-pad (masked in-kernel, last tile only).
    if N <= TILE_N:
        tile_n = _round_up(N, 8)
    else:
        tile_n = TILE_N
    n_padded = _round_up(N, tile_n)
    if n_padded != N:
        x = jnp.pad(x, ((0, 0), (0, n_padded - N), (0, 0)))
    num_n = n_padded // tile_n

    # Weights/biases: full arrays with a constant block index -> fetched once
    # and kept VMEM-resident across all grid steps (tiny: ~0.3 MB total).
    const = lambda a: pl.BlockSpec(a.shape, lambda b, n: (0,) * a.ndim)

    gfeat = pl.pallas_call(
        functools.partial(point_feat_kernel, n_points=N, n_padded=n_padded),
        out_shape=jax.ShapeDtypeStruct((B, 1, 1024), jnp.float32),
        grid=(B, num_n),
        in_specs=[
            pl.BlockSpec((1, tile_n, C), lambda b, n: (b, n, 0)),
            const(w1), const(b1), const(w2), const(b2), const(w3), const(b3),
        ],
        out_specs=pl.BlockSpec((1, 1, 1024), lambda b, n: (b, 0, 0)),
        scratch_shapes=[pltpu.VMEM((8, 1024), jnp.float32)],
        compiler_params=pltpu.CompilerParams(
            dimension_semantics=("parallel", "arbitrary"),
            vmem_limit_bytes=32 * 1024 * 1024),
    )(x, w1, b1, w2, b2, w3, b3)

    gfeat = gfeat.reshape(B, 1024)

    out = pl.pallas_call(
        head_kernel,
        out_shape=jax.ShapeDtypeStruct((B, OUT_PAD), jnp.float32),
    )(gfeat, w4, b4, w5, b5, w6, b6)

    y = out[:, :9]
    if init_iden:
        y = y + jnp.array([1, 0, 0, 0, 1, 0, 0, 0, 1], jnp.float32)
    return y.reshape(-1, 3, 3)


# ----------------------------------------------------------------------------
# Deterministic synthetic parameters (matching get_model.__init__ shapes).
# Weights are stored as (in, out) so the kernels compute x @ W.
# ----------------------------------------------------------------------------
def make_params(key):
    ks = jax.random.split(key, 16)

    def lin(k, cin, cout):
        kw, kb = jax.random.split(k)
        w = jax.random.normal(kw, (cin, cout), jnp.float32) * 0.05
        b = jax.random.normal(kb, (1, cout), jnp.float32) * 0.05
        return w, b

    def bn(k, c):
        kg, kb, km, kv = jax.random.split(k, 4)
        gamma = 1.0 + 0.1 * jax.random.normal(kg, (c,), jnp.float32)
        beta = 0.1 * jax.random.normal(kb, (c,), jnp.float32)
        mean = 0.1 * jax.random.normal(km, (c,), jnp.float32)
        var = 1.0 + 0.1 * jnp.abs(jax.random.normal(kv, (c,), jnp.float32))
        return gamma, beta, mean, var

    return {
        "conv1": lin(ks[0], 3, 64),
        "conv2": lin(ks[1], 64, 128),
        "conv3": lin(ks[2], 128, 1024),
        "fc1": lin(ks[3], 1024, 512),
        "fc2": lin(ks[4], 512, 256),
        "fc3": lin(ks[5], 256, 9),
        "bn1": bn(ks[6], 64),
        "bn2": bn(ks[7], 128),
        "bn3": bn(ks[8], 1024),
        "bn4": bn(ks[9], 512),
        "bn5": bn(ks[10], 256),
    }


# Pure-JAX reference (un-folded BN, matching PyTorch eval-mode semantics).
def reference_forward(x_ncw, params, init_iden=False):
    x = jnp.transpose(x_ncw, (0, 2, 1))  # (B, N, C)

    def layer(h, lin_p, bn_p, relu=True):
        w, b = lin_p
        y = h @ w + b
        if bn_p is not None:
            gamma, beta, mean, var = bn_p
            y = gamma * (y - mean) / jnp.sqrt(var + BN_EPS) + beta
        return jnp.maximum(y, 0.0) if relu else y

    h = layer(x, params["conv1"], params["bn1"])
    h = layer(h, params["conv2"], params["bn2"])
    h = layer(h, params["conv3"], params["bn3"])
    g = jnp.max(h, axis=1)                         # (B, 1024)
    h = layer(g, params["fc1"], params["bn4"])
    h = layer(h, params["fc2"], params["bn5"])
    y = layer(h, params["fc3"], None, relu=False)  # (B, 9)
    if init_iden:
        y = y + jnp.array([1, 0, 0, 0, 1, 0, 0, 0, 1], jnp.float32)
    return y.reshape(-1, 3, 3)


if __name__ == "__main__":
    key = jax.random.PRNGKey(0)
    kx, kx2, kp = jax.random.split(key, 3)
    params = make_params(kp)

    # Tolerances: TPU f32 matmuls default to bf16-pass MXU precision and BN is
    # folded into the weights; bf16 weight storage matches what the MXU would
    # round to anyway, so kernel vs. reference differ at the few-1e-3 level.
    RTOL, ATOL = 2e-2, 3e-3

    # 1) Small smoke test: single points tile, non-ragged.
    B, C, N = 2, 3, 16
    x = jax.random.normal(kx, (B, C, N), jnp.float32)
    out = jax.block_until_ready(pointnet_pose_forward(x, params, init_iden=False))
    ref = reference_forward(x, params, init_iden=False)
    assert out.shape == (B, 3, 3), out.shape
    np.testing.assert_allclose(np.asarray(out), np.asarray(ref), rtol=RTOL, atol=ATOL)

    # 2) Tiled path: N > TILE_N and not a multiple of the tile (ragged mask,
    #    gated to the last tile only).
    B2, N2 = 2, 2500
    x2 = jax.random.normal(kx2, (B2, C, N2), jnp.float32)
    out2 = jax.block_until_ready(pointnet_pose_forward(x2, params, init_iden=True))
    ref2 = reference_forward(x2, params, init_iden=True)
    assert out2.shape == (B2, 3, 3), out2.shape
    np.testing.assert_allclose(np.asarray(out2), np.asarray(ref2), rtol=RTOL, atol=ATOL)

    print("KERNEL_OK")
</pallas_src>

<mosaic_0001>
module attributes {stable_mosaic.version = 11 : i64} {
  func.func @point_feat_kernel(%arg0: i32, %arg1: i32, %arg2: memref<1x16x3xf32, #tpu.memory_space<vmem>>, %arg3: memref<3x64xf32, #tpu.memory_space<vmem>>, %arg4: memref<1x64xf32, #tpu.memory_space<vmem>>, %arg5: memref<64x128xbf16, #tpu.memory_space<vmem>>, %arg6: memref<1x128xf32, #tpu.memory_space<vmem>>, %arg7: memref<128x1024xbf16, #tpu.memory_space<vmem>>, %arg8: memref<1x1024xf32, #tpu.memory_space<vmem>>, %arg9: memref<1x1x1024xf32, #tpu.memory_space<vmem>>, %arg10: memref<8x1024xf32, #tpu.memory_space<vmem>>) attributes {dimension_semantics = [#tpu.dimension_semantics<parallel>, #tpu.dimension_semantics<arbitrary>], iteration_bounds = array<i64: 2, 1>, scalar_prefetch = 0 : i64, scratch_operands = 1 : i64, tpu.core_type = #tpu.core_type<tc>, window_params = [{transform_indices = @transform_0, window_bounds = array<i64: 1, 16, 3>}, {pipeline_mode = #tpu.pipeline_mode<synchronous>, transform_indices = @transform_1, window_bounds = array<i64: 3, 64>}, {pipeline_mode = #tpu.pipeline_mode<synchronous>, transform_indices = @transform_2, window_bounds = array<i64: 1, 64>}, {pipeline_mode = #tpu.pipeline_mode<synchronous>, transform_indices = @transform_3, window_bounds = array<i64: 64, 128>}, {pipeline_mode = #tpu.pipeline_mode<synchronous>, transform_indices = @transform_4, window_bounds = array<i64: 1, 128>}, {pipeline_mode = #tpu.pipeline_mode<synchronous>, transform_indices = @transform_5, window_bounds = array<i64: 128, 1024>}, {pipeline_mode = #tpu.pipeline_mode<synchronous>, transform_indices = @transform_6, window_bounds = array<i64: 1, 1024>}, {transform_indices = @transform_7, window_bounds = array<i64: 1, 1, 1024>}]} {
    %c0_i32 = arith.constant 0 : i32
    %0 = arith.cmpi eq, %arg1, %c0_i32 : i32
    %c0_i32_0 = arith.constant 0 : i32
    %1 = arith.cmpi eq, %arg1, %c0_i32_0 : i32
    %2 = arith.extui %1 : i1 to i32
    %c0_i32_1 = arith.constant 0 : i32
    %3 = arith.cmpi ne, %2, %c0_i32_1 : i32
    scf.if %3 {
      %cst_28 = arith.constant 0.000000e+00 : f32
      %51 = vector.broadcast %cst_28 : f32 to vector<8x1024xf32>
      %c0_29 = arith.constant 0 : index
      %c0_30 = arith.constant 0 : index
      %52 = vector.load %arg10[%c0_29, %c0_30] : memref<8x1024xf32, #tpu.memory_space<vmem>>, vector<8x1024xf32>
      tpu.vector_store %arg10[%c0_29, %c0_30], %51 {strides = array<i32>} : memref<8x1024xf32, #tpu.memory_space<vmem>>, vector<8x1024xf32>,
    } else {
    }
    %c0 = arith.constant 0 : index
    %c0_2 = arith.constant 0 : index
    %c0_3 = arith.constant 0 : index
    %4 = vector.load %arg2[%c0, %c0_2, %c0_3] : memref<1x16x3xf32, #tpu.memory_space<vmem>>, vector<1x16x3xf32>
    %5 = vector.shape_cast %4 : vector<1x16x3xf32> to vector<16x3xf32>
    %6 = vector.extract_strided_slice %5 {offsets = [0, 0], sizes = [16, 1], strides = [1, 1]} : vector<16x3xf32> to vector<16x1xf32>
    %c0_4 = arith.constant 0 : index
    %c0_5 = arith.constant 0 : index
    %7 = vector.load %arg3[%c0_4, %c0_5] : memref<3x64xf32, #tpu.memory_space<vmem>>, vector<1x64xf32>
    %8 = vector.broadcast %6 : vector<16x1xf32> to vector<16x64xf32>
    %9 = vector.broadcast %7 : vector<1x64xf32> to vector<16x64xf32>
    %10 = arith.mulf %8, %9 : vector<16x64xf32>
    %11 = vector.extract_strided_slice %5 {offsets = [0, 1], sizes = [16, 1], strides = [1, 1]} : vector<16x3xf32> to vector<16x1xf32>
    %c1 = arith.constant 1 : index
    %c0_6 = arith.constant 0 : index
    %12 = vector.load %arg3[%c1, %c0_6] : memref<3x64xf32, #tpu.memory_space<vmem>>, vector<1x64xf32>
    %13 = vector.broadcast %11 : vector<16x1xf32> to vector<16x64xf32>
    %14 = vector.broadcast %12 : vector<1x64xf32> to vector<16x64xf32>
    %15 = arith.mulf %13, %14 : vector<16x64xf32>
    %16 = arith.addf %10, %15 : vector<16x64xf32>
    %17 = vector.extract_strided_slice %5 {offsets = [0, 2], sizes = [16, 1], strides = [1, 1]} : vector<16x3xf32> to vector<16x1xf32>
    %c2 = arith.constant 2 : index
    %c0_7 = arith.constant 0 : index
    %18 = vector.load %arg3[%c2, %c0_7] : memref<3x64xf32, #tpu.memory_space<vmem>>, vector<1x64xf32>
    %19 = vector.broadcast %17 : vector<16x1xf32> to vector<16x64xf32>
    %20 = vector.broadcast %18 : vector<1x64xf32> to vector<16x64xf32>
    %21 = arith.mulf %19, %20 : vector<16x64xf32>
    %22 = arith.addf %16, %21 : vector<16x64xf32>
    %c0_8 = arith.constant 0 : index
    %c0_9 = arith.constant 0 : index
    %23 = vector.load %arg4[%c0_8, %c0_9] : memref<1x64xf32, #tpu.memory_space<vmem>>, vector<1x64xf32>
    %24 = vector.broadcast %23 : vector<1x64xf32> to vector<16x64xf32>
    %25 = arith.addf %22, %24 : vector<16x64xf32>
    %cst = arith.constant 0.000000e+00 : f32
    %26 = vector.broadcast %cst : f32 to vector<16x64xf32>
    %27 = arith.maximumf %25, %26 : vector<16x64xf32>
    %28 = arith.truncf %27 : vector<16x64xf32> to vector<16x64xbf16>
    %c0_10 = arith.constant 0 : index
    %c0_11 = arith.constant 0 : index
    %29 = vector.load %arg5[%c0_10, %c0_11] : memref<64x128xbf16, #tpu.memory_space<vmem>>, vector<64x128xbf16>
    %cst_12 = arith.constant dense<0.000000e+00> : vector<16x128xf32>
    %30 = tpu.matmul %28, %29, %cst_12 {dimension_numbers = #tpu.dot_dimension_numbers<[1], [0], [0], [1], [0, 0, 1, 1], [], []>} : vector<16x64xbf16>, vector<64x128xbf16>, vector<16x128xf32> -> vector<16x128xf32>
    %c0_13 = arith.constant 0 : index
    %c0_14 = arith.constant 0 : index
    %31 = vector.load %arg6[%c0_13, %c0_14] : memref<1x128xf32, #tpu.memory_space<vmem>>, vector<1x128xf32>
    %32 = vector.broadcast %31 : vector<1x128xf32> to vector<16x128xf32>
    %33 = arith.addf %30, %32 : vector<16x128xf32>
    %cst_15 = arith.constant 0.000000e+00 : f32
    %34 = vector.broadcast %cst_15 : f32 to vector<16x128xf32>
    %35 = arith.maximumf %33, %34 : vector<16x128xf32>
    %36 = arith.truncf %35 : vector<16x128xf32> to vector<16x128xbf16>
    %c0_16 = arith.constant 0 : index
    %c0_17 = arith.constant 0 : index
    %37 = vector.load %arg7[%c0_16, %c0_17] : memref<128x1024xbf16, #tpu.memory_space<vmem>>, vector<128x1024xbf16>
    %cst_18 = arith.constant dense<0.000000e+00> : vector<16x1024xf32>
    %38 = tpu.matmul %36, %37, %cst_18 {dimension_numbers = #tpu.dot_dimension_numbers<[1], [0], [0], [1], [0, 0, 1, 1], [], []>} : vector<16x128xbf16>, vector<128x1024xbf16>, vector<16x1024xf32> -> vector<16x1024xf32>
    %c0_19 = arith.constant 0 : index
    %c0_20 = arith.constant 0 : index
    %39 = vector.load %arg8[%c0_19, %c0_20] : memref<1x1024xf32, #tpu.memory_space<vmem>>, vector<1x1024xf32>
    %40 = vector.broadcast %39 : vector<1x1024xf32> to vector<16x1024xf32>
    %41 = arith.addf %38, %40 : vector<16x1024xf32>
    %cst_21 = arith.constant 0.000000e+00 : f32
    %42 = vector.broadcast %cst_21 : f32 to vector<16x1024xf32>
    %43 = arith.maximumf %41, %42 : vector<16x1024xf32>
    %44 = vector.shape_cast %43 : vector<16x1024xf32> to vector<2x8x1024xf32>
    %c0_22 = arith.constant 0 : index
    %c0_23 = arith.constant 0 : index
    %45 = vector.load %arg10[%c0_22, %c0_23] : memref<8x1024xf32, #tpu.memory_space<vmem>>, vector<8x1024xf32>
    %cst_24 = arith.constant dense<0xFF800000> : vector<8x1024xf32>
    %46 = vector.multi_reduction <maximumf>, %44, %cst_24 [0] : vector<2x8x1024xf32> to vector<8x1024xf32>
    %47 = arith.maximumf %45, %46 : vector<8x1024xf32>
    %c0_25 = arith.constant 0 : index
    %c0_26 = arith.constant 0 : index
    %48 = vector.load %arg10[%c0_25, %c0_26] : memref<8x1024xf32, #tpu.memory_space<vmem>>, vector<8x1024xf32>
    tpu.vector_store %arg10[%c0_25, %c0_26], %47 {strides = array<i32>} : memref<8x1024xf32, #tpu.memory_space<vmem>>, vector<8x1024xf32>,
    %49 = arith.extui %0 : i1 to i32
    %c0_i32_27 = arith.constant 0 : i32
    %50 = arith.cmpi ne, %49, %c0_i32_27 : i32
    scf.if %50 {
      %c0_28 = arith.constant 0 : index
      %c0_29 = arith.constant 0 : index
      %51 = vector.load %arg10[%c0_28, %c0_29] : memref<8x1024xf32, #tpu.memory_space<vmem>>, vector<8x1024xf32>
      %cst_30 = arith.constant dense<0xFF800000> : vector<1024xf32>
      %52 = vector.multi_reduction <maximumf>, %51, %cst_30 [0] : vector<8x1024xf32> to vector<1024xf32>
      %53 = vector.shape_cast %52 : vector<1024xf32> to vector<1x1024xf32>
      %c0_31 = arith.constant 0 : index
      %c0_32 = arith.constant 0 : index
      %c0_33 = arith.constant 0 : index
      %54 = vector.load %arg9[%c0_31, %c0_32, %c0_33] : memref<1x1x1024xf32, #tpu.memory_space<vmem>>, vector<1x1x1024xf32>
      %55 = vector.shape_cast %54 : vector<1x1x1024xf32> to vector<1x1024xf32>
      %56 = vector.shape_cast %53 : vector<1x1024xf32> to vector<1x1x1024xf32>
      tpu.vector_store %arg9[%c0_31, %c0_32, %c0_33], %56 {strides = array<i32>} : memref<1x1x1024xf32, #tpu.memory_space<vmem>>, vector<1x1x1024xf32>,
    } else {
    }
    return
  }
  func.func @transform_0(%arg0: i32, %arg1: i32) -> (i32, i32, i32) {
    %c0_i32 = arith.constant 0 : i32
    %c0_i32_0 = arith.constant 0 : i32
    return %arg0, %arg1, %c0_i32 : i32, i32, i32
  }
  func.func @transform_1(%arg0: i32, %arg1: i32) -> (i32, i32) {
    %c0_i32 = arith.constant 0 : i32
    %c0_i32_0 = arith.constant 0 : i32
    %c0_i32_1 = arith.constant 0 : i32
    return %c0_i32, %c0_i32_0 : i32, i32
  }
  func.func @transform_2(%arg0: i32, %arg1: i32) -> (i32, i32) {
    %c0_i32 = arith.constant 0 : i32
    %c0_i32_0 = arith.constant 0 : i32
    %c0_i32_1 = arith.constant 0 : i32
    return %c0_i32, %c0_i32_0 : i32, i32
  }
  func.func @transform_3(%arg0: i32, %arg1: i32) -> (i32, i32) {
    %c0_i32 = arith.constant 0 : i32
    %c0_i32_0 = arith.constant 0 : i32
    %c0_i32_1 = arith.constant 0 : i32
    return %c0_i32, %c0_i32_0 : i32, i32
  }
  func.func @transform_4(%arg0: i32, %arg1: i32) -> (i32, i32) {
    %c0_i32 = arith.constant 0 : i32
    %c0_i32_0 = arith.constant 0 : i32
    %c0_i32_1 = arith.constant 0 : i32
    return %c0_i32, %c0_i32_0 : i32, i32
  }
  func.func @transform_5(%arg0: i32, %arg1: i32) -> (i32, i32) {
    %c0_i32 = arith.constant 0 : i32
    %c0_i32_0 = arith.constant 0 : i32
    %c0_i32_1 = arith.constant 0 : i32
    return %c0_i32, %c0_i32_0 : i32, i32
  }
  func.func @transform_6(%arg0: i32, %arg1: i32) -> (i32, i32) {
    %c0_i32 = arith.constant 0 : i32
    %c0_i32_0 = arith.constant 0 : i32
    %c0_i32_1 = arith.constant 0 : i32
    return %c0_i32, %c0_i32_0 : i32, i32
  }
  func.func @transform_7(%arg0: i32, %arg1: i32) -> (i32, i32, i32) {
    %c0_i32 = arith.constant 0 : i32
    %c0_i32_0 = arith.constant 0 : i32
    %c0_i32_1 = arith.constant 0 : i32
    return %arg0, %c0_i32, %c0_i32_0 : i32, i32, i32
  }
}

module attributes {stable_mosaic.version = 11 : i64} {
  func.func @head_kernel(%arg0: memref<2x1024xf32, #tpu.memory_space<vmem>>, %arg1: memref<1024x512xf32, #tpu.memory_space<vmem>>, %arg2: memref<1x512xf32, #tpu.memory_space<vmem>>, %arg3: memref<512x256xf32, #tpu.memory_space<vmem>>, %arg4: memref<1x256xf32, #tpu.memory_space<vmem>>, %arg5: memref<256x128xf32, #tpu.memory_space<vmem>>, %arg6: memref<1x128xf32, #tpu.memory_space<vmem>>, %arg7: memref<2x128xf32, #tpu.memory_space<vmem>>) attributes {dimension_semantics = [], scalar_prefetch = 0 : i64, scratch_operands = 0 : i64, tpu.core_type = #tpu.core_type<tc>} {
    %c0 = arith.constant 0 : index
    %c0_0 = arith.constant 0 : index
    %0 = vector.load %arg0[%c0, %c0_0] : memref<2x1024xf32, #tpu.memory_space<vmem>>, vector<2x1024xf32>
    %c0_1 = arith.constant 0 : index
    %c0_2 = arith.constant 0 : index
    %1 = vector.load %arg1[%c0_1, %c0_2] : memref<1024x512xf32, #tpu.memory_space<vmem>>, vector<1024x512xf32>
    %cst = arith.constant dense<0.000000e+00> : vector<2x512xf32>
    %2 = tpu.matmul %0, %1, %cst {dimension_numbers = #tpu.dot_dimension_numbers<[1], [0], [0], [1], [0, 0, 1, 1], [], []>} : vector<2x1024xf32>, vector<1024x512xf32>, vector<2x512xf32> -> vector<2x512xf32>
    %c0_3 = arith.constant 0 : index
    %c0_4 = arith.constant 0 : index
    %3 = vector.load %arg2[%c0_3, %c0_4] : memref<1x512xf32, #tpu.memory_space<vmem>>, vector<1x512xf32>
    %4 = vector.broadcast %3 : vector<1x512xf32> to vector<2x512xf32>
    %5 = arith.addf %2, %4 : vector<2x512xf32>
    %cst_5 = arith.constant 0.000000e+00 : f32
    %6 = vector.broadcast %cst_5 : f32 to vector<2x512xf32>
    %7 = arith.maximumf %5, %6 : vector<2x512xf32>
    %c0_6 = arith.constant 0 : index
    %c0_7 = arith.constant 0 : index
    %8 = vector.load %arg3[%c0_6, %c0_7] : memref<512x256xf32, #tpu.memory_space<vmem>>, vector<512x256xf32>
    %cst_8 = arith.constant dense<0.000000e+00> : vector<2x256xf32>
    %9 = tpu.matmul %7, %8, %cst_8 {dimension_numbers = #tpu.dot_dimension_numbers<[1], [0], [0], [1], [0, 0, 1, 1], [], []>} : vector<2x512xf32>, vector<512x256xf32>, vector<2x256xf32> -> vector<2x256xf32>
    %c0_9 = arith.constant 0 : index
    %c0_10 = arith.constant 0 : index
    %10 = vector.load %arg4[%c0_9, %c0_10] : memref<1x256xf32, #tpu.memory_space<vmem>>, vector<1x256xf32>
    %11 = vector.broadcast %10 : vector<1x256xf32> to vector<2x256xf32>
    %12 = arith.addf %9, %11 : vector<2x256xf32>
    %cst_11 = arith.constant 0.000000e+00 : f32
    %13 = vector.broadcast %cst_11 : f32 to vector<2x256xf32>
    %14 = arith.maximumf %12, %13 : vector<2x256xf32>
    %c0_12 = arith.constant 0 : index
    %c0_13 = arith.constant 0 : index
    %15 = vector.load %arg5[%c0_12, %c0_13] : memref<256x128xf32, #tpu.memory_space<vmem>>, vector<256x128xf32>
    %cst_14 = arith.constant dense<0.000000e+00> : vector<2x128xf32>
    %16 = tpu.matmul %14, %15, %cst_14 {dimension_numbers = #tpu.dot_dimension_numbers<[1], [0], [0], [1], [0, 0, 1, 1], [], []>} : vector<2x256xf32>, vector<256x128xf32>, vector<2x128xf32> -> vector<2x128xf32>
    %c0_15 = arith.constant 0 : index
    %c0_16 = arith.constant 0 : index
    %17 = vector.load %arg6[%c0_15, %c0_16] : memref<1x128xf32, #tpu.memory_space<vmem>>, vector<1x128xf32>
    %18 = vector.broadcast %17 : vector<1x128xf32> to vector<2x128xf32>
    %19 = arith.addf %16, %18 : vector<2x128xf32>
    %c0_17 = arith.constant 0 : index
    %c0_18 = arith.constant 0 : index
    %20 = vector.load %arg7[%c0_17, %c0_18] : memref<2x128xf32, #tpu.memory_space<vmem>>, vector<2x128xf32>
    tpu.vector_store %arg7[%c0_17, %c0_18], %19 {strides = array<i32>} : memref<2x128xf32, #tpu.memory_space<vmem>>, vector<2x128xf32>,
    return
  }
}

</mosaic_0001>

<llo_original>
// kernel: pointnet_pose_forward.2
$region0: #{pointnet_pose_forward.2}
  #allocation0 [shape = 'u32[]', space=smem, size = 0x4, offset = 0x4, fixed_abs, tag = 'smem constant byte address 0x4 - core index']
  #allocation1 [shape = 'u32[144,128]{1,0:T(1,128)}', space=vmem, size = 0x12000, scoped, tag = 'internal scratch']
  #allocation2 [shape = 'f32[8,1024]{1,0:T(8,128)}', space=vmem, size = 0x8000, scoped, tag = 'scratch operand']
  %s0 = inlined_call_operand.vmem [shape: f32[2,16,3], index: 0, kind: input, shape index: {}]
  %s1 = inlined_call_operand.vmem [shape: f32[3,64], index: 1, kind: input, shape index: {}]
  %s2 = inlined_call_operand.vmem [shape: f32[1,64], index: 2, kind: input, shape index: {}]
  %s3 = inlined_call_operand.vmem [shape: bf16[64,128], index: 3, kind: input, shape index: {}]
  %s4 = inlined_call_operand.vmem [shape: f32[1,128], index: 4, kind: input, shape index: {}]
  %s5 = inlined_call_operand.vmem [shape: bf16[128,1024], index: 5, kind: input, shape index: {}]
  %s6 = inlined_call_operand.vmem [shape: f32[1,1024], index: 6, kind: input, shape index: {}]
  %s7 = inlined_call_operand.vmem [shape: f32[2,1,1024], index: 7, kind: output, shape index: {}]
  %s8 = sld [smem:[#allocation0]]
  $region69: #{pointnet_pose_forward.2} parent=0
    _
  %s10 = ssub.s32 1, %s8
  %s11 = scalar_select 0, %s10, %s8
  loop: start=0, step=1, limit=4
  $region2: #{pointnet_pose_forward.2} parent=0 // loop_pre_header
    _
  $region3: #{pointnet_pose_forward.2} parent=0 // loop_header
    %s13 = sphi 0, %s17
    %p14 = scmp.ge.s32.totalorder %s13, 4
    %s20 = sphi 0, %s32
    %s21 = sphi 0, %s28
    %s22 = sphi 0, %s20
    %s23 = sphi 0, %s21
    %s24 = sphi 0, %s22
    %s25 = sphi 0, %s23
    %s37 = sphi 0, %s39
    %s40 = sphi 0, %s37
    %s41 = sphi 0, %s40
    %s57 = sphi 0, %s41
    %s61 = sphi 0, %s61
    %s63 = sphi 0, %s61
    %s64 = sphi 0, %s63
    %s78 = sphi 0, %s64
    %s82 = sphi 0, %s82
    %s84 = sphi 0, %s82
    %s85 = sphi 0, %s84
    %s99 = sphi 0, %s85
    %s103 = sphi 0, %s103
    %s105 = sphi 0, %s103
    %s106 = sphi 0, %s105
    %s120 = sphi 0, %s106
    %s124 = sphi 0, %s124
    %s126 = sphi 0, %s124
    %s127 = sphi 0, %s126
    %s141 = sphi 0, %s127
    %s145 = sphi 0, %s145
    %s147 = sphi 0, %s145
    %s148 = sphi 0, %s147
    %s162 = sphi 0, %s148
    %s166 = sphi 0, %s166
    %s168 = sphi 0, %s166
    %s169 = sphi 0, %s168
    %s183 = sphi 0, %s169
    %s189 = sphi 0, %s191
    %s192 = sphi 0, %s189
    %s193 = sphi 0, %s192
    %s209 = sphi 0, %s193
  $region4: #{pointnet_pose_forward.2} parent=0 // loop_header_branch
    %16 = sbr.rel (%p14) target = $region8
  $region5: #{pointnet_pose_forward.2} parent=0 // loop_body
    %s18 = ssub.s32 %s13, 1
    %s19 = ssub.s32 %s13, 2
    %s26 = sadd.s32 1, %s21
    %p27 = scmp.ge.s32.totalorder %s26, 1
    %s28 = scalar_select %p27, 0, %s26
    %s29 = sadd.s32 1, %s20
    %s30 = scalar_select %p27, %s29, %s20
    %p31 = scmp.ge.s32.totalorder %s30, 2
    %s32 = scalar_select %p31, 0, %s30
    %s33 = ssub.s32 %s20, %s32
    %s34 = ssub.s32 %s21, %s28
    %s35 = sor.u32 %s33, %s34
    %p36 = scmp.eq.s32.totalorder %s35, 0
    %s38 = sadd.s32 %s37, 1
    %s39 = scalar_select %p36, %s37, %s38
    %p42 = pneg %p36
    %p43 = scmp.eq.s32.totalorder %s13, 1
    %p44 = por %p42, %p43
    %p45 = scmp.ne.s32.totalorder %s37, %s40
    %p46 = scmp.eq.s32.totalorder %s13, 0
    %p47 = por %p45, %p46
    %p48 = scmp.ne.s32.totalorder %s37, %s40
    %p49 = scmp.eq.s32.totalorder %s18, 1
    %p50 = por %p48, %p49
    %p51 = scmp.ne.s32.totalorder %s40, %s41
    %p52 = scmp.eq.s32.totalorder %s18, 0
    %p53 = por %p51, %p52
    %p54 = scmp.ne.s32.totalorder %s40, %s41
    %p55 = scmp.eq.s32.totalorder %s19, 1
    %p56 = por %p54, %p55
    %p58 = scmp.ne.s32.totalorder %s41, %s57
    %p59 = scmp.eq.s32.totalorder %s19, 0
    %p60 = por %p58, %p59
    %s62 = sadd.s32 %s61, 1
    %p65 = scmp.eq.s32.totalorder %s13, 1
    %p66 = scmp.ne.s32.totalorder %s61, %s63
    %p67 = scmp.eq.s32.totalorder %s13, 0
    %p68 = por %p66, %p67
    %p69 = scmp.ne.s32.totalorder %s61, %s63
    %p70 = scmp.eq.s32.totalorder %s18, 1
    %p71 = por %p69, %p70
    %p72 = scmp.ne.s32.totalorder %s63, %s64
    %p73 = scmp.eq.s32.totalorder %s18, 0
    %p74 = por %p72, %p73
    %p75 = scmp.ne.s32.totalorder %s63, %s64
    %p76 = scmp.eq.s32.totalorder %s19, 1
    %p77 = por %p75, %p76
    %p79 = scmp.ne.s32.totalorder %s64, %s78
    %p80 = scmp.eq.s32.totalorder %s19, 0
    %p81 = por %p79, %p80
    %s83 = sadd.s32 %s82, 1
    %p86 = scmp.eq.s32.totalorder %s13, 1
    %p87 = scmp.ne.s32.totalorder %s82, %s84
    %p88 = scmp.eq.s32.totalorder %s13, 0
    %p89 = por %p87, %p88
    %p90 = scmp.ne.s32.totalorder %s82, %s84
    %p91 = scmp.eq.s32.totalorder %s18, 1
    %p92 = por %p90, %p91
    %p93 = scmp.ne.s32.totalorder %s84, %s85
    %p94 = scmp.eq.s32.totalorder %s18, 0
    %p95 = por %p93, %p94
    %p96 = scmp.ne.s32.totalorder %s84, %s85
    %p97 = scmp.eq.s32.totalorder %s19, 1
    %p98 = por %p96, %p97
    %p100 = scmp.ne.s32.totalorder %s85, %s99
    %p101 = scmp.eq.s32.totalorder %s19, 0
    %p102 = por %p100, %p101
    %s104 = sadd.s32 %s103, 1
    %p107 = scmp.eq.s32.totalorder %s13, 1
    %p108 = scmp.ne.s32.totalorder %s103, %s105
    %p109 = scmp.eq.s32.totalorder %s13, 0
    %p110 = por %p108, %p109
    %p111 = scmp.ne.s32.totalorder %s103, %s105
    %p112 = scmp.eq.s32.totalorder %s18, 1
    %p113 = por %p111, %p112
    %p114 = scmp.ne.s32.totalorder %s105, %s106
    %p115 = scmp.eq.s32.totalorder %s18, 0
    %p116 = por %p114, %p115
    %p117 = scmp.ne.s32.totalorder %s105, %s106
    %p118 = scmp.eq.s32.totalorder %s19, 1
    %p119 = por %p117, %p118
    %p121 = scmp.ne.s32.totalorder %s106, %s120
    %p122 = scmp.eq.s32.totalorder %s19, 0
    %p123 = por %p121, %p122
    %s125 = sadd.s32 %s124, 1
    %p128 = scmp.eq.s32.totalorder %s13, 1
    %p129 = scmp.ne.s32.totalorder %s124, %s126
    %p130 = scmp.eq.s32.totalorder %s13, 0
    %p131 = por %p129, %p130
    %p132 = scmp.ne.s32.totalorder %s124, %s126
    %p133 = scmp.eq.s32.totalorder %s18, 1
    %p134 = por %p132, %p133
    %p135 = scmp.ne.s32.totalorder %s126, %s127
    %p136 = scmp.eq.s32.totalorder %s18, 0
    %p137 = por %p135, %p136
    %p138 = scmp.ne.s32.totalorder %s126, %s127
    %p139 = scmp.eq.s32.totalorder %s19, 1
    %p140 = por %p138, %p139
    %p142 = scmp.ne.s32.totalorder %s127, %s141
    %p143 = scmp.eq.s32.totalorder %s19, 0
    %p144 = por %p142, %p143
    %s146 = sadd.s32 %s145, 1
    %p149 = scmp.eq.s32.totalorder %s13, 1
    %p150 = scmp.ne.s32.totalorder %s145, %s147
    %p151 = scmp.eq.s32.totalorder %s13, 0
    %p152 = por %p150, %p151
    %p153 = scmp.ne.s32.totalorder %s145, %s147
    %p154 = scmp.eq.s32.totalorder %s18, 1
    %p155 = por %p153, %p154
    %p156 = scmp.ne.s32.totalorder %s147, %s148
    %p157 = scmp.eq.s32.totalorder %s18, 0
    %p158 = por %p156, %p157
    %p159 = scmp.ne.s32.totalorder %s147, %s148
    %p160 = scmp.eq.s32.totalorder %s19, 1
    %p161 = por %p159, %p160
    %p163 = scmp.ne.s32.totalorder %s148, %s162
    %p164 = scmp.eq.s32.totalorder %s19, 0
    %p165 = por %p163, %p164
    %s167 = sadd.s32 %s166, 1
    %p170 = scmp.eq.s32.totalorder %s13, 1
    %p171 = scmp.ne.s32.totalorder %s166, %s168
    %p172 = scmp.eq.s32.totalorder %s13, 0
    %p173 = por %p171, %p172
    %p174 = scmp.ne.s32.totalorder %s166, %s168
    %p175 = scmp.eq.s32.totalorder %s18, 1
    %p176 = por %p174, %p175
    %p177 = scmp.ne.s32.totalorder %s168, %s169
    %p178 = scmp.eq.s32.totalorder %s18, 0
    %p179 = por %p177, %p178
    %p180 = scmp.ne.s32.totalorder %s168, %s169
    %p181 = scmp.eq.s32.totalorder %s19, 1
    %p182 = por %p180, %p181
    %p184 = scmp.ne.s32.totalorder %s169, %s183
    %p185 = scmp.eq.s32.totalorder %s19, 0
    %p186 = por %p184, %p185
    %s187 = ssub.s32 %s20, %s32
    %p188 = scmp.eq.s32.totalorder %s187, 0
    %s190 = sadd.s32 %s189, 1
    %s191 = scalar_select %p188, %s189, %s190
    %p194 = pneg %p188
    %p195 = scmp.eq.s32.totalorder %s13, 1
    %p196 = por %p194, %p195
    %p197 = scmp.ne.s32.totalorder %s189, %s192
    %p198 = scmp.eq.s32.totalorder %s13, 0
    %p199 = por %p197, %p198
    %p200 = scmp.ne.s32.totalorder %s189, %s192
    %p201 = scmp.eq.s32.totalorder %s18, 1
    %p202 = por %p200, %p201
    %p203 = scmp.ne.s32.totalorder %s192, %s193
    %p204 = scmp.eq.s32.totalorder %s18, 0
    %p205 = por %p203, %p204
    %p206 = scmp.ne.s32.totalorder %s192, %s193
    %p207 = scmp.eq.s32.totalorder %s19, 1
    %p208 = por %p206, %p207
    %p210 = scmp.ne.s32.totalorder %s193, %s209
    %p211 = scmp.eq.s32.totalorder %s19, 0
    %p212 = por %p210, %p211
    %p213 = scmp.le.s32.totalorder 1, %s13
    %p214 = scmp.lt.s32.totalorder %s13, 3
    %p215 = pnand %p213, %p214
    %p216 = pneg %p215
    // Predicated region
    $region9: #{pointnet_pose_forward.2} parent=5 // pred_check
      _
    $region10: #{pointnet_pose_forward.2} parent=5 // pred_check_branch
      %218 = sbr.rel (%p215) target = $region12
    $region11: #{pointnet_pose_forward.2} parent=5 // pred_region
      %s219 = ssub.s32 %s13, 1
      // Predicated region
      $region13: #{pointnet_pose_forward.2} parent=11 // pred_check
        %p220 = pneg %p74
      $region14: #{pointnet_pose_forward.2} parent=11 // pred_check_branch
        %222 = sbr.rel (%p220) target = $region16
      $region15: #{pointnet_pose_forward.2} parent=11 // pred_region
        _
      $region16: #{pointnet_pose_forward.2} parent=11 // pred_fallthru
        _
      // Predicated region
      $region17: #{pointnet_pose_forward.2} parent=11 // pred_check
        %p223 = pneg %p95
      $region18: #{pointnet_pose_forward.2} parent=11 // pred_check_branch
        %225 = sbr.rel (%p223) target = $region20
      $region19: #{pointnet_pose_forward.2} parent=11 // pred_region
        _
      $region20: #{pointnet_pose_forward.2} parent=11 // pred_fallthru
        _
      // Predicated region
      $region21: #{pointnet_pose_forward.2} parent=11 // pred_check
        %p226 = pneg %p116
      $region22: #{pointnet_pose_forward.2} parent=11 // pred_check_branch
        %228 = sbr.rel (%p226) target = $region24
      $region23: #{pointnet_pose_forward.2} parent=11 // pred_region
        _
      $region24: #{pointnet_pose_forward.2} parent=11 // pred_fallthru
        _
      // Predicated region
      $region25: #{pointnet_pose_forward.2} parent=11 // pred_check
        %p229 = pneg %p137
      $region26: #{pointnet_pose_forward.2} parent=11 // pred_check_branch
        %231 = sbr.rel (%p229) target = $region28
      $region27: #{pointnet_pose_forward.2} parent=11 // pred_region
        _
      $region28: #{pointnet_pose_forward.2} parent=11 // pred_fallthru
        _
      // Predicated region
      $region29: #{pointnet_pose_forward.2} parent=11 // pred_check
        %p232 = pneg %p158
      $region30: #{pointnet_pose_forward.2} parent=11 // pred_check_branch
        %234 = sbr.rel (%p232) target = $region32
      $region31: #{pointnet_pose_forward.2} parent=11 // pred_region
        _
      $region32: #{pointnet_pose_forward.2} parent=11 // pred_fallthru
        _
      // Predicated region
      $region33: #{pointnet_pose_forward.2} parent=11 // pred_check
        %p235 = pneg %p179
      $region34: #{pointnet_pose_forward.2} parent=11 // pred_check_branch
        %237 = sbr.rel (%p235) target = $region36
      $region35: #{pointnet_pose_forward.2} parent=11 // pred_region
        _
      $region36: #{pointnet_pose_forward.2} parent=11 // pred_fallthru
        _
    $region12: #{pointnet_pose_forward.2} parent=5 // pred_fallthru
      _
    %p238 = scmp.lt.s32.totalorder %s13, 2
    // Predicated region
    $region37: #{pointnet_pose_forward.2} parent=5 // pred_check
      %p239 = pneg %p238
    $region38: #{pointnet_pose_forward.2} parent=5 // pred_check_branch
      %241 = sbr.rel (%p239) target = $region40
    $region39: #{pointnet_pose_forward.2} parent=5 // pred_region
      // Predicated region
      $region41: #{pointnet_pose_forward.2} parent=39 // pred_check
        %p242 = pneg %p47
      $region42: #{pointnet_pose_forward.2} parent=39 // pred_check_branch
        %244 = sbr.rel (%p242) target = $region44
      $region43: #{pointnet_pose_forward.2} parent=39 // pred_region
        %s245 = smul.u32 2, %s21
        %p246 = scmp.lt.s32.totalorder %s20, 1
        %s247 = scalar_select %p246, %s20, 1
        %p248 = scmp.lt.s32.totalorder %s245, 1
        %s249 = scalar_select %p248, %s245, 1
        %s250 = smul.addr %s247, 2
        %s251 = sadd.s32 %s249, %s250
        %s252 = smul.addr %s251, 8
        %s253 = scalar_lea.vmem %s0, %s252
        %s254 = smul.u32 2, %s21
      $region44: #{pointnet_pose_forward.2} parent=39 // pred_fallthru
        _
    $region40: #{pointnet_pose_forward.2} parent=5 // pred_fallthru
      _
    %p255 = scmp.le.s32.totalorder 1, %s13
    %p256 = scmp.lt.s32.totalorder %s13, 3
    %p257 = pnand %p255, %p256
    %p258 = pneg %p257
    // Predicated region
    $region45: #{pointnet_pose_forward.2} parent=5 // pred_check
      _
    $region46: #{pointnet_pose_forward.2} parent=5 // pred_check_branch
      %260 = sbr.rel (%p257) target = $region48
    $region47: #{pointnet_pose_forward.2} parent=5 // pred_region
      %s261 = ssub.s32 %s13, 1
      %s262 = smul.u32 2, %s23
      %p263 = scmp.lt.s32.totalorder %s22, 1
      %s264 = scalar_select %p263, %s22, 1
      %p265 = scmp.lt.s32.totalorder %s262, 1
      %s266 = scalar_select %p265, %s262, 1
      %s267 = smul.addr %s264, 2
      %s268 = sadd.s32 %s266, %s267
      %s269 = smul.addr %s268, 8
      %s270 = scalar_lea.vmem %s0, %s269
      %p271 = pneg %p53
      %p272 = pneg %p50
      %p273 = pneg %p74
      %p274 = pneg %p71
      %p275 = pneg %p95
      %p276 = pneg %p92
      %p277 = pneg %p116
      %p278 = pneg %p113
      %p279 = pneg %p137
      %p280 = pneg %p134
      %p281 = pneg %p158
      %p282 = pneg %p155
      %p283 = pneg %p179
      %p284 = pneg %p176
      %p285 = pneg %p205
      %p286 = pneg %p202
      %p287 = scmp.lt.s32.totalorder %s22, 1
      %s288 = scalar_select %p287, %s22, 1
      %s289 = smul.addr %s288, 8
      %s290 = scalar_lea.vmem %s7, %s289
      %s291 = smul.u32 2, %s23
      %p292 = scmp.lt.s32.totalorder %s22, 1
      %s293 = scalar_select %p292, %s22, 1
      %p294 = scmp.lt.s32.totalorder %s291, 1
      %s295 = scalar_select %p294, %s291, 1
      %s296 = smul.addr %s293, 2
      %s297 = sadd.s32 %s295, %s296
      %s298 = smul.addr %s297, 8
      %s299 = scalar_lea.vmem %s0, %s298
      %s300 = smul.u32 2, %s23
      %p301 = scmp.lt.s32.totalorder %s22, 1
      %s302 = scalar_select %p301, %s22, 1
      %s303 = smul.addr %s302, 8
      %s304 = scalar_lea.vmem %s7, %s303
      %p306 = scmp.eq.s32.totalorder %s23, 0
      // Predicated region
      $region49: #{pointnet_pose_forward.2} parent=47 // pred_check
        %p307 = pneg %p306
      $region50: #{pointnet_pose_forward.2} parent=47 // pred_check_branch
        %309 = sbr.rel (%p307) target = $region52
      $region51: #{pointnet_pose_forward.2} parent=47 // pred_region
        %310 = vst [vmem:[#allocation2] sm:$0xff] 0.0
        %311 = vst [vmem:[#allocation2 + $0x8] sm:$0xff] 0.0
        %312 = vst [vmem:[#allocation2 + $0x10] sm:$0xff] 0.0
        %313 = vst [vmem:[#allocation2 + $0x18] sm:$0xff] 0.0
        %314 = vst [vmem:[#allocation2 + $0x20] sm:$0xff] 0.0
        %315 = vst [vmem:[#allocation2 + $0x28] sm:$0xff] 0.0
        %316 = vst [vmem:[#allocation2 + $0x30] sm:$0xff] 0.0
        %317 = vst [vmem:[#allocation2 + $0x38] sm:$0xff] 0.0
      $region52: #{pointnet_pose_forward.2} parent=47 // pred_fallthru
        _
      %v318 = vld [vmem:[%s299] sm:$0xff]
      %v319 = vld [vmem:[%s299 + $0x8] sm:$0xff]
      %v320 = vld [vmem:[%s1] sm:$0x1]
      %322 = vset.pattern.permute.xlu0 0
      %323 = vperm.xlu0 %322, %v318
      %v324 = vpop.permute.xlu0 %323
      %327 = vset.pattern.permute.xlu0 0
      %328 = vperm.xlu0 %327, %v319
      %v329 = vpop.permute.xlu0 %328
      %v331 = vlaneseq
      %v332 = vshrl.u32 %v331, 7
      %v333 = vsub.s32 0, %v332
      %v334 = vrot.slane %v320, %v333
      %v335 = vmul.f32 %v324, %v334
      %v336 = vmul.f32 %v329, %v334
      %v337 = vld [vmem:[%s1 + $0x1] sm:$0x1]
      %338 = vset.pattern.permute.xlu0 1
      %339 = vperm.xlu0 %338, %v318
      %v340 = vpop.permute.xlu0 %339
      %342 = vset.pattern.permute.xlu0 1
      %343 = vperm.xlu0 %342, %v319
      %v344 = vpop.permute.xlu0 %343
      %v346 = vlaneseq
      %v347 = vshrl.u32 %v346, 7
      %v348 = vsub.s32 0, %v347
      %v349 = vrot.slane %v337, %v348
      %v350 = vmul.f32 %v340, %v349
      %v351 = vmul.f32 %v344, %v349
      %v352 = vadd.f32 %v335, %v350
      %v353 = vadd.f32 %v336, %v351
      %v354 = vld [vmem:[%s1 + $0x2] sm:$0x1]
      %355 = vset.pattern.permute.xlu0 2
      %356 = vperm.xlu0 %355, %v318
      %v357 = vpop.permute.xlu0 %356
      %359 = vset.pattern.permute.xlu0 2
      %360 = vperm.xlu0 %359, %v319
      %v361 = vpop.permute.xlu0 %360
      %v363 = vlaneseq
      %v364 = vshrl.u32 %v363, 7
      %v365 = vsub.s32 0, %v364
      %v366 = vrot.slane %v354, %v365
      %v367 = vmul.f32 %v357, %v366
      %v368 = vmul.f32 %v361, %v366
      %v369 = vadd.f32 %v352, %v367
      %v370 = vadd.f32 %v353, %v368
      %v371 = vld [vmem:[%s2] sm:$0x1]
      %v373 = vlaneseq
      %v374 = vshrl.u32 %v373, 7
      %v375 = vsub.s32 0, %v374
      %v376 = vrot.slane %v371, %v375
      %v378 = vadd.f32 %v369, %v376
      %v379 = vadd.f32 %v370, %v376
      %v380 = vmax.f32 %v378, 0.0
      %v381 = vmax.f32 %v379, 0.0
      %v382 = vpack.c.bf16 %v381, %v380
      %v383 = vld [vmem:[%s3] sm:$0xf]
      %v384 = vld [vmem:[%s3 + $0x4] sm:$0xf]
      %v385 = vld [vmem:[%s3 + $0x8] sm:$0xf]
      %v386 = vld [vmem:[%s3 + $0xc] sm:$0xf]
      %v387 = vld [vmem:[%s3 + $0x10] sm:$0xf]
      %v388 = vld [vmem:[%s3 + $0x14] sm:$0xf]
      %v389 = vld [vmem:[%s3 + $0x18] sm:$0xf]
      %v390 = vld [vmem:[%s3 + $0x1c] sm:$0xf]
      %v391 = vld [vmem:[%s4] sm:$0x1]
      %v393 = vlaneseq
      %v394 = vshrl.u32 %v393, 7
      %v395 = vsub.s32 0, %v394
      %v396 = vrot.slane %v391, %v395
      %v406 = vunpack.c.l.b16 %v383
      %v407 = vunpack.c.l.b16 %v384
      %v408 = vunpack.c.l.b16 %v385
      %v409 = vunpack.c.l.b16 %v386
      %v410 = vunpack.c.l.b16 %v387
      %v411 = vunpack.c.l.b16 %v388
      %v412 = vunpack.c.l.b16 %v389
      %v413 = vunpack.c.l.b16 %v390
      %v414 = vpack.c.b16 %v407, %v406
      %v415 = vpack.c.b16 %v409, %v408
      %v416 = vpack.c.b16 %v411, %v410
      %v417 = vpack.c.b16 %v413, %v412
      %vm422 = vcmask 523264
      %v424 = vsel %vm422, %v382, 0
      %426 = vmatprep.subr.bf16.mxu0 0
      %427 = vmatpush1.bf16.msra.mxu0 %v414
      %428 = vmatprep.subr.bf16.mxu0 0
      %429 = vmatpush1.bf16.msra.mxu0 %v415
      %430 = vmatprep.subr.bf16.mxu0 0
      %431 = vmatpush1.bf16.msra.mxu0 %v416
      %432 = vmatprep.subr.bf16.mxu0 0
      %433 = vmatpush1.bf16.msra.mxu0 %v417
      %434 = vmatprep.subr.bf16.mxu0 0
      %435 = vmatpush1.bf16.msra.mxu0 0
      %436 = vmatprep.subr.bf16.mxu0 0
      %437 = vmatpush1.bf16.msra.mxu0 0
      %438 = vmatprep.subr.bf16.mxu0 0
      %439 = vmatpush1.bf16.msra.mxu0 0
      %440 = vmatprep.subr.bf16.mxu0 0
      %441 = vmatpush1.bf16.msra.mxu0 0
      %442 = vmatprep.subr.bf16.mxu0 0
      %443 = vmatpush1.bf16.msra.mxu0 0
      %444 = vmatprep.subr.bf16.mxu0 0
      %445 = vmatpush1.bf16.msra.mxu0 0
      %446 = vmatprep.subr.bf16.mxu0 0
      %447 = vmatpush1.bf16.msra.mxu0 0
      %448 = vmatprep.subr.bf16.mxu0 0
      %449 = vmatpush1.bf16.msra.mxu0 0
      %450 = vmatprep.subr.bf16.mxu0 0
      %451 = vmatpush1.bf16.msra.mxu0 0
      %452 = vmatprep.subr.bf16.mxu0 0
      %453 = vmatpush1.bf16.msra.mxu0 0
      %454 = vmatprep.subr.bf16.mxu0 0
      %455 = vmatpush1.bf16.msra.mxu0 0
      %456 = vmatprep.subr.bf16.mxu0 0
      %457 = vmatpush1.bf16.msra.mxu0 0
      %458 = vmatprep.mubr.bf16.mxu0 0
      %459 = vmatmul.mubr.bf16.gmra.mrb[0].mxu0 %v424
      %v460 = vpop.f32.mrb[0].mxu0
      %v461 = vadd.f32 %v396, %v460
      %v462 = vpop.f32.mrb[0].mxu0
      %v463 = vpop.f32.mrb[0].mxu0
      %v464 = vadd.f32 %v396, %v463
      %v465 = vpop.f32.mrb[0].mxu0
      %466 = vdwg.mxu0
      %v467 = vmax.f32 %v461, 0.0
      %v468 = vmax.f32 %v464, 0.0
      %v469 = vpack.c.bf16 %v468, %v467
      %v470 = vld [vmem:[%s5] sm:$0xff]
      %v471 = vld [vmem:[%s5 + $0x8] sm:$0xff]
      %v472 = vld [vmem:[%s5 + $0x10] sm:$0xff]
      %v473 = vld [vmem:[%s5 + $0x18] sm:$0xff]
      %v474 = vld [vmem:[%s5 + $0x20] sm:$0xff]
      %v475 = vld [vmem:[%s5 + $0x28] sm:$0xff]
      %v476 = vld [vmem:[%s5 + $0x30] sm:$0xff]
      %v477 = vld [vmem:[%s5 + $0x38] sm:$0xff]
      %v478 = vld [vmem:[%s5 + $0x40] sm:$0xff]
      %v479 = vld [vmem:[%s5 + $0x48] sm:$0xff]
      %v480 = vld [vmem:[%s5 + $0x50] sm:$0xff]
      %v481 = vld [vmem:[%s5 + $0x58] sm:$0xff]
      %v482 = vld [vmem:[%s5 + $0x60] sm:$0xff]
      %v483 = vld [vmem:[%s5 + $0x68] sm:$0xff]
      %v484 = vld [vmem:[%s5 + $0x70] sm:$0xff]
      %v485 = vld [vmem:[%s5 + $0x78] sm:$0xff]
      %v486 = vld [vmem:[%s5 + $0x80] sm:$0xff]
      %v487 = vld [vmem:[%s5 + $0x88] sm:$0xff]
      %v488 = vld [vmem:[%s5 + $0x90] sm:$0xff]
      %v489 = vld [vmem:[%s5 + $0x98] sm:$0xff]
      %v490 = vld [vmem:[%s5 + $0xa0] sm:$0xff]
      %v491 = vld [vmem:[%s5 + $0xa8] sm:$0xff]
      %v492 = vld [vmem:[%s5 + $0xb0] sm:$0xff]
      %v493 = vld [vmem:[%s5 + $0xb8] sm:$0xff]
      %v494 = vld [vmem:[%s5 + $0xc0] sm:$0xff]
      %v495 = vld [vmem:[%s5 + $0xc8] sm:$0xff]
      %v496 = vld [vmem:[%s5 + $0xd0] sm:$0xff]
      %v497 = vld [vmem:[%s5 + $0xd8] sm:$0xff]
      %v498 = vld [vmem:[%s5 + $0xe0] sm:$0xff]
      %v499 = vld [vmem:[%s5 + $0xe8] sm:$0xff]
      %v500 = vld [vmem:[%s5 + $0xf0] sm:$0xff]
      %v501 = vld [vmem:[%s5 + $0xf8] sm:$0xff]
      %v502 = vld [vmem:[%s5 + $0x100] sm:$0xff]
      %v503 = vld [vmem:[%s5 + $0x108] sm:$0xff]
      %v504 = vld [vmem:[%s5 + $0x110] sm:$0xff]
      %v505 = vld [vmem:[%s5 + $0x118] sm:$0xff]
      %v506 = vld [vmem:[%s5 + $0x120] sm:$0xff]
      %v507 = vld [vmem:[%s5 + $0x128] sm:$0xff]
      %v508 = vld [vmem:[%s5 + $0x130] sm:$0xff]
      %v509 = vld [vmem:[%s5 + $0x138] sm:$0xff]
      %v510 = vld [vmem:[%s5 + $0x140] sm:$0xff]
      %v511 = vld [vmem:[%s5 + $0x148] sm:$0xff]
      %v512 = vld [vmem:[%s5 + $0x150] sm:$0xff]
      %v513 = vld [vmem:[%s5 + $0x158] sm:$0xff]
      %v514 = vld [vmem:[%s5 + $0x160] sm:$0xff]
      %v515 = vld [vmem:[%s5 + $0x168] sm:$0xff]
      %v516 = vld [vmem:[%s5 + $0x170] sm:$0xff]
      %v517 = vld [vmem:[%s5 + $0x178] sm:$0xff]
      %v518 = vld [vmem:[%s5 + $0x180] sm:$0xff]
      %v519 = vld [vmem:[%s5 + $0x188] sm:$0xff]
      %v520 = vld [vmem:[%s5 + $0x190] sm:$0xff]
      %v521 = vld [vmem:[%s5 + $0x198] sm:$0xff]
      %v522 = vld [vmem:[%s5 + $0x1a0] sm:$0xff]
      %v523 = vld [vmem:[%s5 + $0x1a8] sm:$0xff]
      %v524 = vld [vmem:[%s5 + $0x1b0] sm:$0xff]
      %v525 = vld [vmem:[%s5 + $0x1b8] sm:$0xff]
      %v526 = vld [vmem:[%s5 + $0x1c0] sm:$0xff]
      %v527 = vld [vmem:[%s5 + $0x1c8] sm:$0xff]
      %v528 = vld [vmem:[%s5 + $0x1d0] sm:$0xff]
      %v529 = vld [vmem:[%s5 + $0x1d8] sm:$0xff]
      %v530 = vld [vmem:[%s5 + $0x1e0] sm:$0xff]
      %v531 = vld [vmem:[%s5 + $0x1e8] sm:$0xff]
      %v532 = vld [vmem:[%s5 + $0x1f0] sm:$0xff]
      %v533 = vld [vmem:[%s5 + $0x1f8] sm:$0xff]
      %v534 = vld [vmem:[%s6] sm:$0xff]
      %v536 = vlaneseq
      %v537 = vshrl.u32 %v536, 7
      %v538 = vsub.s32 0, %v537
      %v539 = vrot.slane %v534, %v538
      %v540 = vlaneseq
      %v541 = vshrl.u32 %v540, 7
      %v542 = vsub.s32 1, %v541
      %v543 = vrot.slane %v534, %v542
      %v544 = vlaneseq
      %v545 = vshrl.u32 %v544, 7
      %v546 = vsub.s32 2, %v545
      %v547 = vrot.slane %v534, %v546
      %v548 = vlaneseq
      %v549 = vshrl.u32 %v548, 7
      %v550 = vsub.s32 3, %v549
      %v551 = vrot.slane %v534, %v550
      %v552 = vlaneseq
      %v553 = vshrl.u32 %v552, 7
      %v554 = vsub.s32 4, %v553
      %v555 = vrot.slane %v534, %v554
      %v556 = vlaneseq
      %v557 = vshrl.u32 %v556, 7
      %v558 = vsub.s32 5, %v557
      %v559 = vrot.slane %v534, %v558
      %v560 = vlaneseq
      %v561 = vshrl.u32 %v560, 7
      %v562 = vsub.s32 6, %v561
      %v563 = vrot.slane %v534, %v562
      %v564 = vlaneseq
      %v565 = vshrl.u32 %v564, 7
      %v566 = vsub.s32 7, %v565
      %v567 = vrot.slane %v534, %v566
      %v640 = vunpack.c.l.b16 %v470
      %v641 = vunpack.c.h.b16 %v470
      %v642 = vunpack.c.l.b16 %v471
      %v643 = vunpack.c.h.b16 %v471
      %v644 = vunpack.c.l.b16 %v472
      %v645 = vunpack.c.h.b16 %v472
      %v646 = vunpack.c.l.b16 %v473
      %v647 = vunpack.c.h.b16 %v473
      %v648 = vunpack.c.l.b16 %v474
      %v649 = vunpack.c.h.b16 %v474
      %v650 = vunpack.c.l.b16 %v475
      %v651 = vunpack.c.h.b16 %v475
      %v652 = vunpack.c.l.b16 %v476
      %v653 = vunpack.c.h.b16 %v476
      %v654 = vunpack.c.l.b16 %v477
      %v655 = vunpack.c.h.b16 %v477
      %v656 = vunpack.c.l.b16 %v478
      %v657 = vunpack.c.h.b16 %v478
      %v658 = vunpack.c.l.b16 %v479
      %v659 = vunpack.c.h.b16 %v479
      %v660 = vunpack.c.l.b16 %v480
      %v661 = vunpack.c.h.b16 %v480
      %v662 = vunpack.c.l.b16 %v481
      %v663 = vunpack.c.h.b16 %v481
      %v664 = vunpack.c.l.b16 %v482
      %v665 = vunpack.c.h.b16 %v482
      %v666 = vunpack.c.l.b16 %v483
      %v667 = vunpack.c.h.b16 %v483
      %v668 = vunpack.c.l.b16 %v484
      %v669 = vunpack.c.h.b16 %v484
      %v670 = vunpack.c.l.b16 %v485
      %v671 = vunpack.c.h.b16 %v485
      %v672 = vunpack.c.l.b16 %v486
      %v673 = vunpack.c.h.b16 %v486
      %v674 = vunpack.c.l.b16 %v487
      %v675 = vunpack.c.h.b16 %v487
      %v676 = vunpack.c.l.b16 %v488
      %v677 = vunpack.c.h.b16 %v488
      %v678 = vunpack.c.l.b16 %v489
      %v679 = vunpack.c.h.b16 %v489
      %v680 = vunpack.c.l.b16 %v490
      %v681 = vunpack.c.h.b16 %v490
      %v682 = vunpack.c.l.b16 %v491
      %v683 = vunpack.c.h.b16 %v491
      %v684 = vunpack.c.l.b16 %v492
      %v685 = vunpack.c.h.b16 %v492
      %v686 = vunpack.c.l.b16 %v493
      %v687 = vunpack.c.h.b16 %v493
      %v688 = vunpack.c.l.b16 %v494
      %v689 = vunpack.c.h.b16 %v494
      %v690 = vunpack.c.l.b16 %v495
      %v691 = vunpack.c.h.b16 %v495
      %v692 = vunpack.c.l.b16 %v496
      %v693 = vunpack.c.h.b16 %v496
      %v694 = vunpack.c.l.b16 %v497
      %v695 = vunpack.c.h.b16 %v497
      %v696 = vunpack.c.l.b16 %v498
      %v697 = vunpack.c.h.b16 %v498
      %v698 = vunpack.c.l.b16 %v499
      %v699 = vunpack.c.h.b16 %v499
      %v700 = vunpack.c.l.b16 %v500
      %v701 = vunpack.c.h.b16 %v500
      %v702 = vunpack.c.l.b16 %v501
      %v703 = vunpack.c.h.b16 %v501
      %v704 = vunpack.c.l.b16 %v502
      %v705 = vunpack.c.h.b16 %v502
      %v706 = vunpack.c.l.b16 %v503
      %v707 = vunpack.c.h.b16 %v503
      %v708 = vunpack.c.l.b16 %v504
      %v709 = vunpack.c.h.b16 %v504
      %v710 = vunpack.c.l.b16 %v505
      %v711 = vunpack.c.h.b16 %v505
      %v712 = vunpack.c.l.b16 %v506
      %v713 = vunpack.c.h.b16 %v506
      %v714 = vunpack.c.l.b16 %v507
      %v715 = vunpack.c.h.b16 %v507
      %v716 = vunpack.c.l.b16 %v508
      %v717 = vunpack.c.h.b16 %v508
      %v718 = vunpack.c.l.b16 %v509
      %v719 = vunpack.c.h.b16 %v509
      %v720 = vunpack.c.l.b16 %v510
      %v721 = vunpack.c.h.b16 %v510
      %v722 = vunpack.c.l.b16 %v511
      %v723 = vunpack.c.h.b16 %v511
      %v724 = vunpack.c.l.b16 %v512
      %v725 = vunpack.c.h.b16 %v512
      %v726 = vunpack.c.l.b16 %v513
      %v727 = vunpack.c.h.b16 %v513
      %v728 = vunpack.c.l.b16 %v514
      %v729 = vunpack.c.h.b16 %v514
      %v730 = vunpack.c.l.b16 %v515
      %v731 = vunpack.c.h.b16 %v515
      %v732 = vunpack.c.l.b16 %v516
      %v733 = vunpack.c.h.b16 %v516
      %v734 = vunpack.c.l.b16 %v517
      %v735 = vunpack.c.h.b16 %v517
      %v736 = vunpack.c.l.b16 %v518
      %v737 = vunpack.c.h.b16 %v518
      %v738 = vunpack.c.l.b16 %v519
      %v739 = vunpack.c.h.b16 %v519
      %v740 = vunpack.c.l.b16 %v520
      %v741 = vunpack.c.h.b16 %v520
      %v742 = vunpack.c.l.b16 %v521
      %v743 = vunpack.c.h.b16 %v521
      %v744 = vunpack.c.l.b16 %v522
      %v745 = vunpack.c.h.b16 %v522
      %v746 = vunpack.c.l.b16 %v523
      %v747 = vunpack.c.h.b16 %v523
      %v748 = vunpack.c.l.b16 %v524
      %v749 = vunpack.c.h.b16 %v524
      %v750 = vunpack.c.l.b16 %v525
      %v751 = vunpack.c.h.b16 %v525
      %v752 = vunpack.c.l.b16 %v526
      %v753 = vunpack.c.h.b16 %v526
      %v754 = vunpack.c.l.b16 %v527
      %v755 = vunpack.c.h.b16 %v527
      %v756 = vunpack.c.l.b16 %v528
      %v757 = vunpack.c.h.b16 %v528
      %v758 = vunpack.c.l.b16 %v529
      %v759 = vunpack.c.h.b16 %v529
      %v760 = vunpack.c.l.b16 %v530
      %v761 = vunpack.c.h.b16 %v530
      %v762 = vunpack.c.l.b16 %v531
      %v763 = vunpack.c.h.b16 %v531
      %v764 = vunpack.c.l.b16 %v532
      %v765 = vunpack.c.h.b16 %v532
      %v766 = vunpack.c.l.b16 %v533
      %v767 = vunpack.c.h.b16 %v533
      %v768 = vpack.c.b16 %v648, %v640
      %v769 = vpack.c.b16 %v649, %v641
      %v770 = vpack.c.b16 %v650, %v642
      %v771 = vpack.c.b16 %v651, %v643
      %v772 = vpack.c.b16 %v652, %v644
      %v773 = vpack.c.b16 %v653, %v645
      %v774 = vpack.c.b16 %v654, %v646
      %v775 = vpack.c.b16 %v655, %v647
      %v776 = vpack.c.b16 %v664, %v656
      %v777 = vpack.c.b16 %v665, %v657
      %v778 = vpack.c.b16 %v666, %v658
      %v779 = vpack.c.b16 %v667, %v659
      %v780 = vpack.c.b16 %v668, %v660
      %v781 = vpack.c.b16 %v669, %v661
      %v782 = vpack.c.b16 %v670, %v662
      %v783 = vpack.c.b16 %v671, %v663
      %v784 = vpack.c.b16 %v680, %v672
      %v785 = vpack.c.b16 %v681, %v673
      %v786 = vpack.c.b16 %v682, %v674
      %v787 = vpack.c.b16 %v683, %v675
      %v788 = vpack.c.b16 %v684, %v676
      %v789 = vpack.c.b16 %v685, %v677
      %v790 = vpack.c.b16 %v686, %v678
      %v791 = vpack.c.b16 %v687, %v679
      %v792 = vpack.c.b16 %v696, %v688
      %v793 = vpack.c.b16 %v697, %v689
      %v794 = vpack.c.b16 %v698, %v690
      %v795 = vpack.c.b16 %v699, %v691
      %v796 = vpack.c.b16 %v700, %v692
      %v797 = vpack.c.b16 %v701, %v693
      %v798 = vpack.c.b16 %v702, %v694
      %v799 = vpack.c.b16 %v703, %v695
      %v800 = vpack.c.b16 %v712, %v704
      %v801 = vpack.c.b16 %v713, %v705
      %v802 = vpack.c.b16 %v714, %v706
      %v803 = vpack.c.b16 %v715, %v707
      %v804 = vpack.c.b16 %v716, %v708
      %v805 = vpack.c.b16 %v717, %v709
      %v806 = vpack.c.b16 %v718, %v710
      %v807 = vpack.c.b16 %v719, %v711
      %v808 = vpack.c.b16 %v728, %v720
      %v809 = vpack.c.b16 %v729, %v721
      %v810 = vpack.c.b16 %v730, %v722
      %v811 = vpack.c.b16 %v731, %v723
      %v812 = vpack.c.b16 %v732, %v724
      %v813 = vpack.c.b16 %v733, %v725
      %v814 = vpack.c.b16 %v734, %v726
      %v815 = vpack.c.b16 %v735, %v727
      %v816 = vpack.c.b16 %v744, %v736
      %v817 = vpack.c.b16 %v745, %v737
      %v818 = vpack.c.b16 %v746, %v738
      %v819 = vpack.c.b16 %v747, %v739
      %v820 = vpack.c.b16 %v748, %v740
      %v821 = vpack.c.b16 %v749, %v741
      %v822 = vpack.c.b16 %v750, %v742
      %v823 = vpack.c.b16 %v751, %v743
      %v824 = vpack.c.b16 %v760, %v752
      %v825 = vpack.c.b16 %v761, %v753
      %v826 = vpack.c.b16 %v762, %v754
      %v827 = vpack.c.b16 %v763, %v755
      %v828 = vpack.c.b16 %v764, %v756
      %v829 = vpack.c.b16 %v765, %v757
      %v830 = vpack.c.b16 %v766, %v758
      %v831 = vpack.c.b16 %v767, %v759
      %896 = vmatprep.subr.bf16.mxu0 %v769
      %897 = vmatpush1.bf16.msra.mxu0 %v768
      %898 = vmatprep.subr.bf16.mxu0 %v777
      %899 = vmatpush1.bf16.msra.mxu0 %v776
      %900 = vmatprep.subr.bf16.mxu0 %v785
      %901 = vmatpush1.bf16.msra.mxu0 %v784
      %902 = vmatprep.subr.bf16.mxu0 %v793
      %903 = vmatpush1.bf16.msra.mxu0 %v792
      %904 = vmatprep.subr.bf16.mxu0 %v801
      %905 = vmatpush1.bf16.msra.mxu0 %v800
      %906 = vmatprep.subr.bf16.mxu0 %v809
      %907 = vmatpush1.bf16.msra.mxu0 %v808
      %908 = vmatprep.subr.bf16.mxu0 %v817
      %909 = vmatpush1.bf16.msra.mxu0 %v816
      %910 = vmatprep.subr.bf16.mxu0 %v825
      %911 = vmatpush1.bf16.msra.mxu0 %v824
      %912 = vmatprep.subr.bf16.mxu0 0
      %913 = vmatpush1.bf16.msra.mxu0 0
      %914 = vmatprep.subr.bf16.mxu0 0
      %915 = vmatpush1.bf16.msra.mxu0 0
      %916 = vmatprep.subr.bf16.mxu0 0
      %917 = vmatpush1.bf16.msra.mxu0 0
      %918 = vmatprep.subr.bf16.mxu0 0
      %919 = vmatpush1.bf16.msra.mxu0 0
      %920 = vmatprep.subr.bf16.mxu0 0
      %921 = vmatpush1.bf16.msra.mxu0 0
      %922 = vmatprep.subr.bf16.mxu0 0
      %923 = vmatpush1.bf16.msra.mxu0 0
      %924 = vmatprep.subr.bf16.mxu0 0
      %925 = vmatpush1.bf16.msra.mxu0 0
      %926 = vmatprep.subr.bf16.mxu0 0
      %927 = vmatpush1.bf16.msra.mxu0 0
      %928 = vmatprep.mubr.bf16.mxu0 0
      %929 = vmatmul.mubr.bf16.gmra.mrb[0].mxu0 %v469
      %v930 = vpop.f32.mrb[0].mxu0
      %v931 = vadd.f32 %v539, %v930
      %v932 = vpop.f32.mrb[0].mxu0
      %v933 = vadd.f32 %v543, %v932
      %v934 = vpop.f32.mrb[0].mxu0
      %v935 = vadd.f32 %v539, %v934
      %v936 = vpop.f32.mrb[0].mxu0
      %v937 = vadd.f32 %v543, %v936
      %938 = vdwg.mxu0
      %939 = vmatprep.subr.bf16.mxu0 %v771
      %940 = vmatpush1.bf16.msra.mxu0 %v770
      %941 = vmatprep.subr.bf16.mxu0 %v779
      %942 = vmatpush1.bf16.msra.mxu0 %v778
      %943 = vmatprep.subr.bf16.mxu0 %v787
      %944 = vmatpush1.bf16.msra.mxu0 %v786
      %945 = vmatprep.subr.bf16.mxu0 %v795
      %946 = vmatpush1.bf16.msra.mxu0 %v794
      %947 = vmatprep.subr.bf16.mxu0 %v803
      %948 = vmatpush1.bf16.msra.mxu0 %v802
      %949 = vmatprep.subr.bf16.mxu0 %v811
      %950 = vmatpush1.bf16.msra.mxu0 %v810
      %951 = vmatprep.subr.bf16.mxu0 %v819
      %952 = vmatpush1.bf16.msra.mxu0 %v818
      %953 = vmatprep.subr.bf16.mxu0 %v827
      %954 = vmatpush1.bf16.msra.mxu0 %v826
      %955 = vmatprep.subr.bf16.mxu0 0
      %956 = vmatpush1.bf16.msra.mxu0 0
      %957 = vmatprep.subr.bf16.mxu0 0
      %958 = vmatpush1.bf16.msra.mxu0 0
      %959 = vmatprep.subr.bf16.mxu0 0
      %960 = vmatpush1.bf16.msra.mxu0 0
      %961 = vmatprep.subr.bf16.mxu0 0
      %962 = vmatpush1.bf16.msra.mxu0 0
      %963 = vmatprep.subr.bf16.mxu0 0
      %964 = vmatpush1.bf16.msra.mxu0 0
      %965 = vmatprep.subr.bf16.mxu0 0
      %966 = vmatpush1.bf16.msra.mxu0 0
      %967 = vmatprep.subr.bf16.mxu0 0
      %968 = vmatpush1.bf16.msra.mxu0 0
      %969 = vmatprep.subr.bf16.mxu0 0
      %970 = vmatpush1.bf16.msra.mxu0 0
      %971 = vmatprep.mubr.bf16.mxu0 0
      %972 = vmatmul.mubr.bf16.gmra.mrb[0].mxu0 %v469
      %v973 = vpop.f32.mrb[0].mxu0
      %v974 = vadd.f32 %v547, %v973
      %v975 = vpop.f32.mrb[0].mxu0
      %v976 = vadd.f32 %v551, %v975
      %v977 = vpop.f32.mrb[0].mxu0
      %v978 = vadd.f32 %v547, %v977
      %v979 = vpop.f32.mrb[0].mxu0
      %v980 = vadd.f32 %v551, %v979
      %981 = vdwg.mxu0
      %982 = vmatprep.subr.bf16.mxu0 %v773
      %983 = vmatpush1.bf16.msra.mxu0 %v772
      %984 = vmatprep.subr.bf16.mxu0 %v781
      %985 = vmatpush1.bf16.msra.mxu0 %v780
      %986 = vmatprep.subr.bf16.mxu0 %v789
      %987 = vmatpush1.bf16.msra.mxu0 %v788
      %988 = vmatprep.subr.bf16.mxu0 %v797
      %989 = vmatpush1.bf16.msra.mxu0 %v796
      %990 = vmatprep.subr.bf16.mxu0 %v805
      %991 = vmatpush1.bf16.msra.mxu0 %v804
      %992 = vmatprep.subr.bf16.mxu0 %v813
      %993 = vmatpush1.bf16.msra.mxu0 %v812
      %994 = vmatprep.subr.bf16.mxu0 %v821
      %995 = vmatpush1.bf16.msra.mxu0 %v820
      %996 = vmatprep.subr.bf16.mxu0 %v829
      %997 = vmatpush1.bf16.msra.mxu0 %v828
      %998 = vmatprep.subr.bf16.mxu0 0
      %999 = vmatpush1.bf16.msra.mxu0 0
      %1000 = vmatprep.subr.bf16.mxu0 0
      %1001 = vmatpush1.bf16.msra.mxu0 0
      %1002 = vmatprep.subr.bf16.mxu0 0
      %1003 = vmatpush1.bf16.msra.mxu0 0
      %1004 = vmatprep.subr.bf16.mxu0 0
      %1005 = vmatpush1.bf16.msra.mxu0 0
      %1006 = vmatprep.subr.bf16.mxu0 0
      %1007 = vmatpush1.bf16.msra.mxu0 0
      %1008 = vmatprep.subr.bf16.mxu0 0
      %1009 = vmatpush1.bf16.msra.mxu0 0
      %1010 = vmatprep.subr.bf16.mxu0 0
      %1011 = vmatpush1.bf16.msra.mxu0 0
      %1012 = vmatprep.subr.bf16.mxu0 0
      %1013 = vmatpush1.bf16.msra.mxu0 0
      %1014 = vmatprep.mubr.bf16.mxu0 0
      %1015 = vmatmul.mubr.bf16.gmra.mrb[0].mxu0 %v469
      %v1016 = vpop.f32.mrb[0].mxu0
      %v1017 = vadd.f32 %v555, %v1016
      %v1018 = vpop.f32.mrb[0].mxu0
      %v1019 = vadd.f32 %v559, %v1018
      %v1020 = vpop.f32.mrb[0].mxu0
      %v1021 = vadd.f32 %v555, %v1020
      %v1022 = vpop.f32.mrb[0].mxu0
      %v1023 = vadd.f32 %v559, %v1022
      %1024 = vdwg.mxu0
      %1025 = vmatprep.subr.bf16.mxu0 %v775
      %1026 = vmatpush1.bf16.msra.mxu0 %v774
      %1027 = vmatprep.subr.bf16.mxu0 %v783
      %1028 = vmatpush1.bf16.msra.mxu0 %v782
      %1029 = vmatprep.subr.bf16.mxu0 %v791
      %1030 = vmatpush1.bf16.msra.mxu0 %v790
      %1031 = vmatprep.subr.bf16.mxu0 %v799
      %1032 = vmatpush1.bf16.msra.mxu0 %v798
      %1033 = vmatprep.subr.bf16.mxu0 %v807
      %1034 = vmatpush1.bf16.msra.mxu0 %v806
      %1035 = vmatprep.subr.bf16.mxu0 %v815
      %1036 = vmatpush1.bf16.msra.mxu0 %v814
      %1037 = vmatprep.subr.bf16.mxu0 %v823
      %1038 = vmatpush1.bf16.msra.mxu0 %v822
      %1039 = vmatprep.subr.bf16.mxu0 %v831
      %1040 = vmatpush1.bf16.msra.mxu0 %v830
      %1041 = vmatprep.subr.bf16.mxu0 0
      %1042 = vmatpush1.bf16.msra.mxu0 0
      %1043 = vmatprep.subr.bf16.mxu0 0
      %1044 = vmatpush1.bf16.msra.mxu0 0
      %1045 = vmatprep.subr.bf16.mxu0 0
      %1046 = vmatpush1.bf16.msra.mxu0 0
      %1047 = vmatprep.subr.bf16.mxu0 0
      %1048 = vmatpush1.bf16.msra.mxu0 0
      %1049 = vmatprep.subr.bf16.mxu0 0
      %1050 = vmatpush1.bf16.msra.mxu0 0
      %1051 = vmatprep.subr.bf16.mxu0 0
      %1052 = vmatpush1.bf16.msra.mxu0 0
      %1053 = vmatprep.subr.bf16.mxu0 0
      %1054 = vmatpush1.bf16.msra.mxu0 0
      %1055 = vmatprep.subr.bf16.mxu0 0
      %1056 = vmatpush1.bf16.msra.mxu0 0
      %1057 = vmatprep.mubr.bf16.mxu0 0
      %1058 = vmatmul.mubr.bf16.gmra.mrb[0].mxu0 %v469
      %v1059 = vpop.f32.mrb[0].mxu0
      %v1060 = vadd.f32 %v563, %v1059
      %v1061 = vpop.f32.mrb[0].mxu0
      %v1062 = vadd.f32 %v567, %v1061
      %v1063 = vpop.f32.mrb[0].mxu0
      %v1064 = vadd.f32 %v563, %v1063
      %v1065 = vpop.f32.mrb[0].mxu0
      %v1066 = vadd.f32 %v567, %v1065
      %1067 = vdwg.mxu0
      %v1068 = vmax.f32 %v931, 0.0
      %v1069 = vmax.f32 %v933, 0.0
      %v1070 = vmax.f32 %v974, 0.0
      %v1071 = vmax.f32 %v976, 0.0
      %v1072 = vmax.f32 %v1017, 0.0
      %v1073 = vmax.f32 %v1019, 0.0
      %v1074 = vmax.f32 %v1060, 0.0
      %v1075 = vmax.f32 %v1062, 0.0
      %v1076 = vmax.f32 %v935, 0.0
      %v1077 = vmax.f32 %v937, 0.0
      %v1078 = vmax.f32 %v978, 0.0
      %v1079 = vmax.f32 %v980, 0.0
      %v1080 = vmax.f32 %v1021, 0.0
      %v1081 = vmax.f32 %v1023, 0.0
      %v1082 = vmax.f32 %v1064, 0.0
      %v1083 = vmax.f32 %v1066, 0.0
      %v1084 = vld [vmem:[#allocation2] sm:$0xff]
      %v1085 = vld [vmem:[#allocation2 + $0x8] sm:$0xff]
      %v1086 = vld [vmem:[#allocation2 + $0x10] sm:$0xff]
      %v1087 = vld [vmem:[#allocation2 + $0x18] sm:$0xff]
      %v1088 = vld [vmem:[#allocation2 + $0x20] sm:$0xff]
      %v1089 = vld [vmem:[#allocation2 + $0x28] sm:$0xff]
      %v1090 = vld [vmem:[#allocation2 + $0x30] sm:$0xff]
      %v1091 = vld [vmem:[#allocation2 + $0x38] sm:$0xff]
      %v1092 = vmax.f32 %v1068, %v1076
      %v1093 = vmax.f32 %v1069, %v1077
      %v1094 = vmax.f32 %v1070, %v1078
      %v1095 = vmax.f32 %v1071, %v1079
      %v1096 = vmax.f32 %v1072, %v1080
      %v1097 = vmax.f32 %v1073, %v1081
      %v1098 = vmax.f32 %v1074, %v1082
      %v1099 = vmax.f32 %v1075, %v1083
      %v1100 = vmax.f32 %v1084, %v1092
      %v1101 = vmax.f32 %v1085, %v1093
      %v1102 = vmax.f32 %v1086, %v1094
      %v1103 = vmax.f32 %v1087, %v1095
      %v1104 = vmax.f32 %v1088, %v1096
      %v1105 = vmax.f32 %v1089, %v1097
      %v1106 = vmax.f32 %v1090, %v1098
      %v1107 = vmax.f32 %v1091, %v1099
      %1108 = vst [vmem:[#allocation2] sm:$0xff] %v1100
      %1109 = vst [vmem:[#allocation2 + $0x8] sm:$0xff] %v1101
      %1110 = vst [vmem:[#allocation2 + $0x10] sm:$0xff] %v1102
      %1111 = vst [vmem:[#allocation2 + $0x18] sm:$0xff] %v1103
      %1112 = vst [vmem:[#allocation2 + $0x20] sm:$0xff] %v1104
      %1113 = vst [vmem:[#allocation2 + $0x28] sm:$0xff] %v1105
      %1114 = vst [vmem:[#allocation2 + $0x30] sm:$0xff] %v1106
      %1115 = vst [vmem:[#allocation2 + $0x38] sm:$0xff] %v1107
      // Predicated region
      $region53: #{pointnet_pose_forward.2} parent=47 // pred_check
        %p1116 = pneg %p306
      $region54: #{pointnet_pose_forward.2} parent=47 // pred_check_branch
        %1118 = sbr.rel (%p1116) target = $region56
      $region55: #{pointnet_pose_forward.2} parent=47 // pred_region
        %v1119 = vld [vmem:[#allocation2] sm:$0xff]
        %v1120 = vld [vmem:[#allocation2 + $0x8] sm:$0xff]
        %v1121 = vld [vmem:[#allocation2 + $0x10] sm:$0xff]
        %v1122 = vld [vmem:[#allocation2 + $0x18] sm:$0xff]
        %v1123 = vld [vmem:[#allocation2 + $0x20] sm:$0xff]
        %v1124 = vld [vmem:[#allocation2 + $0x28] sm:$0xff]
        %v1125 = vld [vmem:[#allocation2 + $0x30] sm:$0xff]
        %v1126 = vld [vmem:[#allocation2 + $0x38] sm:$0xff]
        %v1127 = vrot.slane %v1119, 4
        %v1128 = vmax.f32 %v1119, %v1127
        %v1129 = vrot.slane %v1128, 2
        %v1130 = vmax.f32 %v1128, %v1129
        %v1131 = vrot.slane %v1130, 1
        %v1132 = vmax.f32 %v1130, %v1131
        %v1133 = vrot.slane %v1120, 4
        %v1134 = vmax.f32 %v1120, %v1133
        %v1135 = vrot.slane %v1134, 2
        %v1136 = vmax.f32 %v1134, %v1135
        %v1137 = vrot.slane %v1136, 1
        %v1138 = vmax.f32 %v1136, %v1137
        %v1139 = vrot.slane %v1121, 4
        %v1140 = vmax.f32 %v1121, %v1139
        %v1141 = vrot.slane %v1140, 2
        %v1142 = vmax.f32 %v1140, %v1141
        %v1143 = vrot.slane %v1142, 1
        %v1144 = vmax.f32 %v1142, %v1143
        %v1145 = vrot.slane %v1122, 4
        %v1146 = vmax.f32 %v1122, %v1145
        %v1147 = vrot.slane %v1146, 2
        %v1148 = vmax.f32 %v1146, %v1147
        %v1149 = vrot.slane %v1148, 1
        %v1150 = vmax.f32 %v1148, %v1149
        %v1151 = vrot.slane %v1123, 4
        %v1152 = vmax.f32 %v1123, %v1151
        %v1153 = vrot.slane %v1152, 2
        %v1154 = vmax.f32 %v1152, %v1153
        %v1155 = vrot.slane %v1154, 1
        %v1156 = vmax.f32 %v1154, %v1155
        %v1157 = vrot.slane %v1124, 4
        %v1158 = vmax.f32 %v1124, %v1157
        %v1159 = vrot.slane %v1158, 2
        %v1160 = vmax.f32 %v1158, %v1159
        %v1161 = vrot.slane %v1160, 1
        %v1162 = vmax.f32 %v1160, %v1161
        %v1163 = vrot.slane %v1125, 4
        %v1164 = vmax.f32 %v1125, %v1163
        %v1165 = vrot.slane %v1164, 2
        %v1166 = vmax.f32 %v1164, %v1165
        %v1167 = vrot.slane %v1166, 1
        %v1168 = vmax.f32 %v1166, %v1167
        %v1169 = vrot.slane %v1126, 4
        %v1170 = vmax.f32 %v1126, %v1169
        %v1171 = vrot.slane %v1170, 2
        %v1172 = vmax.f32 %v1170, %v1171
        %v1173 = vrot.slane %v1172, 1
        %v1174 = vmax.f32 %v1172, %v1173
        %v1183 = vcombine.low %v1132, %v1138
        %v1184 = vcombine.low %v1144, %v1150
        %v1185 = vcombine.low %v1156, %v1162
        %v1186 = vcombine.low %v1168, %v1174
        %v1188 = vunpack.c.l.s4 1966171168
        %v1189 = vunpack.c.0.s8 %v1188
        %v1190 = vlaneseq
        %v1191 = vshrl.u32 %v1190, 7
        %v1192 = vsub.s32 %v1189, %v1191
        %v1193 = vrot.slane %v1183, %v1192
        %v1195 = vunpack.c.l.s4 1966171168
        %v1196 = vunpack.c.0.s8 %v1195
        %v1197 = vlaneseq
        %v1198 = vshrl.u32 %v1197, 7
        %v1199 = vsub.s32 %v1196, %v1198
        %v1200 = vrot.slane %v1184, %v1199
        %v1202 = vunpack.c.l.s4 1966171168
        %v1203 = vunpack.c.0.s8 %v1202
        %v1204 = vlaneseq
        %v1205 = vshrl.u32 %v1204, 7
        %v1206 = vsub.s32 %v1203, %v1205
        %v1207 = vrot.slane %v1185, %v1206
        %v1209 = vunpack.c.l.s4 1966171168
        %v1210 = vunpack.c.0.s8 %v1209
        %v1211 = vlaneseq
        %v1212 = vshrl.u32 %v1211, 7
        %v1213 = vsub.s32 %v1210, %v1212
        %v1214 = vrot.slane %v1186, %v1213
        %v1215 = vcombine.low %v1193, %v1200
        %v1216 = vcombine.low %v1207, %v1214
        %v1218 = vunpack.c.l.s4 1966171168
        %v1219 = vunpack.c.0.s8 %v1218
        %v1220 = vlaneseq
        %v1221 = vshrl.u32 %v1220, 7
        %v1222 = vsub.s32 %v1219, %v1221
        %v1223 = vrot.slane %v1215, %v1222
        %v1225 = vunpack.c.l.s4 1966171168
        %v1226 = vunpack.c.0.s8 %v1225
        %v1227 = vlaneseq
        %v1228 = vshrl.u32 %v1227, 7
        %v1229 = vsub.s32 %v1226, %v1228
        %v1230 = vrot.slane %v1216, %v1229
        %v1231 = vcombine.low %v1223, %v1230
        %1233 = vst [vmem:[%s304] sm:$0xff] %v1231
      $region56: #{pointnet_pose_forward.2} parent=47 // pred_fallthru
        _
      %p1234 = scmp.lt.s32.totalorder %s22, 1
      %s1235 = scalar_select %p1234, %s22, 1
      %s1236 = smul.addr %s1235, 8
      %s1237 = scalar_lea.vmem %s7, %s1236
      // Predicated region
      $region57: #{pointnet_pose_forward.2} parent=47 // pred_check
        %p1238 = pneg %p202
      $region58: #{pointnet_pose_forward.2} parent=47 // pred_check_branch
        %1240 = sbr.rel (%p1238) target = $region60
      $region59: #{pointnet_pose_forward.2} parent=47 // pred_region
        _
      $region60: #{pointnet_pose_forward.2} parent=47 // pred_fallthru
        _
    $region48: #{pointnet_pose_forward.2} parent=5 // pred_fallthru
      _
    %p1241 = scmp.le.s32.totalorder 2, %s13
    // Predicated region
    $region61: #{pointnet_pose_forward.2} parent=5 // pred_check
      %p1242 = pneg %p1241
    $region62: #{pointnet_pose_forward.2} parent=5 // pred_check_branch
      %1244 = sbr.rel (%p1242) target = $region64
    $region63: #{pointnet_pose_forward.2} parent=5 // pred_region
      %s1245 = ssub.s32 %s13, 2
      // Predicated region
      $region65: #{pointnet_pose_forward.2} parent=63 // pred_check
        %p1246 = pneg %p208
      $region66: #{pointnet_pose_forward.2} parent=63 // pred_check_branch
        %1248 = sbr.rel (%p1246) target = $region68
      $region67: #{pointnet_pose_forward.2} parent=63 // pred_region
        %p1249 = scmp.lt.s32.totalorder %s24, 1
        %s1250 = scalar_select %p1249, %s24, 1
        %s1251 = smul.addr %s1250, 8
        %s1252 = scalar_lea.vmem %s7, %s1251
      $region68: #{pointnet_pose_forward.2} parent=63 // pred_fallthru
        _
    $region64: #{pointnet_pose_forward.2} parent=5 // pred_fallthru
      _
  $region6: #{pointnet_pose_forward.2} parent=0 // loop_footer
    %s17 = sadd.s32 1, %s13
  $region7: #{pointnet_pose_forward.2} parent=0 // loop_footer_branch
    %12 = sbr.rel target = $region3
  $region8: #{pointnet_pose_forward.2} parent=0 // loop_exit
    _

// kernel: pointnet_pose_forward.3
$region0: #{pointnet_pose_forward.3}
  #allocation0 [shape = 'u32[]', space=smem, size = 0x4, offset = 0x4, fixed_abs, tag = 'smem constant byte address 0x4 - core index']
  #allocation1 [shape = 'u32[144,128]{1,0:T(1,128)}', space=vmem, size = 0x12000, scoped, tag = 'internal scratch']
  %s0 = inlined_call_operand.vmem [shape: f32[2,1024], index: 0, kind: input, shape index: {}]
  %s1 = inlined_call_operand.vmem [shape: f32[1024,512], index: 1, kind: input, shape index: {}]
  %s2 = inlined_call_operand.vmem [shape: f32[1,512], index: 2, kind: input, shape index: {}]
  %s3 = inlined_call_operand.vmem [shape: f32[512,256], index: 3, kind: input, shape index: {}]
  %s4 = inlined_call_operand.vmem [shape: f32[1,256], index: 4, kind: input, shape index: {}]
  %s5 = inlined_call_operand.vmem [shape: f32[256,128], index: 5, kind: input, shape index: {}]
  %s6 = inlined_call_operand.vmem [shape: f32[1,128], index: 6, kind: input, shape index: {}]
  %s7 = inlined_call_operand.vmem [shape: f32[2,128], index: 7, kind: output, shape index: {}]
  %s8 = sld [smem:[#allocation0]]
  $region38: #{pointnet_pose_forward.3} parent=0
    _
  %s10 = ssub.s32 1, %s8
  %s11 = scalar_select 0, %s10, %s8
  // Predicated region
  $region2: #{pointnet_pose_forward.3} parent=0 // pred_check
    _
  $region3: #{pointnet_pose_forward.3} parent=0 // pred_check_branch
    %13 = sbr.rel (0) target = $region5
  $region4: #{pointnet_pose_forward.3} parent=0 // pred_region
    _
  $region5: #{pointnet_pose_forward.3} parent=0 // pred_fallthru
    _
  // Predicated region
  $region6: #{pointnet_pose_forward.3} parent=0 // pred_check
    _
  $region7: #{pointnet_pose_forward.3} parent=0 // pred_check_branch
    %15 = sbr.rel (0) target = $region9
  $region8: #{pointnet_pose_forward.3} parent=0 // pred_region
    _
  $region9: #{pointnet_pose_forward.3} parent=0 // pred_fallthru
    _
  // Predicated region
  $region10: #{pointnet_pose_forward.3} parent=0 // pred_check
    _
  $region11: #{pointnet_pose_forward.3} parent=0 // pred_check_branch
    %17 = sbr.rel (0) target = $region13
  $region12: #{pointnet_pose_forward.3} parent=0 // pred_region
    _
  $region13: #{pointnet_pose_forward.3} parent=0 // pred_fallthru
    _
  // Predicated region
  $region14: #{pointnet_pose_forward.3} parent=0 // pred_check
    _
  $region15: #{pointnet_pose_forward.3} parent=0 // pred_check_branch
    %19 = sbr.rel (0) target = $region17
  $region16: #{pointnet_pose_forward.3} parent=0 // pred_region
    _
  $region17: #{pointnet_pose_forward.3} parent=0 // pred_fallthru
    _
  // Predicated region
  $region18: #{pointnet_pose_forward.3} parent=0 // pred_check
    _
  $region19: #{pointnet_pose_forward.3} parent=0 // pred_check_branch
    %21 = sbr.rel (0) target = $region21
  $region20: #{pointnet_pose_forward.3} parent=0 // pred_region
    _
  $region21: #{pointnet_pose_forward.3} parent=0 // pred_fallthru
    _
  // Predicated region
  $region22: #{pointnet_pose_forward.3} parent=0 // pred_check
    _
  $region23: #{pointnet_pose_forward.3} parent=0 // pred_check_branch
    %23 = sbr.rel (0) target = $region25
  $region24: #{pointnet_pose_forward.3} parent=0 // pred_region
    _
  $region25: #{pointnet_pose_forward.3} parent=0 // pred_fallthru
    _
  // Predicated region
  $region26: #{pointnet_pose_forward.3} parent=0 // pred_check
    _
  $region27: #{pointnet_pose_forward.3} parent=0 // pred_check_branch
    %25 = sbr.rel (0) target = $region29
  $region28: #{pointnet_pose_forward.3} parent=0 // pred_region
    _
  $region29: #{pointnet_pose_forward.3} parent=0 // pred_fallthru
    _
  %v26 = vld [vmem:[%s0] sm:$0xff]
  %v27 = vld [vmem:[%s0 + $0x8] sm:$0xff]
  %v28 = vld [vmem:[%s1] sm:$0xff]
  %v29 = vld [vmem:[%s1 + $0x8] sm:$0xff]
  %v30 = vld [vmem:[%s1 + $0x10] sm:$0xff]
  %v31 = vld [vmem:[%s1 + $0x18] sm:$0xff]
  %v32 = vld [vmem:[%s1 + $0x20] sm:$0xff]
  %v33 = vld [vmem:[%s1 + $0x28] sm:$0xff]
  %v34 = vld [vmem:[%s1 + $0x30] sm:$0xff]
  %v35 = vld [vmem:[%s1 + $0x38] sm:$0xff]
  %v36 = vld [vmem:[%s1 + $0x40] sm:$0xff]
  %v37 = vld [vmem:[%s1 + $0x48] sm:$0xff]
  %v38 = vld [vmem:[%s1 + $0x50] sm:$0xff]
  %v39 = vld [vmem:[%s1 + $0x58] sm:$0xff]
  %v40 = vld [vmem:[%s1 + $0x60] sm:$0xff]
  %v41 = vld [vmem:[%s1 + $0x68] sm:$0xff]
  %v42 = vld [vmem:[%s1 + $0x70] sm:$0xff]
  %v43 = vld [vmem:[%s1 + $0x78] sm:$0xff]
  %v44 = vld [vmem:[%s1 + $0x80] sm:$0xff]
  %v45 = vld [vmem:[%s1 + $0x88] sm:$0xff]
  %v46 = vld [vmem:[%s1 + $0x90] sm:$0xff]
  %v47 = vld [vmem:[%s1 + $0x98] sm:$0xff]
  %v48 = vld [vmem:[%s1 + $0xa0] sm:$0xff]
  %v49 = vld [vmem:[%s1 + $0xa8] sm:$0xff]
  %v50 = vld [vmem:[%s1 + $0xb0] sm:$0xff]
  %v51 = vld [vmem:[%s1 + $0xb8] sm:$0xff]
  %v52 = vld [vmem:[%s1 + $0xc0] sm:$0xff]
  %v53 = vld [vmem:[%s1 + $0xc8] sm:$0xff]
  %v54 = vld [vmem:[%s1 + $0xd0] sm:$0xff]
  %v55 = vld [vmem:[%s1 + $0xd8] sm:$0xff]
  %v56 = vld [vmem:[%s1 + $0xe0] sm:$0xff]
  %v57 = vld [vmem:[%s1 + $0xe8] sm:$0xff]
  %v58 = vld [vmem:[%s1 + $0xf0] sm:$0xff]
  %v59 = vld [vmem:[%s1 + $0xf8] sm:$0xff]
  %v60 = vld [vmem:[%s1 + $0x100] sm:$0xff]
  %v61 = vld [vmem:[%s1 + $0x108] sm:$0xff]
  %v62 = vld [vmem:[%s1 + $0x110] sm:$0xff]
  %v63 = vld [vmem:[%s1 + $0x118] sm:$0xff]
  %v64 = vld [vmem:[%s1 + $0x120] sm:$0xff]
  %v65 = vld [vmem:[%s1 + $0x128] sm:$0xff]
  %v66 = vld [vmem:[%s1 + $0x130] sm:$0xff]
  %v67 = vld [vmem:[%s1 + $0x138] sm:$0xff]
  %v68 = vld [vmem:[%s1 + $0x140] sm:$0xff]
  %v69 = vld [vmem:[%s1 + $0x148] sm:$0xff]
  %v70 = vld [vmem:[%s1 + $0x150] sm:$0xff]
  %v71 = vld [vmem:[%s1 + $0x158] sm:$0xff]
  %v72 = vld [vmem:[%s1 + $0x160] sm:$0xff]
  %v73 = vld [vmem:[%s1 + $0x168] sm:$0xff]
  %v74 = vld [vmem:[%s1 + $0x170] sm:$0xff]
  %v75 = vld [vmem:[%s1 + $0x178] sm:$0xff]
  %v76 = vld [vmem:[%s1 + $0x180] sm:$0xff]
  %v77 = vld [vmem:[%s1 + $0x188] sm:$0xff]
  %v78 = vld [vmem:[%s1 + $0x190] sm:$0xff]
  %v79 = vld [vmem:[%s1 + $0x198] sm:$0xff]
  %v80 = vld [vmem:[%s1 + $0x1a0] sm:$0xff]
  %v81 = vld [vmem:[%s1 + $0x1a8] sm:$0xff]
  %v82 = vld [vmem:[%s1 + $0x1b0] sm:$0xff]
  %v83 = vld [vmem:[%s1 + $0x1b8] sm:$0xff]
  %v84 = vld [vmem:[%s1 + $0x1c0] sm:$0xff]
  %v85 = vld [vmem:[%s1 + $0x1c8] sm:$0xff]
  %v86 = vld [vmem:[%s1 + $0x1d0] sm:$0xff]
  %v87 = vld [vmem:[%s1 + $0x1d8] sm:$0xff]
  %v88 = vld [vmem:[%s1 + $0x1e0] sm:$0xff]
  %v89 = vld [vmem:[%s1 + $0x1e8] sm:$0xff]
  %v90 = vld [vmem:[%s1 + $0x1f0] sm:$0xff]
  %v91 = vld [vmem:[%s1 + $0x1f8] sm:$0xff]
  %v92 = vld [vmem:[%s1 + $0x200] sm:$0xff]
  %v93 = vld [vmem:[%s1 + $0x208] sm:$0xff]
  %v94 = vld [vmem:[%s1 + $0x210] sm:$0xff]
  %v95 = vld [vmem:[%s1 + $0x218] sm:$0xff]
  %v96 = vld [vmem:[%s1 + $0x220] sm:$0xff]
  %v97 = vld [vmem:[%s1 + $0x228] sm:$0xff]
  %v98 = vld [vmem:[%s1 + $0x230] sm:$0xff]
  %v99 = vld [vmem:[%s1 + $0x238] sm:$0xff]
  %v100 = vld [vmem:[%s1 + $0x240] sm:$0xff]
  %v101 = vld [vmem:[%s1 + $0x248] sm:$0xff]
  %v102 = vld [vmem:[%s1 + $0x250] sm:$0xff]
  %v103 = vld [vmem:[%s1 + $0x258] sm:$0xff]
  %v104 = vld [vmem:[%s1 + $0x260] sm:$0xff]
  %v105 = vld [vmem:[%s1 + $0x268] sm:$0xff]
  %v106 = vld [vmem:[%s1 + $0x270] sm:$0xff]
  %v107 = vld [vmem:[%s1 + $0x278] sm:$0xff]
  %v108 = vld [vmem:[%s1 + $0x280] sm:$0xff]
  %v109 = vld [vmem:[%s1 + $0x288] sm:$0xff]
  %v110 = vld [vmem:[%s1 + $0x290] sm:$0xff]
  %v111 = vld [vmem:[%s1 + $0x298] sm:$0xff]
  %v112 = vld [vmem:[%s1 + $0x2a0] sm:$0xff]
  %v113 = vld [vmem:[%s1 + $0x2a8] sm:$0xff]
  %v114 = vld [vmem:[%s1 + $0x2b0] sm:$0xff]
  %v115 = vld [vmem:[%s1 + $0x2b8] sm:$0xff]
  %v116 = vld [vmem:[%s1 + $0x2c0] sm:$0xff]
  %v117 = vld [vmem:[%s1 + $0x2c8] sm:$0xff]
  %v118 = vld [vmem:[%s1 + $0x2d0] sm:$0xff]
  %v119 = vld [vmem:[%s1 + $0x2d8] sm:$0xff]
  %v120 = vld [vmem:[%s1 + $0x2e0] sm:$0xff]
  %v121 = vld [vmem:[%s1 + $0x2e8] sm:$0xff]
  %v122 = vld [vmem:[%s1 + $0x2f0] sm:$0xff]
  %v123 = vld [vmem:[%s1 + $0x2f8] sm:$0xff]
  %v124 = vld [vmem:[%s1 + $0x300] sm:$0xff]
  %v125 = vld [vmem:[%s1 + $0x308] sm:$0xff]
  %v126 = vld [vmem:[%s1 + $0x310] sm:$0xff]
  %v127 = vld [vmem:[%s1 + $0x318] sm:$0xff]
  %v128 = vld [vmem:[%s1 + $0x320] sm:$0xff]
  %v129 = vld [vmem:[%s1 + $0x328] sm:$0xff]
  %v130 = vld [vmem:[%s1 + $0x330] sm:$0xff]
  %v131 = vld [vmem:[%s1 + $0x338] sm:$0xff]
  %v132 = vld [vmem:[%s1 + $0x340] sm:$0xff]
  %v133 = vld [vmem:[%s1 + $0x348] sm:$0xff]
  %v134 = vld [vmem:[%s1 + $0x350] sm:$0xff]
  %v135 = vld [vmem:[%s1 + $0x358] sm:$0xff]
  %v136 = vld [vmem:[%s1 + $0x360] sm:$0xff]
  %v137 = vld [vmem:[%s1 + $0x368] sm:$0xff]
  %v138 = vld [vmem:[%s1 + $0x370] sm:$0xff]
  %v139 = vld [vmem:[%s1 + $0x378] sm:$0xff]
  %v140 = vld [vmem:[%s1 + $0x380] sm:$0xff]
  %v141 = vld [vmem:[%s1 + $0x388] sm:$0xff]
  %v142 = vld [vmem:[%s1 + $0x390] sm:$0xff]
  %v143 = vld [vmem:[%s1 + $0x398] sm:$0xff]
  %v144 = vld [vmem:[%s1 + $0x3a0] sm:$0xff]
  %v145 = vld [vmem:[%s1 + $0x3a8] sm:$0xff]
  %v146 = vld [vmem:[%s1 + $0x3b0] sm:$0xff]
  %v147 = vld [vmem:[%s1 + $0x3b8] sm:$0xff]
  %v148 = vld [vmem:[%s1 + $0x3c0] sm:$0xff]
  %v149 = vld [vmem:[%s1 + $0x3c8] sm:$0xff]
  %v150 = vld [vmem:[%s1 + $0x3d0] sm:$0xff]
  %v151 = vld [vmem:[%s1 + $0x3d8] sm:$0xff]
  %v152 = vld [vmem:[%s1 + $0x3e0] sm:$0xff]
  %v153 = vld [vmem:[%s1 + $0x3e8] sm:$0xff]
  %v154 = vld [vmem:[%s1 + $0x3f0] sm:$0xff]
  %v155 = vld [vmem:[%s1 + $0x3f8] sm:$0xff]
  %v156 = vld [vmem:[%s1 + $0x400] sm:$0xff]
  %v157 = vld [vmem:[%s1 + $0x408] sm:$0xff]
  %v158 = vld [vmem:[%s1 + $0x410] sm:$0xff]
  %v159 = vld [vmem:[%s1 + $0x418] sm:$0xff]
  %v160 = vld [vmem:[%s1 + $0x420] sm:$0xff]
  %v161 = vld [vmem:[%s1 + $0x428] sm:$0xff]
  %v162 = vld [vmem:[%s1 + $0x430] sm:$0xff]
  %v163 = vld [vmem:[%s1 + $0x438] sm:$0xff]
  %v164 = vld [vmem:[%s1 + $0x440] sm:$0xff]
  %v165 = vld [vmem:[%s1 + $0x448] sm:$0xff]
  %v166 = vld [vmem:[%s1 + $0x450] sm:$0xff]
  %v167 = vld [vmem:[%s1 + $0x458] sm:$0xff]
  %v168 = vld [vmem:[%s1 + $0x460] sm:$0xff]
  %v169 = vld [vmem:[%s1 + $0x468] sm:$0xff]
  %v170 = vld [vmem:[%s1 + $0x470] sm:$0xff]
  %v171 = vld [vmem:[%s1 + $0x478] sm:$0xff]
  %v172 = vld [vmem:[%s1 + $0x480] sm:$0xff]
  %v173 = vld [vmem:[%s1 + $0x488] sm:$0xff]
  %v174 = vld [vmem:[%s1 + $0x490] sm:$0xff]
  %v175 = vld [vmem:[%s1 + $0x498] sm:$0xff]
  %v176 = vld [vmem:[%s1 + $0x4a0] sm:$0xff]
  %v177 = vld [vmem:[%s1 + $0x4a8] sm:$0xff]
  %v178 = vld [vmem:[%s1 + $0x4b0] sm:$0xff]
  %v179 = vld [vmem:[%s1 + $0x4b8] sm:$0xff]
  %v180 = vld [vmem:[%s1 + $0x4c0] sm:$0xff]
  %v181 = vld [vmem:[%s1 + $0x4c8] sm:$0xff]
  %v182 = vld [vmem:[%s1 + $0x4d0] sm:$0xff]
  %v183 = vld [vmem:[%s1 + $0x4d8] sm:$0xff]
  %v184 = vld [vmem:[%s1 + $0x4e0] sm:$0xff]
  %v185 = vld [vmem:[%s1 + $0x4e8] sm:$0xff]
  %v186 = vld [vmem:[%s1 + $0x4f0] sm:$0xff]
  %v187 = vld [vmem:[%s1 + $0x4f8] sm:$0xff]
  %v188 = vld [vmem:[%s1 + $0x500] sm:$0xff]
  %v189 = vld [vmem:[%s1 + $0x508] sm:$0xff]
  %v190 = vld [vmem:[%s1 + $0x510] sm:$0xff]
  %v191 = vld [vmem:[%s1 + $0x518] sm:$0xff]
  %v192 = vld [vmem:[%s1 + $0x520] sm:$0xff]
  %v193 = vld [vmem:[%s1 + $0x528] sm:$0xff]
  %v194 = vld [vmem:[%s1 + $0x530] sm:$0xff]
  %v195 = vld [vmem:[%s1 + $0x538] sm:$0xff]
  %v196 = vld [vmem:[%s1 + $0x540] sm:$0xff]
  %v197 = vld [vmem:[%s1 + $0x548] sm:$0xff]
  %v198 = vld [vmem:[%s1 + $0x550] sm:$0xff]
  %v199 = vld [vmem:[%s1 + $0x558] sm:$0xff]
  %v200 = vld [vmem:[%s1 + $0x560] sm:$0xff]
  %v201 = vld [vmem:[%s1 + $0x568] sm:$0xff]
  %v202 = vld [vmem:[%s1 + $0x570] sm:$0xff]
  %v203 = vld [vmem:[%s1 + $0x578] sm:$0xff]
  %v204 = vld [vmem:[%s1 + $0x580] sm:$0xff]
  %v205 = vld [vmem:[%s1 + $0x588] sm:$0xff]
  %v206 = vld [vmem:[%s1 + $0x590] sm:$0xff]
  %v207 = vld [vmem:[%s1 + $0x598] sm:$0xff]
  %v208 = vld [vmem:[%s1 + $0x5a0] sm:$0xff]
  %v209 = vld [vmem:[%s1 + $0x5a8] sm:$0xff]
  %v210 = vld [vmem:[%s1 + $0x5b0] sm:$0xff]
  %v211 = vld [vmem:[%s1 + $0x5b8] sm:$0xff]
  %v212 = vld [vmem:[%s1 + $0x5c0] sm:$0xff]
  %v213 = vld [vmem:[%s1 + $0x5c8] sm:$0xff]
  %v214 = vld [vmem:[%s1 + $0x5d0] sm:$0xff]
  %v215 = vld [vmem:[%s1 + $0x5d8] sm:$0xff]
  %v216 = vld [vmem:[%s1 + $0x5e0] sm:$0xff]
  %v217 = vld [vmem:[%s1 + $0x5e8] sm:$0xff]
  %v218 = vld [vmem:[%s1 + $0x5f0] sm:$0xff]
  %v219 = vld [vmem:[%s1 + $0x5f8] sm:$0xff]
  %v220 = vld [vmem:[%s1 + $0x600] sm:$0xff]
  %v221 = vld [vmem:[%s1 + $0x608] sm:$0xff]
  %v222 = vld [vmem:[%s1 + $0x610] sm:$0xff]
  %v223 = vld [vmem:[%s1 + $0x618] sm:$0xff]
  %v224 = vld [vmem:[%s1 + $0x620] sm:$0xff]
  %v225 = vld [vmem:[%s1 + $0x628] sm:$0xff]
  %v226 = vld [vmem:[%s1 + $0x630] sm:$0xff]
  %v227 = vld [vmem:[%s1 + $0x638] sm:$0xff]
  %v228 = vld [vmem:[%s1 + $0x640] sm:$0xff]
  %v229 = vld [vmem:[%s1 + $0x648] sm:$0xff]
  %v230 = vld [vmem:[%s1 + $0x650] sm:$0xff]
  %v231 = vld [vmem:[%s1 + $0x658] sm:$0xff]
  %v232 = vld [vmem:[%s1 + $0x660] sm:$0xff]
  %v233 = vld [vmem:[%s1 + $0x668] sm:$0xff]
  %v234 = vld [vmem:[%s1 + $0x670] sm:$0xff]
  %v235 = vld [vmem:[%s1 + $0x678] sm:$0xff]
  %v236 = vld [vmem:[%s1 + $0x680] sm:$0xff]
  %v237 = vld [vmem:[%s1 + $0x688] sm:$0xff]
  %v238 = vld [vmem:[%s1 + $0x690] sm:$0xff]
  %v239 = vld [vmem:[%s1 + $0x698] sm:$0xff]
  %v240 = vld [vmem:[%s1 + $0x6a0] sm:$0xff]
  %v241 = vld [vmem:[%s1 + $0x6a8] sm:$0xff]
  %v242 = vld [vmem:[%s1 + $0x6b0] sm:$0xff]
  %v243 = vld [vmem:[%s1 + $0x6b8] sm:$0xff]
  %v244 = vld [vmem:[%s1 + $0x6c0] sm:$0xff]
  %v245 = vld [vmem:[%s1 + $0x6c8] sm:$0xff]
  %v246 = vld [vmem:[%s1 + $0x6d0] sm:$0xff]
  %v247 = vld [vmem:[%s1 + $0x6d8] sm:$0xff]
  %v248 = vld [vmem:[%s1 + $0x6e0] sm:$0xff]
  %v249 = vld [vmem:[%s1 + $0x6e8] sm:$0xff]
  %v250 = vld [vmem:[%s1 + $0x6f0] sm:$0xff]
  %v251 = vld [vmem:[%s1 + $0x6f8] sm:$0xff]
  %v252 = vld [vmem:[%s1 + $0x700] sm:$0xff]
  %v253 = vld [vmem:[%s1 + $0x708] sm:$0xff]
  %v254 = vld [vmem:[%s1 + $0x710] sm:$0xff]
  %v255 = vld [vmem:[%s1 + $0x718] sm:$0xff]
  %v256 = vld [vmem:[%s1 + $0x720] sm:$0xff]
  %v257 = vld [vmem:[%s1 + $0x728] sm:$0xff]
  %v258 = vld [vmem:[%s1 + $0x730] sm:$0xff]
  %v259 = vld [vmem:[%s1 + $0x738] sm:$0xff]
  %v260 = vld [vmem:[%s1 + $0x740] sm:$0xff]
  %v261 = vld [vmem:[%s1 + $0x748] sm:$0xff]
  %v262 = vld [vmem:[%s1 + $0x750] sm:$0xff]
  %v263 = vld [vmem:[%s1 + $0x758] sm:$0xff]
  %v264 = vld [vmem:[%s1 + $0x760] sm:$0xff]
  %v265 = vld [vmem:[%s1 + $0x768] sm:$0xff]
  %v266 = vld [vmem:[%s1 + $0x770] sm:$0xff]
  %v267 = vld [vmem:[%s1 + $0x778] sm:$0xff]
  %v268 = vld [vmem:[%s1 + $0x780] sm:$0xff]
  %v269 = vld [vmem:[%s1 + $0x788] sm:$0xff]
  %v270 = vld [vmem:[%s1 + $0x790] sm:$0xff]
  %v271 = vld [vmem:[%s1 + $0x798] sm:$0xff]
  %v272 = vld [vmem:[%s1 + $0x7a0] sm:$0xff]
  %v273 = vld [vmem:[%s1 + $0x7a8] sm:$0xff]
  %v274 = vld [vmem:[%s1 + $0x7b0] sm:$0xff]
  %v275 = vld [vmem:[%s1 + $0x7b8] sm:$0xff]
  %v276 = vld [vmem:[%s1 + $0x7c0] sm:$0xff]
  %v277 = vld [vmem:[%s1 + $0x7c8] sm:$0xff]
  %v278 = vld [vmem:[%s1 + $0x7d0] sm:$0xff]
  %v279 = vld [vmem:[%s1 + $0x7d8] sm:$0xff]
  %v280 = vld [vmem:[%s1 + $0x7e0] sm:$0xff]
  %v281 = vld [vmem:[%s1 + $0x7e8] sm:$0xff]
  %v282 = vld [vmem:[%s1 + $0x7f0] sm:$0xff]
  %v283 = vld [vmem:[%s1 + $0x7f8] sm:$0xff]
  %v284 = vld [vmem:[%s1 + $0x800] sm:$0xff]
  %v285 = vld [vmem:[%s1 + $0x808] sm:$0xff]
  %v286 = vld [vmem:[%s1 + $0x810] sm:$0xff]
  %v287 = vld [vmem:[%s1 + $0x818] sm:$0xff]
  %v288 = vld [vmem:[%s1 + $0x820] sm:$0xff]
  %v289 = vld [vmem:[%s1 + $0x828] sm:$0xff]
  %v290 = vld [vmem:[%s1 + $0x830] sm:$0xff]
  %v291 = vld [vmem:[%s1 + $0x838] sm:$0xff]
  %v292 = vld [vmem:[%s1 + $0x840] sm:$0xff]
  %v293 = vld [vmem:[%s1 + $0x848] sm:$0xff]
  %v294 = vld [vmem:[%s1 + $0x850] sm:$0xff]
  %v295 = vld [vmem:[%s1 + $0x858] sm:$0xff]
  %v296 = vld [vmem:[%s1 + $0x860] sm:$0xff]
  %v297 = vld [vmem:[%s1 + $0x868] sm:$0xff]
  %v298 = vld [vmem:[%s1 + $0x870] sm:$0xff]
  %v299 = vld [vmem:[%s1 + $0x878] sm:$0xff]
  %v300 = vld [vmem:[%s1 + $0x880] sm:$0xff]
  %v301 = vld [vmem:[%s1 + $0x888] sm:$0xff]
  %v302 = vld [vmem:[%s1 + $0x890] sm:$0xff]
  %v303 = vld [vmem:[%s1 + $0x898] sm:$0xff]
  %v304 = vld [vmem:[%s1 + $0x8a0] sm:$0xff]
  %v305 = vld [vmem:[%s1 + $0x8a8] sm:$0xff]
  %v306 = vld [vmem:[%s1 + $0x8b0] sm:$0xff]
  %v307 = vld [vmem:[%s1 + $0x8b8] sm:$0xff]
  %v308 = vld [vmem:[%s1 + $0x8c0] sm:$0xff]
  %v309 = vld [vmem:[%s1 + $0x8c8] sm:$0xff]
  %v310 = vld [vmem:[%s1 + $0x8d0] sm:$0xff]
  %v311 = vld [vmem:[%s1 + $0x8d8] sm:$0xff]
  %v312 = vld [vmem:[%s1 + $0x8e0] sm:$0xff]
  %v313 = vld [vmem:[%s1 + $0x8e8] sm:$0xff]
  %v314 = vld [vmem:[%s1 + $0x8f0] sm:$0xff]
  %v315 = vld [vmem:[%s1 + $0x8f8] sm:$0xff]
  %v316 = vld [vmem:[%s1 + $0x900] sm:$0xff]
  %v317 = vld [vmem:[%s1 + $0x908] sm:$0xff]
  %v318 = vld [vmem:[%s1 + $0x910] sm:$0xff]
  %v319 = vld [vmem:[%s1 + $0x918] sm:$0xff]
  %v320 = vld [vmem:[%s1 + $0x920] sm:$0xff]
  %v321 = vld [vmem:[%s1 + $0x928] sm:$0xff]
  %v322 = vld [vmem:[%s1 + $0x930] sm:$0xff]
  %v323 = vld [vmem:[%s1 + $0x938] sm:$0xff]
  %v324 = vld [vmem:[%s1 + $0x940] sm:$0xff]
  %v325 = vld [vmem:[%s1 + $0x948] sm:$0xff]
  %v326 = vld [vmem:[%s1 + $0x950] sm:$0xff]
  %v327 = vld [vmem:[%s1 + $0x958] sm:$0xff]
  %v328 = vld [vmem:[%s1 + $0x960] sm:$0xff]
  %v329 = vld [vmem:[%s1 + $0x968] sm:$0xff]
  %v330 = vld [vmem:[%s1 + $0x970] sm:$0xff]
  %v331 = vld [vmem:[%s1 + $0x978] sm:$0xff]
  %v332 = vld [vmem:[%s1 + $0x980] sm:$0xff]
  %v333 = vld [vmem:[%s1 + $0x988] sm:$0xff]
  %v334 = vld [vmem:[%s1 + $0x990] sm:$0xff]
  %v335 = vld [vmem:[%s1 + $0x998] sm:$0xff]
  %v336 = vld [vmem:[%s1 + $0x9a0] sm:$0xff]
  %v337 = vld [vmem:[%s1 + $0x9a8] sm:$0xff]
  %v338 = vld [vmem:[%s1 + $0x9b0] sm:$0xff]
  %v339 = vld [vmem:[%s1 + $0x9b8] sm:$0xff]
  %v340 = vld [vmem:[%s1 + $0x9c0] sm:$0xff]
  %v341 = vld [vmem:[%s1 + $0x9c8] sm:$0xff]
  %v342 = vld [vmem:[%s1 + $0x9d0] sm:$0xff]
  %v343 = vld [vmem:[%s1 + $0x9d8] sm:$0xff]
  %v344 = vld [vmem:[%s1 + $0x9e0] sm:$0xff]
  %v345 = vld [vmem:[%s1 + $0x9e8] sm:$0xff]
  %v346 = vld [vmem:[%s1 + $0x9f0] sm:$0xff]
  %v347 = vld [vmem:[%s1 + $0x9f8] sm:$0xff]
  %v348 = vld [vmem:[%s1 + $0xa00] sm:$0xff]
  %v349 = vld [vmem:[%s1 + $0xa08] sm:$0xff]
  %v350 = vld [vmem:[%s1 + $0xa10] sm:$0xff]
  %v351 = vld [vmem:[%s1 + $0xa18] sm:$0xff]
  %v352 = vld [vmem:[%s1 + $0xa20] sm:$0xff]
  %v353 = vld [vmem:[%s1 + $0xa28] sm:$0xff]
  %v354 = vld [vmem:[%s1 + $0xa30] sm:$0xff]
  %v355 = vld [vmem:[%s1 + $0xa38] sm:$0xff]
  %v356 = vld [vmem:[%s1 + $0xa40] sm:$0xff]
  %v357 = vld [vmem:[%s1 + $0xa48] sm:$0xff]
  %v358 = vld [vmem:[%s1 + $0xa50] sm:$0xff]
  %v359 = vld [vmem:[%s1 + $0xa58] sm:$0xff]
  %v360 = vld [vmem:[%s1 + $0xa60] sm:$0xff]
  %v361 = vld [vmem:[%s1 + $0xa68] sm:$0xff]
  %v362 = vld [vmem:[%s1 + $0xa70] sm:$0xff]
  %v363 = vld [vmem:[%s1 + $0xa78] sm:$0xff]
  %v364 = vld [vmem:[%s1 + $0xa80] sm:$0xff]
  %v365 = vld [vmem:[%s1 + $0xa88] sm:$0xff]
  %v366 = vld [vmem:[%s1 + $0xa90] sm:$0xff]
  %v367 = vld [vmem:[%s1 + $0xa98] sm:$0xff]
  %v368 = vld [vmem:[%s1 + $0xaa0] sm:$0xff]
  %v369 = vld [vmem:[%s1 + $0xaa8] sm:$0xff]
  %v370 = vld [vmem:[%s1 + $0xab0] sm:$0xff]
  %v371 = vld [vmem:[%s1 + $0xab8] sm:$0xff]
  %v372 = vld [vmem:[%s1 + $0xac0] sm:$0xff]
  %v373 = vld [vmem:[%s1 + $0xac8] sm:$0xff]
  %v374 = vld [vmem:[%s1 + $0xad0] sm:$0xff]
  %v375 = vld [vmem:[%s1 + $0xad8] sm:$0xff]
  %v376 = vld [vmem:[%s1 + $0xae0] sm:$0xff]
  %v377 = vld [vmem:[%s1 + $0xae8] sm:$0xff]
  %v378 = vld [vmem:[%s1 + $0xaf0] sm:$0xff]
  %v379 = vld [vmem:[%s1 + $0xaf8] sm:$0xff]
  %v380 = vld [vmem:[%s1 + $0xb00] sm:$0xff]
  %v381 = vld [vmem:[%s1 + $0xb08] sm:$0xff]
  %v382 = vld [vmem:[%s1 + $0xb10] sm:$0xff]
  %v383 = vld [vmem:[%s1 + $0xb18] sm:$0xff]
  %v384 = vld [vmem:[%s1 + $0xb20] sm:$0xff]
  %v385 = vld [vmem:[%s1 + $0xb28] sm:$0xff]
  %v386 = vld [vmem:[%s1 + $0xb30] sm:$0xff]
  %v387 = vld [vmem:[%s1 + $0xb38] sm:$0xff]
  %v388 = vld [vmem:[%s1 + $0xb40] sm:$0xff]
  %v389 = vld [vmem:[%s1 + $0xb48] sm:$0xff]
  %v390 = vld [vmem:[%s1 + $0xb50] sm:$0xff]
  %v391 = vld [vmem:[%s1 + $0xb58] sm:$0xff]
  %v392 = vld [vmem:[%s1 + $0xb60] sm:$0xff]
  %v393 = vld [vmem:[%s1 + $0xb68] sm:$0xff]
  %v394 = vld [vmem:[%s1 + $0xb70] sm:$0xff]
  %v395 = vld [vmem:[%s1 + $0xb78] sm:$0xff]
  %v396 = vld [vmem:[%s1 + $0xb80] sm:$0xff]
  %v397 = vld [vmem:[%s1 + $0xb88] sm:$0xff]
  %v398 = vld [vmem:[%s1 + $0xb90] sm:$0xff]
  %v399 = vld [vmem:[%s1 + $0xb98] sm:$0xff]
  %v400 = vld [vmem:[%s1 + $0xba0] sm:$0xff]
  %v401 = vld [vmem:[%s1 + $0xba8] sm:$0xff]
  %v402 = vld [vmem:[%s1 + $0xbb0] sm:$0xff]
  %v403 = vld [vmem:[%s1 + $0xbb8] sm:$0xff]
  %v404 = vld [vmem:[%s1 + $0xbc0] sm:$0xff]
  %v405 = vld [vmem:[%s1 + $0xbc8] sm:$0xff]
  %v406 = vld [vmem:[%s1 + $0xbd0] sm:$0xff]
  %v407 = vld [vmem:[%s1 + $0xbd8] sm:$0xff]
  %v408 = vld [vmem:[%s1 + $0xbe0] sm:$0xff]
  %v409 = vld [vmem:[%s1 + $0xbe8] sm:$0xff]
  %v410 = vld [vmem:[%s1 + $0xbf0] sm:$0xff]
  %v411 = vld [vmem:[%s1 + $0xbf8] sm:$0xff]
  %v412 = vld [vmem:[%s1 + $0xc00] sm:$0xff]
  %v413 = vld [vmem:[%s1 + $0xc08] sm:$0xff]
  %v414 = vld [vmem:[%s1 + $0xc10] sm:$0xff]
  %v415 = vld [vmem:[%s1 + $0xc18] sm:$0xff]
  %v416 = vld [vmem:[%s1 + $0xc20] sm:$0xff]
  %v417 = vld [vmem:[%s1 + $0xc28] sm:$0xff]
  %v418 = vld [vmem:[%s1 + $0xc30] sm:$0xff]
  %v419 = vld [vmem:[%s1 + $0xc38] sm:$0xff]
  %v420 = vld [vmem:[%s1 + $0xc40] sm:$0xff]
  %v421 = vld [vmem:[%s1 + $0xc48] sm:$0xff]
  %v422 = vld [vmem:[%s1 + $0xc50] sm:$0xff]
  %v423 = vld [vmem:[%s1 + $0xc58] sm:$0xff]
  %v424 = vld [vmem:[%s1 + $0xc60] sm:$0xff]
  %v425 = vld [vmem:[%s1 + $0xc68] sm:$0xff]
  %v426 = vld [vmem:[%s1 + $0xc70] sm:$0xff]
  %v427 = vld [vmem:[%s1 + $0xc78] sm:$0xff]
  %v428 = vld [vmem:[%s1 + $0xc80] sm:$0xff]
  %v429 = vld [vmem:[%s1 + $0xc88] sm:$0xff]
  %v430 = vld [vmem:[%s1 + $0xc90] sm:$0xff]
  %v431 = vld [vmem:[%s1 + $0xc98] sm:$0xff]
  %v432 = vld [vmem:[%s1 + $0xca0] sm:$0xff]
  %v433 = vld [vmem:[%s1 + $0xca8] sm:$0xff]
  %v434 = vld [vmem:[%s1 + $0xcb0] sm:$0xff]
  %v435 = vld [vmem:[%s1 + $0xcb8] sm:$0xff]
  %v436 = vld [vmem:[%s1 + $0xcc0] sm:$0xff]
  %v437 = vld [vmem:[%s1 + $0xcc8] sm:$0xff]
  %v438 = vld [vmem:[%s1 + $0xcd0] sm:$0xff]
  %v439 = vld [vmem:[%s1 + $0xcd8] sm:$0xff]
  %v440 = vld [vmem:[%s1 + $0xce0] sm:$0xff]
  %v441 = vld [vmem:[%s1 + $0xce8] sm:$0xff]
  %v442 = vld [vmem:[%s1 + $0xcf0] sm:$0xff]
  %v443 = vld [vmem:[%s1 + $0xcf8] sm:$0xff]
  %v444 = vld [vmem:[%s1 + $0xd00] sm:$0xff]
  %v445 = vld [vmem:[%s1 + $0xd08] sm:$0xff]
  %v446 = vld [vmem:[%s1 + $0xd10] sm:$0xff]
  %v447 = vld [vmem:[%s1 + $0xd18] sm:$0xff]
  %v448 = vld [vmem:[%s1 + $0xd20] sm:$0xff]
  %v449 = vld [vmem:[%s1 + $0xd28] sm:$0xff]
  %v450 = vld [vmem:[%s1 + $0xd30] sm:$0xff]
  %v451 = vld [vmem:[%s1 + $0xd38] sm:$0xff]
  %v452 = vld [vmem:[%s1 + $0xd40] sm:$0xff]
  %v453 = vld [vmem:[%s1 + $0xd48] sm:$0xff]
  %v454 = vld [vmem:[%s1 + $0xd50] sm:$0xff]
  %v455 = vld [vmem:[%s1 + $0xd58] sm:$0xff]
  %v456 = vld [vmem:[%s1 + $0xd60] sm:$0xff]
  %v457 = vld [vmem:[%s1 + $0xd68] sm:$0xff]
  %v458 = vld [vmem:[%s1 + $0xd70] sm:$0xff]
  %v459 = vld [vmem:[%s1 + $0xd78] sm:$0xff]
  %v460 = vld [vmem:[%s1 + $0xd80] sm:$0xff]
  %v461 = vld [vmem:[%s1 + $0xd88] sm:$0xff]
  %v462 = vld [vmem:[%s1 + $0xd90] sm:$0xff]
  %v463 = vld [vmem:[%s1 + $0xd98] sm:$0xff]
  %v464 = vld [vmem:[%s1 + $0xda0] sm:$0xff]
  %v465 = vld [vmem:[%s1 + $0xda8] sm:$0xff]
  %v466 = vld [vmem:[%s1 + $0xdb0] sm:$0xff]
  %v467 = vld [vmem:[%s1 + $0xdb8] sm:$0xff]
  %v468 = vld [vmem:[%s1 + $0xdc0] sm:$0xff]
  %v469 = vld [vmem:[%s1 + $0xdc8] sm:$0xff]
  %v470 = vld [vmem:[%s1 + $0xdd0] sm:$0xff]
  %v471 = vld [vmem:[%s1 + $0xdd8] sm:$0xff]
  %v472 = vld [vmem:[%s1 + $0xde0] sm:$0xff]
  %v473 = vld [vmem:[%s1 + $0xde8] sm:$0xff]
  %v474 = vld [vmem:[%s1 + $0xdf0] sm:$0xff]
  %v475 = vld [vmem:[%s1 + $0xdf8] sm:$0xff]
  %v476 = vld [vmem:[%s1 + $0xe00] sm:$0xff]
  %v477 = vld [vmem:[%s1 + $0xe08] sm:$0xff]
  %v478 = vld [vmem:[%s1 + $0xe10] sm:$0xff]
  %v479 = vld [vmem:[%s1 + $0xe18] sm:$0xff]
  %v480 = vld [vmem:[%s1 + $0xe20] sm:$0xff]
  %v481 = vld [vmem:[%s1 + $0xe28] sm:$0xff]
  %v482 = vld [vmem:[%s1 + $0xe30] sm:$0xff]
  %v483 = vld [vmem:[%s1 + $0xe38] sm:$0xff]
  %v484 = vld [vmem:[%s1 + $0xe40] sm:$0xff]
  %v485 = vld [vmem:[%s1 + $0xe48] sm:$0xff]
  %v486 = vld [vmem:[%s1 + $0xe50] sm:$0xff]
  %v487 = vld [vmem:[%s1 + $0xe58] sm:$0xff]
  %v488 = vld [vmem:[%s1 + $0xe60] sm:$0xff]
  %v489 = vld [vmem:[%s1 + $0xe68] sm:$0xff]
  %v490 = vld [vmem:[%s1 + $0xe70] sm:$0xff]
  %v491 = vld [vmem:[%s1 + $0xe78] sm:$0xff]
  %v492 = vld [vmem:[%s1 + $0xe80] sm:$0xff]
  %v493 = vld [vmem:[%s1 + $0xe88] sm:$0xff]
  %v494 = vld [vmem:[%s1 + $0xe90] sm:$0xff]
  %v495 = vld [vmem:[%s1 + $0xe98] sm:$0xff]
  %v496 = vld [vmem:[%s1 + $0xea0] sm:$0xff]
  %v497 = vld [vmem:[%s1 + $0xea8] sm:$0xff]
  %v498 = vld [vmem:[%s1 + $0xeb0] sm:$0xff]
  %v499 = vld [vmem:[%s1 + $0xeb8] sm:$0xff]
  %v500 = vld [vmem:[%s1 + $0xec0] sm:$0xff]
  %v501 = vld [vmem:[%s1 + $0xec8] sm:$0xff]
  %v502 = vld [vmem:[%s1 + $0xed0] sm:$0xff]
  %v503 = vld [vmem:[%s1 + $0xed8] sm:$0xff]
  %v504 = vld [vmem:[%s1 + $0xee0] sm:$0xff]
  %v505 = vld [vmem:[%s1 + $0xee8] sm:$0xff]
  %v506 = vld [vmem:[%s1 + $0xef0] sm:$0xff]
  %v507 = vld [vmem:[%s1 + $0xef8] sm:$0xff]
  %v508 = vld [vmem:[%s1 + $0xf00] sm:$0xff]
  %v509 = vld [vmem:[%s1 + $0xf08] sm:$0xff]
  %v510 = vld [vmem:[%s1 + $0xf10] sm:$0xff]
  %v511 = vld [vmem:[%s1 + $0xf18] sm:$0xff]
  %v512 = vld [vmem:[%s1 + $0xf20] sm:$0xff]
  %v513 = vld [vmem:[%s1 + $0xf28] sm:$0xff]
  %v514 = vld [vmem:[%s1 + $0xf30] sm:$0xff]
  %v515 = vld [vmem:[%s1 + $0xf38] sm:$0xff]
  %v516 = vld [vmem:[%s1 + $0xf40] sm:$0xff]
  %v517 = vld [vmem:[%s1 + $0xf48] sm:$0xff]
  %v518 = vld [vmem:[%s1 + $0xf50] sm:$0xff]
  %v519 = vld [vmem:[%s1 + $0xf58] sm:$0xff]
  %v520 = vld [vmem:[%s1 + $0xf60] sm:$0xff]
  %v521 = vld [vmem:[%s1 + $0xf68] sm:$0xff]
  %v522 = vld [vmem:[%s1 + $0xf70] sm:$0xff]
  %v523 = vld [vmem:[%s1 + $0xf78] sm:$0xff]
  %v524 = vld [vmem:[%s1 + $0xf80] sm:$0xff]
  %v525 = vld [vmem:[%s1 + $0xf88] sm:$0xff]
  %v526 = vld [vmem:[%s1 + $0xf90] sm:$0xff]
  %v527 = vld [vmem:[%s1 + $0xf98] sm:$0xff]
  %v528 = vld [vmem:[%s1 + $0xfa0] sm:$0xff]
  %v529 = vld [vmem:[%s1 + $0xfa8] sm:$0xff]
  %v530 = vld [vmem:[%s1 + $0xfb0] sm:$0xff]
  %v531 = vld [vmem:[%s1 + $0xfb8] sm:$0xff]
  %v532 = vld [vmem:[%s1 + $0xfc0] sm:$0xff]
  %v533 = vld [vmem:[%s1 + $0xfc8] sm:$0xff]
  %v534 = vld [vmem:[%s1 + $0xfd0] sm:$0xff]
  %v535 = vld [vmem:[%s1 + $0xfd8] sm:$0xff]
  %v536 = vld [vmem:[%s1 + $0xfe0] sm:$0xff]
  %v537 = vld [vmem:[%s1 + $0xfe8] sm:$0xff]
  %v538 = vld [vmem:[%s1 + $0xff0] sm:$0xff]
  %v539 = vld [vmem:[%s1 + $0xff8] sm:$0xff]
  %v540 = vld [vmem:[%s2] sm:$0xf]
  %v542 = vlaneseq
  %v543 = vshrl.u32 %v542, 7
  %v544 = vsub.s32 0, %v543
  %v545 = vrot.slane %v540, %v544
  %v546 = vlaneseq
  %v547 = vshrl.u32 %v546, 7
  %v548 = vsub.s32 1, %v547
  %v549 = vrot.slane %v540, %v548
  %v550 = vlaneseq
  %v551 = vshrl.u32 %v550, 7
  %v552 = vsub.s32 2, %v551
  %v553 = vrot.slane %v540, %v552
  %v554 = vlaneseq
  %v555 = vshrl.u32 %v554, 7
  %v556 = vsub.s32 3, %v555
  %v557 = vrot.slane %v540, %v556
  %v564 = vcombine.high %v26, %v26
  %v566 = vunpack.c.l.s4 1983009808
  %v567 = vunpack.c.0.s8 %v566
  %v568 = vlaneseq
  %v569 = vshrl.u32 %v568, 7
  %v570 = vsub.s32 %v567, %v569
  %v571 = vrot.slane %v26, %v570
  %v573 = vunpack.c.l.s4 1983009808
  %v574 = vunpack.c.0.s8 %v573
  %v575 = vlaneseq
  %v576 = vshrl.u32 %v575, 7
  %v577 = vsub.s32 %v574, %v576
  %v578 = vrot.slane %v564, %v577
  %v579 = vcombine.high %v571, %v571
  %v580 = vcombine.high %v578, %v578
  %v581 = vcombine.high %v27, %v27
  %v583 = vunpack.c.l.s4 1983009808
  %v584 = vunpack.c.0.s8 %v583
  %v585 = vlaneseq
  %v586 = vshrl.u32 %v585, 7
  %v587 = vsub.s32 %v584, %v586
  %v588 = vrot.slane %v27, %v587
  %v590 = vunpack.c.l.s4 1983009808
  %v591 = vunpack.c.0.s8 %v590
  %v592 = vlaneseq
  %v593 = vshrl.u32 %v592, 7
  %v594 = vsub.s32 %v591, %v593
  %v595 = vrot.slane %v581, %v594
  %v596 = vcombine.high %v588, %v588
  %v597 = vcombine.high %v595, %v595
  %606 = vmatprep.subr.mxu0 %v29
  %607 = vmatpush1.msra.mxu0 %v28
  %608 = vmatprep.subr.mxu0 %v33
  %609 = vmatpush1.msra.mxu0 %v32
  %610 = vmatprep.subr.mxu0 %v37
  %611 = vmatpush1.msra.mxu0 %v36
  %612 = vmatprep.subr.mxu0 %v41
  %613 = vmatpush1.msra.mxu0 %v40
  %614 = vmatprep.subr.mxu0 %v45
  %615 = vmatpush1.msra.mxu0 %v44
  %616 = vmatprep.subr.mxu0 %v49
  %617 = vmatpush1.msra.mxu0 %v48
  %618 = vmatprep.subr.mxu0 %v53
  %619 = vmatpush1.msra.mxu0 %v52
  %620 = vmatprep.subr.mxu0 %v57
  %621 = vmatpush1.msra.mxu0 %v56
  %622 = vmatprep.subr.mxu0 %v61
  %623 = vmatpush1.msra.mxu0 %v60
  %624 = vmatprep.subr.mxu0 %v65
  %625 = vmatpush1.msra.mxu0 %v64
  %626 = vmatprep.subr.mxu0 %v69
  %627 = vmatpush1.msra.mxu0 %v68
  %628 = vmatprep.subr.mxu0 %v73
  %629 = vmatpush1.msra.mxu0 %v72
  %630 = vmatprep.subr.mxu0 %v77
  %631 = vmatpush1.msra.mxu0 %v76
  %632 = vmatprep.subr.mxu0 %v81
  %633 = vmatpush1.msra.mxu0 %v80
  %634 = vmatprep.subr.mxu0 %v85
  %635 = vmatpush1.msra.mxu0 %v84
  %636 = vmatprep.subr.mxu0 %v89
  %637 = vmatpush1.msra.mxu0 %v88
  %638 = vmatprep.subr.mxu0 %v93
  %639 = vmatpush1.msra.mxu0 %v92
  %640 = vmatprep.subr.mxu0 %v97
  %641 = vmatpush1.msra.mxu0 %v96
  %642 = vmatprep.subr.mxu0 %v101
  %643 = vmatpush1.msra.mxu0 %v100
  %644 = vmatprep.subr.mxu0 %v105
  %645 = vmatpush1.msra.mxu0 %v104
  %646 = vmatprep.subr.mxu0 %v109
  %647 = vmatpush1.msra.mxu0 %v108
  %648 = vmatprep.subr.mxu0 %v113
  %649 = vmatpush1.msra.mxu0 %v112
  %650 = vmatprep.subr.mxu0 %v117
  %651 = vmatpush1.msra.mxu0 %v116
  %652 = vmatprep.subr.mxu0 %v121
  %653 = vmatpush1.msra.mxu0 %v120
  %654 = vmatprep.subr.mxu0 %v125
  %655 = vmatpush1.msra.mxu0 %v124
  %656 = vmatprep.subr.mxu0 %v129
  %657 = vmatpush1.msra.mxu0 %v128
  %658 = vmatprep.subr.mxu0 %v133
  %659 = vmatpush1.msra.mxu0 %v132
  %660 = vmatprep.subr.mxu0 %v137
  %661 = vmatpush1.msra.mxu0 %v136
  %662 = vmatprep.subr.mxu0 %v141
  %663 = vmatpush1.msra.mxu0 %v140
  %664 = vmatprep.subr.mxu0 %v145
  %665 = vmatpush1.msra.mxu0 %v144
  %666 = vmatprep.subr.mxu0 %v149
  %667 = vmatpush1.msra.mxu0 %v148
  %668 = vmatprep.subr.mxu0 %v153
  %669 = vmatpush1.msra.mxu0 %v152
  %670 = vmatprep.mubr.f32.mxu0 %v579
  %671 = vmatmul.mubr.f32.gmra.mrb[0].mxu0 %v571
  %v672 = vpop.f32.mrb[0].mxu0
  %v673 = vadd.f32 %v545, %v672
  %v674 = vpop.f32.mrb[0].mxu0
  %v675 = vadd.f32 %v549, %v674
  %676 = vdwg.mxu0
  %677 = vmatprep.subr.mxu0 %v157
  %678 = vmatpush1.msra.mxu0 %v156
  %679 = vmatprep.subr.mxu0 %v161
  %680 = vmatpush1.msra.mxu0 %v160
  %681 = vmatprep.subr.mxu0 %v165
  %682 = vmatpush1.msra.mxu0 %v164
  %683 = vmatprep.subr.mxu0 %v169
  %684 = vmatpush1.msra.mxu0 %v168
  %685 = vmatprep.subr.mxu0 %v173
  %686 = vmatpush1.msra.mxu0 %v172
  %687 = vmatprep.subr.mxu0 %v177
  %688 = vmatpush1.msra.mxu0 %v176
  %689 = vmatprep.subr.mxu0 %v181
  %690 = vmatpush1.msra.mxu0 %v180
  %691 = vmatprep.subr.mxu0 %v185
  %692 = vmatpush1.msra.mxu0 %v184
  %693 = vmatprep.subr.mxu0 %v189
  %694 = vmatpush1.msra.mxu0 %v188
  %695 = vmatprep.subr.mxu0 %v193
  %696 = vmatpush1.msra.mxu0 %v192
  %697 = vmatprep.subr.mxu0 %v197
  %698 = vmatpush1.msra.mxu0 %v196
  %699 = vmatprep.subr.mxu0 %v201
  %700 = vmatpush1.msra.mxu0 %v200
  %701 = vmatprep.subr.mxu0 %v205
  %702 = vmatpush1.msra.mxu0 %v204
  %703 = vmatprep.subr.mxu0 %v209
  %704 = vmatpush1.msra.mxu0 %v208
  %705 = vmatprep.subr.mxu0 %v213
  %706 = vmatpush1.msra.mxu0 %v212
  %707 = vmatprep.subr.mxu0 %v217
  %708 = vmatpush1.msra.mxu0 %v216
  %709 = vmatprep.subr.mxu0 %v221
  %710 = vmatpush1.msra.mxu0 %v220
  %711 = vmatprep.subr.mxu0 %v225
  %712 = vmatpush1.msra.mxu0 %v224
  %713 = vmatprep.subr.mxu0 %v229
  %714 = vmatpush1.msra.mxu0 %v228
  %715 = vmatprep.subr.mxu0 %v233
  %716 = vmatpush1.msra.mxu0 %v232
  %717 = vmatprep.subr.mxu0 %v237
  %718 = vmatpush1.msra.mxu0 %v236
  %719 = vmatprep.subr.mxu0 %v241
  %720 = vmatpush1.msra.mxu0 %v240
  %721 = vmatprep.subr.mxu0 %v245
  %722 = vmatpush1.msra.mxu0 %v244
  %723 = vmatprep.subr.mxu0 %v249
  %724 = vmatpush1.msra.mxu0 %v248
  %725 = vmatprep.subr.mxu0 %v253
  %726 = vmatpush1.msra.mxu0 %v252
  %727 = vmatprep.subr.mxu0 %v257
  %728 = vmatpush1.msra.mxu0 %v256
  %729 = vmatprep.subr.mxu0 %v261
  %730 = vmatpush1.msra.mxu0 %v260
  %731 = vmatprep.subr.mxu0 %v265
  %732 = vmatpush1.msra.mxu0 %v264
  %733 = vmatprep.subr.mxu0 %v269
  %734 = vmatpush1.msra.mxu0 %v268
  %735 = vmatprep.subr.mxu0 %v273
  %736 = vmatpush1.msra.mxu0 %v272
  %737 = vmatprep.subr.mxu0 %v277
  %738 = vmatpush1.msra.mxu0 %v276
  %739 = vmatprep.subr.mxu0 %v281
  %740 = vmatpush1.msra.mxu0 %v280
  %741 = vmatprep.mubr.f32.mxu0 %v580
  %742 = vmatmul.mubr.f32.gmra.mrb[0].mxu0 %v578
  %v743 = vpop.f32.mrb[0].mxu0
  %v744 = vadd.f32 %v673, %v743
  %v745 = vpop.f32.mrb[0].mxu0
  %v746 = vadd.f32 %v675, %v745
  %747 = vdwg.mxu0
  %748 = vmatprep.subr.mxu0 %v285
  %749 = vmatpush1.msra.mxu0 %v284
  %750 = vmatprep.subr.mxu0 %v289
  %751 = vmatpush1.msra.mxu0 %v288
  %752 = vmatprep.subr.mxu0 %v293
  %753 = vmatpush1.msra.mxu0 %v292
  %754 = vmatprep.subr.mxu0 %v297
  %755 = vmatpush1.msra.mxu0 %v296
  %756 = vmatprep.subr.mxu0 %v301
  %757 = vmatpush1.msra.mxu0 %v300
  %758 = vmatprep.subr.mxu0 %v305
  %759 = vmatpush1.msra.mxu0 %v304
  %760 = vmatprep.subr.mxu0 %v309
  %761 = vmatpush1.msra.mxu0 %v308
  %762 = vmatprep.subr.mxu0 %v313
  %763 = vmatpush1.msra.mxu0 %v312
  %764 = vmatprep.subr.mxu0 %v317
  %765 = vmatpush1.msra.mxu0 %v316
  %766 = vmatprep.subr.mxu0 %v321
  %767 = vmatpush1.msra.mxu0 %v320
  %768 = vmatprep.subr.mxu0 %v325
  %769 = vmatpush1.msra.mxu0 %v324
  %770 = vmatprep.subr.mxu0 %v329
  %771 = vmatpush1.msra.mxu0 %v328
  %772 = vmatprep.subr.mxu0 %v333
  %773 = vmatpush1.msra.mxu0 %v332
  %774 = vmatprep.subr.mxu0 %v337
  %775 = vmatpush1.msra.mxu0 %v336
  %776 = vmatprep.subr.mxu0 %v341
  %777 = vmatpush1.msra.mxu0 %v340
  %778 = vmatprep.subr.mxu0 %v345
  %779 = vmatpush1.msra.mxu0 %v344
  %780 = vmatprep.subr.mxu0 %v349
  %781 = vmatpush1.msra.mxu0 %v348
  %782 = vmatprep.subr.mxu0 %v353
  %783 = vmatpush1.msra.mxu0 %v352
  %784 = vmatprep.subr.mxu0 %v357
  %785 = vmatpush1.msra.mxu0 %v356
  %786 = vmatprep.subr.mxu0 %v361
  %787 = vmatpush1.msra.mxu0 %v360
  %788 = vmatprep.subr.mxu0 %v365
  %789 = vmatpush1.msra.mxu0 %v364
  %790 = vmatprep.subr.mxu0 %v369
  %791 = vmatpush1.msra.mxu0 %v368
  %792 = vmatprep.subr.mxu0 %v373
  %793 = vmatpush1.msra.mxu0 %v372
  %794 = vmatprep.subr.mxu0 %v377
  %795 = vmatpush1.msra.mxu0 %v376
  %796 = vmatprep.subr.mxu0 %v381
  %797 = vmatpush1.msra.mxu0 %v380
  %798 = vmatprep.subr.mxu0 %v385
  %799 = vmatpush1.msra.mxu0 %v384
  %800 = vmatprep.subr.mxu0 %v389
  %801 = vmatpush1.msra.mxu0 %v388
  %802 = vmatprep.subr.mxu0 %v393
  %803 = vmatpush1.msra.mxu0 %v392
  %804 = vmatprep.subr.mxu0 %v397
  %805 = vmatpush1.msra.mxu0 %v396
  %806 = vmatprep.subr.mxu0 %v401
  %807 = vmatpush1.msra.mxu0 %v400
  %808 = vmatprep.subr.mxu0 %v405
  %809 = vmatpush1.msra.mxu0 %v404
  %810 = vmatprep.subr.mxu0 %v409
  %811 = vmatpush1.msra.mxu0 %v408
  %812 = vmatprep.mubr.f32.mxu0 %v596
  %813 = vmatmul.mubr.f32.gmra.mrb[0].mxu0 %v588
  %v814 = vpop.f32.mrb[0].mxu0
  %v815 = vadd.f32 %v744, %v814
  %v816 = vpop.f32.mrb[0].mxu0
  %v817 = vadd.f32 %v746, %v816
  %818 = vdwg.mxu0
  %819 = vmatprep.subr.mxu0 %v413
  %820 = vmatpush1.msra.mxu0 %v412
  %821 = vmatprep.subr.mxu0 %v417
  %822 = vmatpush1.msra.mxu0 %v416
  %823 = vmatprep.subr.mxu0 %v421
  %824 = vmatpush1.msra.mxu0 %v420
  %825 = vmatprep.subr.mxu0 %v425
  %826 = vmatpush1.msra.mxu0 %v424
  %827 = vmatprep.subr.mxu0 %v429
  %828 = vmatpush1.msra.mxu0 %v428
  %829 = vmatprep.subr.mxu0 %v433
  %830 = vmatpush1.msra.mxu0 %v432
  %831 = vmatprep.subr.mxu0 %v437
  %832 = vmatpush1.msra.mxu0 %v436
  %833 = vmatprep.subr.mxu0 %v441
  %834 = vmatpush1.msra.mxu0 %v440
  %835 = vmatprep.subr.mxu0 %v445
  %836 = vmatpush1.msra.mxu0 %v444
  %837 = vmatprep.subr.mxu0 %v449
  %838 = vmatpush1.msra.mxu0 %v448
  %839 = vmatprep.subr.mxu0 %v453
  %840 = vmatpush1.msra.mxu0 %v452
  %841 = vmatprep.subr.mxu0 %v457
  %842 = vmatpush1.msra.mxu0 %v456
  %843 = vmatprep.subr.mxu0 %v461
  %844 = vmatpush1.msra.mxu0 %v460
  %845 = vmatprep.subr.mxu0 %v465
  %846 = vmatpush1.msra.mxu0 %v464
  %847 = vmatprep.subr.mxu0 %v469
  %848 = vmatpush1.msra.mxu0 %v468
  %849 = vmatprep.subr.mxu0 %v473
  %850 = vmatpush1.msra.mxu0 %v472
  %851 = vmatprep.subr.mxu0 %v477
  %852 = vmatpush1.msra.mxu0 %v476
  %853 = vmatprep.subr.mxu0 %v481
  %854 = vmatpush1.msra.mxu0 %v480
  %855 = vmatprep.subr.mxu0 %v485
  %856 = vmatpush1.msra.mxu0 %v484
  %857 = vmatprep.subr.mxu0 %v489
  %858 = vmatpush1.msra.mxu0 %v488
  %859 = vmatprep.subr.mxu0 %v493
  %860 = vmatpush1.msra.mxu0 %v492
  %861 = vmatprep.subr.mxu0 %v497
  %862 = vmatpush1.msra.mxu0 %v496
  %863 = vmatprep.subr.mxu0 %v501
  %864 = vmatpush1.msra.mxu0 %v500
  %865 = vmatprep.subr.mxu0 %v505
  %866 = vmatpush1.msra.mxu0 %v504
  %867 = vmatprep.subr.mxu0 %v509
  %868 = vmatpush1.msra.mxu0 %v508
  %869 = vmatprep.subr.mxu0 %v513
  %870 = vmatpush1.msra.mxu0 %v512
  %871 = vmatprep.subr.mxu0 %v517
  %872 = vmatpush1.msra.mxu0 %v516
  %873 = vmatprep.subr.mxu0 %v521
  %874 = vmatpush1.msra.mxu0 %v520
  %875 = vmatprep.subr.mxu0 %v525
  %876 = vmatpush1.msra.mxu0 %v524
  %877 = vmatprep.subr.mxu0 %v529
  %878 = vmatpush1.msra.mxu0 %v528
  %879 = vmatprep.subr.mxu0 %v533
  %880 = vmatpush1.msra.mxu0 %v532
  %881 = vmatprep.subr.mxu0 %v537
  %882 = vmatpush1.msra.mxu0 %v536
  %883 = vmatprep.mubr.f32.mxu0 %v597
  %884 = vmatmul.mubr.f32.gmra.mrb[0].mxu0 %v595
  %v885 = vpop.f32.mrb[0].mxu0
  %v886 = vadd.f32 %v815, %v885
  %v887 = vpop.f32.mrb[0].mxu0
  %v888 = vadd.f32 %v817, %v887
  %889 = vdwg.mxu0
  %890 = vmatprep.subr.mxu0 %v31
  %891 = vmatpush1.msra.mxu0 %v30
  %892 = vmatprep.subr.mxu0 %v35
  %893 = vmatpush1.msra.mxu0 %v34
  %894 = vmatprep.subr.mxu0 %v39
  %895 = vmatpush1.msra.mxu0 %v38
  %896 = vmatprep.subr.mxu0 %v43
  %897 = vmatpush1.msra.mxu0 %v42
  %898 = vmatprep.subr.mxu0 %v47
  %899 = vmatpush1.msra.mxu0 %v46
  %900 = vmatprep.subr.mxu0 %v51
  %901 = vmatpush1.msra.mxu0 %v50
  %902 = vmatprep.subr.mxu0 %v55
  %903 = vmatpush1.msra.mxu0 %v54
  %904 = vmatprep.subr.mxu0 %v59
  %905 = vmatpush1.msra.mxu0 %v58
  %906 = vmatprep.subr.mxu0 %v63
  %907 = vmatpush1.msra.mxu0 %v62
  %908 = vmatprep.subr.mxu0 %v67
  %909 = vmatpush1.msra.mxu0 %v66
  %910 = vmatprep.subr.mxu0 %v71
  %911 = vmatpush1.msra.mxu0 %v70
  %912 = vmatprep.subr.mxu0 %v75
  %913 = vmatpush1.msra.mxu0 %v74
  %914 = vmatprep.subr.mxu0 %v79
  %915 = vmatpush1.msra.mxu0 %v78
  %916 = vmatprep.subr.mxu0 %v83
  %917 = vmatpush1.msra.mxu0 %v82
  %918 = vmatprep.subr.mxu0 %v87
  %919 = vmatpush1.msra.mxu0 %v86
  %920 = vmatprep.subr.mxu0 %v91
  %921 = vmatpush1.msra.mxu0 %v90
  %922 = vmatprep.subr.mxu0 %v95
  %923 = vmatpush1.msra.mxu0 %v94
  %924 = vmatprep.subr.mxu0 %v99
  %925 = vmatpush1.msra.mxu0 %v98
  %926 = vmatprep.subr.mxu0 %v103
  %927 = vmatpush1.msra.mxu0 %v102
  %928 = vmatprep.subr.mxu0 %v107
  %929 = vmatpush1.msra.mxu0 %v106
  %930 = vmatprep.subr.mxu0 %v111
  %931 = vmatpush1.msra.mxu0 %v110
  %932 = vmatprep.subr.mxu0 %v115
  %933 = vmatpush1.msra.mxu0 %v114
  %934 = vmatprep.subr.mxu0 %v119
  %935 = vmatpush1.msra.mxu0 %v118
  %936 = vmatprep.subr.mxu0 %v123
  %937 = vmatpush1.msra.mxu0 %v122
  %938 = vmatprep.subr.mxu0 %v127
  %939 = vmatpush1.msra.mxu0 %v126
  %940 = vmatprep.subr.mxu0 %v131
  %941 = vmatpush1.msra.mxu0 %v130
  %942 = vmatprep.subr.mxu0 %v135
  %943 = vmatpush1.msra.mxu0 %v134
  %944 = vmatprep.subr.mxu0 %v139
  %945 = vmatpush1.msra.mxu0 %v138
  %946 = vmatprep.subr.mxu0 %v143
  %947 = vmatpush1.msra.mxu0 %v142
  %948 = vmatprep.subr.mxu0 %v147
  %949 = vmatpush1.msra.mxu0 %v146
  %950 = vmatprep.subr.mxu0 %v151
  %951 = vmatpush1.msra.mxu0 %v150
  %952 = vmatprep.subr.mxu0 %v155
  %953 = vmatpush1.msra.mxu0 %v154
  %954 = vmatprep.mubr.f32.mxu0 %v579
  %955 = vmatmul.mubr.f32.gmra.mrb[0].mxu0 %v571
  %v956 = vpop.f32.mrb[0].mxu0
  %v957 = vadd.f32 %v553, %v956
  %v958 = vpop.f32.mrb[0].mxu0
  %v959 = vadd.f32 %v557, %v958
  %960 = vdwg.mxu0
  %961 = vmatprep.subr.mxu0 %v159
  %962 = vmatpush1.msra.mxu0 %v158
  %963 = vmatprep.subr.mxu0 %v163
  %964 = vmatpush1.msra.mxu0 %v162
  %965 = vmatprep.subr.mxu0 %v167
  %966 = vmatpush1.msra.mxu0 %v166
  %967 = vmatprep.subr.mxu0 %v171
  %968 = vmatpush1.msra.mxu0 %v170
  %969 = vmatprep.subr.mxu0 %v175
  %970 = vmatpush1.msra.mxu0 %v174
  %971 = vmatprep.subr.mxu0 %v179
  %972 = vmatpush1.msra.mxu0 %v178
  %973 = vmatprep.subr.mxu0 %v183
  %974 = vmatpush1.msra.mxu0 %v182
  %975 = vmatprep.subr.mxu0 %v187
  %976 = vmatpush1.msra.mxu0 %v186
  %977 = vmatprep.subr.mxu0 %v191
  %978 = vmatpush1.msra.mxu0 %v190
  %979 = vmatprep.subr.mxu0 %v195
  %980 = vmatpush1.msra.mxu0 %v194
  %981 = vmatprep.subr.mxu0 %v199
  %982 = vmatpush1.msra.mxu0 %v198
  %983 = vmatprep.subr.mxu0 %v203
  %984 = vmatpush1.msra.mxu0 %v202
  %985 = vmatprep.subr.mxu0 %v207
  %986 = vmatpush1.msra.mxu0 %v206
  %987 = vmatprep.subr.mxu0 %v211
  %988 = vmatpush1.msra.mxu0 %v210
  %989 = vmatprep.subr.mxu0 %v215
  %990 = vmatpush1.msra.mxu0 %v214
  %991 = vmatprep.subr.mxu0 %v219
  %992 = vmatpush1.msra.mxu0 %v218
  %993 = vmatprep.subr.mxu0 %v223
  %994 = vmatpush1.msra.mxu0 %v222
  %995 = vmatprep.subr.mxu0 %v227
  %996 = vmatpush1.msra.mxu0 %v226
  %997 = vmatprep.subr.mxu0 %v231
  %998 = vmatpush1.msra.mxu0 %v230
  %999 = vmatprep.subr.mxu0 %v235
  %1000 = vmatpush1.msra.mxu0 %v234
  %1001 = vmatprep.subr.mxu0 %v239
  %1002 = vmatpush1.msra.mxu0 %v238
  %1003 = vmatprep.subr.mxu0 %v243
  %1004 = vmatpush1.msra.mxu0 %v242
  %1005 = vmatprep.subr.mxu0 %v247
  %1006 = vmatpush1.msra.mxu0 %v246
  %1007 = vmatprep.subr.mxu0 %v251
  %1008 = vmatpush1.msra.mxu0 %v250
  %1009 = vmatprep.subr.mxu0 %v255
  %1010 = vmatpush1.msra.mxu0 %v254
  %1011 = vmatprep.subr.mxu0 %v259
  %1012 = vmatpush1.msra.mxu0 %v258
  %1013 = vmatprep.subr.mxu0 %v263
  %1014 = vmatpush1.msra.mxu0 %v262
  %1015 = vmatprep.subr.mxu0 %v267
  %1016 = vmatpush1.msra.mxu0 %v266
  %1017 = vmatprep.subr.mxu0 %v271
  %1018 = vmatpush1.msra.mxu0 %v270
  %1019 = vmatprep.subr.mxu0 %v275
  %1020 = vmatpush1.msra.mxu0 %v274
  %1021 = vmatprep.subr.mxu0 %v279
  %1022 = vmatpush1.msra.mxu0 %v278
  %1023 = vmatprep.subr.mxu0 %v283
  %1024 = vmatpush1.msra.mxu0 %v282
  %1025 = vmatprep.mubr.f32.mxu0 %v580
  %1026 = vmatmul.mubr.f32.gmra.mrb[0].mxu0 %v578
  %v1027 = vpop.f32.mrb[0].mxu0
  %v1028 = vadd.f32 %v957, %v1027
  %v1029 = vpop.f32.mrb[0].mxu0
  %v1030 = vadd.f32 %v959, %v1029
  %1031 = vdwg.mxu0
  %1032 = vmatprep.subr.mxu0 %v287
  %1033 = vmatpush1.msra.mxu0 %v286
  %1034 = vmatprep.subr.mxu0 %v291
  %1035 = vmatpush1.msra.mxu0 %v290
  %1036 = vmatprep.subr.mxu0 %v295
  %1037 = vmatpush1.msra.mxu0 %v294
  %1038 = vmatprep.subr.mxu0 %v299
  %1039 = vmatpush1.msra.mxu0 %v298
  %1040 = vmatprep.subr.mxu0 %v303
  %1041 = vmatpush1.msra.mxu0 %v302
  %1042 = vmatprep.subr.mxu0 %v307
  %1043 = vmatpush1.msra.mxu0 %v306
  %1044 = vmatprep.subr.mxu0 %v311
  %1045 = vmatpush1.msra.mxu0 %v310
  %1046 = vmatprep.subr.mxu0 %v315
  %1047 = vmatpush1.msra.mxu0 %v314
  %1048 = vmatprep.subr.mxu0 %v319
  %1049 = vmatpush1.msra.mxu0 %v318
  %1050 = vmatprep.subr.mxu0 %v323
  %1051 = vmatpush1.msra.mxu0 %v322
  %1052 = vmatprep.subr.mxu0 %v327
  %1053 = vmatpush1.msra.mxu0 %v326
  %1054 = vmatprep.subr.mxu0 %v331
  %1055 = vmatpush1.msra.mxu0 %v330
  %1056 = vmatprep.subr.mxu0 %v335
  %1057 = vmatpush1.msra.mxu0 %v334
  %1058 = vmatprep.subr.mxu0 %v339
  %1059 = vmatpush1.msra.mxu0 %v338
  %1060 = vmatprep.subr.mxu0 %v343
  %1061 = vmatpush1.msra.mxu0 %v342
  %1062 = vmatprep.subr.mxu0 %v347
  %1063 = vmatpush1.msra.mxu0 %v346
  %1064 = vmatprep.subr.mxu0 %v351
  %1065 = vmatpush1.msra.mxu0 %v350
  %1066 = vmatprep.subr.mxu0 %v355
  %1067 = vmatpush1.msra.mxu0 %v354
  %1068 = vmatprep.subr.mxu0 %v359
  %1069 = vmatpush1.msra.mxu0 %v358
  %1070 = vmatprep.subr.mxu0 %v363
  %1071 = vmatpush1.msra.mxu0 %v362
  %1072 = vmatprep.subr.mxu0 %v367
  %1073 = vmatpush1.msra.mxu0 %v366
  %1074 = vmatprep.subr.mxu0 %v371
  %1075 = vmatpush1.msra.mxu0 %v370
  %1076 = vmatprep.subr.mxu0 %v375
  %1077 = vmatpush1.msra.mxu0 %v374
  %1078 = vmatprep.subr.mxu0 %v379
  %1079 = vmatpush1.msra.mxu0 %v378
  %1080 = vmatprep.subr.mxu0 %v383
  %1081 = vmatpush1.msra.mxu0 %v382
  %1082 = vmatprep.subr.mxu0 %v387
  %1083 = vmatpush1.msra.mxu0 %v386
  %1084 = vmatprep.subr.mxu0 %v391
  %1085 = vmatpush1.msra.mxu0 %v390
  %1086 = vmatprep.subr.mxu0 %v395
  %1087 = vmatpush1.msra.mxu0 %v394
  %1088 = vmatprep.subr.mxu0 %v399
  %1089 = vmatpush1.msra.mxu0 %v398
  %1090 = vmatprep.subr.mxu0 %v403
  %1091 = vmatpush1.msra.mxu0 %v402
  %1092 = vmatprep.subr.mxu0 %v407
  %1093 = vmatpush1.msra.mxu0 %v406
  %1094 = vmatprep.subr.mxu0 %v411
  %1095 = vmatpush1.msra.mxu0 %v410
  %1096 = vmatprep.mubr.f32.mxu0 %v596
  %1097 = vmatmul.mubr.f32.gmra.mrb[0].mxu0 %v588
  %v1098 = vpop.f32.mrb[0].mxu0
  %v1099 = vadd.f32 %v1028, %v1098
  %v1100 = vpop.f32.mrb[0].mxu0
  %v1101 = vadd.f32 %v1030, %v1100
  %1102 = vdwg.mxu0
  %1103 = vmatprep.subr.mxu0 %v415
  %1104 = vmatpush1.msra.mxu0 %v414
  %1105 = vmatprep.subr.mxu0 %v419
  %1106 = vmatpush1.msra.mxu0 %v418
  %1107 = vmatprep.subr.mxu0 %v423
  %1108 = vmatpush1.msra.mxu0 %v422
  %1109 = vmatprep.subr.mxu0 %v427
  %1110 = vmatpush1.msra.mxu0 %v426
  %1111 = vmatprep.subr.mxu0 %v431
  %1112 = vmatpush1.msra.mxu0 %v430
  %1113 = vmatprep.subr.mxu0 %v435
  %1114 = vmatpush1.msra.mxu0 %v434
  %1115 = vmatprep.subr.mxu0 %v439
  %1116 = vmatpush1.msra.mxu0 %v438
  %1117 = vmatprep.subr.mxu0 %v443
  %1118 = vmatpush1.msra.mxu0 %v442
  %1119 = vmatprep.subr.mxu0 %v447
  %1120 = vmatpush1.msra.mxu0 %v446
  %1121 = vmatprep.subr.mxu0 %v451
  %1122 = vmatpush1.msra.mxu0 %v450
  %1123 = vmatprep.subr.mxu0 %v455
  %1124 = vmatpush1.msra.mxu0 %v454
  %1125 = vmatprep.subr.mxu0 %v459
  %1126 = vmatpush1.msra.mxu0 %v458
  %1127 = vmatprep.subr.mxu0 %v463
  %1128 = vmatpush1.msra.mxu0 %v462
  %1129 = vmatprep.subr.mxu0 %v467
  %1130 = vmatpush1.msra.mxu0 %v466
  %1131 = vmatprep.subr.mxu0 %v471
  %1132 = vmatpush1.msra.mxu0 %v470
  %1133 = vmatprep.subr.mxu0 %v475
  %1134 = vmatpush1.msra.mxu0 %v474
  %1135 = vmatprep.subr.mxu0 %v479
  %1136 = vmatpush1.msra.mxu0 %v478
  %1137 = vmatprep.subr.mxu0 %v483
  %1138 = vmatpush1.msra.mxu0 %v482
  %1139 = vmatprep.subr.mxu0 %v487
  %1140 = vmatpush1.msra.mxu0 %v486
  %1141 = vmatprep.subr.mxu0 %v491
  %1142 = vmatpush1.msra.mxu0 %v490
  %1143 = vmatprep.subr.mxu0 %v495
  %1144 = vmatpush1.msra.mxu0 %v494
  %1145 = vmatprep.subr.mxu0 %v499
  %1146 = vmatpush1.msra.mxu0 %v498
  %1147 = vmatprep.subr.mxu0 %v503
  %1148 = vmatpush1.msra.mxu0 %v502
  %1149 = vmatprep.subr.mxu0 %v507
  %1150 = vmatpush1.msra.mxu0 %v506
  %1151 = vmatprep.subr.mxu0 %v511
  %1152 = vmatpush1.msra.mxu0 %v510
  %1153 = vmatprep.subr.mxu0 %v515
  %1154 = vmatpush1.msra.mxu0 %v514
  %1155 = vmatprep.subr.mxu0 %v519
  %1156 = vmatpush1.msra.mxu0 %v518
  %1157 = vmatprep.subr.mxu0 %v523
  %1158 = vmatpush1.msra.mxu0 %v522
  %1159 = vmatprep.subr.mxu0 %v527
  %1160 = vmatpush1.msra.mxu0 %v526
  %1161 = vmatprep.subr.mxu0 %v531
  %1162 = vmatpush1.msra.mxu0 %v530
  %1163 = vmatprep.subr.mxu0 %v535
  %1164 = vmatpush1.msra.mxu0 %v534
  %1165 = vmatprep.subr.mxu0 %v539
  %1166 = vmatpush1.msra.mxu0 %v538
  %1167 = vmatprep.mubr.f32.mxu0 %v597
  %1168 = vmatmul.mubr.f32.gmra.mrb[0].mxu0 %v595
  %v1169 = vpop.f32.mrb[0].mxu0
  %v1170 = vadd.f32 %v1099, %v1169
  %v1171 = vpop.f32.mrb[0].mxu0
  %v1172 = vadd.f32 %v1101, %v1171
  %1173 = vdwg.mxu0
  %v1174 = vmax.f32 %v886, 0.0
  %v1175 = vmax.f32 %v888, 0.0
  %v1176 = vmax.f32 %v1170, 0.0
  %v1177 = vmax.f32 %v1172, 0.0
  %v1178 = vld [vmem:[%s3] sm:$0xff]
  %v1179 = vld [vmem:[%s3 + $0x8] sm:$0xff]
  %v1180 = vld [vmem:[%s3 + $0x10] sm:$0xff]
  %v1181 = vld [vmem:[%s3 + $0x18] sm:$0xff]
  %v1182 = vld [vmem:[%s3 + $0x20] sm:$0xff]
  %v1183 = vld [vmem:[%s3 + $0x28] sm:$0xff]
  %v1184 = vld [vmem:[%s3 + $0x30] sm:$0xff]
  %v1185 = vld [vmem:[%s3 + $0x38] sm:$0xff]
  %v1186 = vld [vmem:[%s3 + $0x40] sm:$0xff]
  %v1187 = vld [vmem:[%s3 + $0x48] sm:$0xff]
  %v1188 = vld [vmem:[%s3 + $0x50] sm:$0xff]
  %v1189 = vld [vmem:[%s3 + $0x58] sm:$0xff]
  %v1190 = vld [vmem:[%s3 + $0x60] sm:$0xff]
  %v1191 = vld [vmem:[%s3 + $0x68] sm:$0xff]
  %v1192 = vld [vmem:[%s3 + $0x70] sm:$0xff]
  %v1193 = vld [vmem:[%s3 + $0x78] sm:$0xff]
  %v1194 = vld [vmem:[%s3 + $0x80] sm:$0xff]
  %v1195 = vld [vmem:[%s3 + $0x88] sm:$0xff]
  %v1196 = vld [vmem:[%s3 + $0x90] sm:$0xff]
  %v1197 = vld [vmem:[%s3 + $0x98] sm:$0xff]
  %v1198 = vld [vmem:[%s3 + $0xa0] sm:$0xff]
  %v1199 = vld [vmem:[%s3 + $0xa8] sm:$0xff]
  %v1200 = vld [vmem:[%s3 + $0xb0] sm:$0xff]
  %v1201 = vld [vmem:[%s3 + $0xb8] sm:$0xff]
  %v1202 = vld [vmem:[%s3 + $0xc0] sm:$0xff]
  %v1203 = vld [vmem:[%s3 + $0xc8] sm:$0xff]
  %v1204 = vld [vmem:[%s3 + $0xd0] sm:$0xff]
  %v1205 = vld [vmem:[%s3 + $0xd8] sm:$0xff]
  %v1206 = vld [vmem:[%s3 + $0xe0] sm:$0xff]
  %v1207 = vld [vmem:[%s3 + $0xe8] sm:$0xff]
  %v1208 = vld [vmem:[%s3 + $0xf0] sm:$0xff]
  %v1209 = vld [vmem:[%s3 + $0xf8] sm:$0xff]
  %v1210 = vld [vmem:[%s3 + $0x100] sm:$0xff]
  %v1211 = vld [vmem:[%s3 + $0x108] sm:$0xff]
  %v1212 = vld [vmem:[%s3 + $0x110] sm:$0xff]
  %v1213 = vld [vmem:[%s3 + $0x118] sm:$0xff]
  %v1214 = vld [vmem:[%s3 + $0x120] sm:$0xff]
  %v1215 = vld [vmem:[%s3 + $0x128] sm:$0xff]
  %v1216 = vld [vmem:[%s3 + $0x130] sm:$0xff]
  %v1217 = vld [vmem:[%s3 + $0x138] sm:$0xff]
  %v1218 = vld [vmem:[%s3 + $0x140] sm:$0xff]
  %v1219 = vld [vmem:[%s3 + $0x148] sm:$0xff]
  %v1220 = vld [vmem:[%s3 + $0x150] sm:$0xff]
  %v1221 = vld [vmem:[%s3 + $0x158] sm:$0xff]
  %v1222 = vld [vmem:[%s3 + $0x160] sm:$0xff]
  %v1223 = vld [vmem:[%s3 + $0x168] sm:$0xff]
  %v1224 = vld [vmem:[%s3 + $0x170] sm:$0xff]
  %v1225 = vld [vmem:[%s3 + $0x178] sm:$0xff]
  %v1226 = vld [vmem:[%s3 + $0x180] sm:$0xff]
  %v1227 = vld [vmem:[%s3 + $0x188] sm:$0xff]
  %v1228 = vld [vmem:[%s3 + $0x190] sm:$0xff]
  %v1229 = vld [vmem:[%s3 + $0x198] sm:$0xff]
  %v1230 = vld [vmem:[%s3 + $0x1a0] sm:$0xff]
  %v1231 = vld [vmem:[%s3 + $0x1a8] sm:$0xff]
  %v1232 = vld [vmem:[%s3 + $0x1b0] sm:$0xff]
  %v1233 = vld [vmem:[%s3 + $0x1b8] sm:$0xff]
  %v1234 = vld [vmem:[%s3 + $0x1c0] sm:$0xff]
  %v1235 = vld [vmem:[%s3 + $0x1c8] sm:$0xff]
  %v1236 = vld [vmem:[%s3 + $0x1d0] sm:$0xff]
  %v1237 = vld [vmem:[%s3 + $0x1d8] sm:$0xff]
  %v1238 = vld [vmem:[%s3 + $0x1e0] sm:$0xff]
  %v1239 = vld [vmem:[%s3 + $0x1e8] sm:$0xff]
  %v1240 = vld [vmem:[%s3 + $0x1f0] sm:$0xff]
  %v1241 = vld [vmem:[%s3 + $0x1f8] sm:$0xff]
  %v1242 = vld [vmem:[%s3 + $0x200] sm:$0xff]
  %v1243 = vld [vmem:[%s3 + $0x208] sm:$0xff]
  %v1244 = vld [vmem:[%s3 + $0x210] sm:$0xff]
  %v1245 = vld [vmem:[%s3 + $0x218] sm:$0xff]
  %v1246 = vld [vmem:[%s3 + $0x220] sm:$0xff]
  %v1247 = vld [vmem:[%s3 + $0x228] sm:$0xff]
  %v1248 = vld [vmem:[%s3 + $0x230] sm:$0xff]
  %v1249 = vld [vmem:[%s3 + $0x238] sm:$0xff]
  %v1250 = vld [vmem:[%s3 + $0x240] sm:$0xff]
  %v1251 = vld [vmem:[%s3 + $0x248] sm:$0xff]
  %v1252 = vld [vmem:[%s3 + $0x250] sm:$0xff]
  %v1253 = vld [vmem:[%s3 + $0x258] sm:$0xff]
  %v1254 = vld [vmem:[%s3 + $0x260] sm:$0xff]
  %v1255 = vld [vmem:[%s3 + $0x268] sm:$0xff]
  %v1256 = vld [vmem:[%s3 + $0x270] sm:$0xff]
  %v1257 = vld [vmem:[%s3 + $0x278] sm:$0xff]
  %v1258 = vld [vmem:[%s3 + $0x280] sm:$0xff]
  %v1259 = vld [vmem:[%s3 + $0x288] sm:$0xff]
  %v1260 = vld [vmem:[%s3 + $0x290] sm:$0xff]
  %v1261 = vld [vmem:[%s3 + $0x298] sm:$0xff]
  %v1262 = vld [vmem:[%s3 + $0x2a0] sm:$0xff]
  %v1263 = vld [vmem:[%s3 + $0x2a8] sm:$0xff]
  %v1264 = vld [vmem:[%s3 + $0x2b0] sm:$0xff]
  %v1265 = vld [vmem:[%s3 + $0x2b8] sm:$0xff]
  %v1266 = vld [vmem:[%s3 + $0x2c0] sm:$0xff]
  %v1267 = vld [vmem:[%s3 + $0x2c8] sm:$0xff]
  %v1268 = vld [vmem:[%s3 + $0x2d0] sm:$0xff]
  %v1269 = vld [vmem:[%s3 + $0x2d8] sm:$0xff]
  %v1270 = vld [vmem:[%s3 + $0x2e0] sm:$0xff]
  %v1271 = vld [vmem:[%s3 + $0x2e8] sm:$0xff]
  %v1272 = vld [vmem:[%s3 + $0x2f0] sm:$0xff]
  %v1273 = vld [vmem:[%s3 + $0x2f8] sm:$0xff]
  %v1274 = vld [vmem:[%s3 + $0x300] sm:$0xff]
  %v1275 = vld [vmem:[%s3 + $0x308] sm:$0xff]
  %v1276 = vld [vmem:[%s3 + $0x310] sm:$0xff]
  %v1277 = vld [vmem:[%s3 + $0x318] sm:$0xff]
  %v1278 = vld [vmem:[%s3 + $0x320] sm:$0xff]
  %v1279 = vld [vmem:[%s3 + $0x328] sm:$0xff]
  %v1280 = vld [vmem:[%s3 + $0x330] sm:$0xff]
  %v1281 = vld [vmem:[%s3 + $0x338] sm:$0xff]
  %v1282 = vld [vmem:[%s3 + $0x340] sm:$0xff]
  %v1283 = vld [vmem:[%s3 + $0x348] sm:$0xff]
  %v1284 = vld [vmem:[%s3 + $0x350] sm:$0xff]
  %v1285 = vld [vmem:[%s3 + $0x358] sm:$0xff]
  %v1286 = vld [vmem:[%s3 + $0x360] sm:$0xff]
  %v1287 = vld [vmem:[%s3 + $0x368] sm:$0xff]
  %v1288 = vld [vmem:[%s3 + $0x370] sm:$0xff]
  %v1289 = vld [vmem:[%s3 + $0x378] sm:$0xff]
  %v1290 = vld [vmem:[%s3 + $0x380] sm:$0xff]
  %v1291 = vld [vmem:[%s3 + $0x388] sm:$0xff]
  %v1292 = vld [vmem:[%s3 + $0x390] sm:$0xff]
  %v1293 = vld [vmem:[%s3 + $0x398] sm:$0xff]
  %v1294 = vld [vmem:[%s3 + $0x3a0] sm:$0xff]
  %v1295 = vld [vmem:[%s3 + $0x3a8] sm:$0xff]
  %v1296 = vld [vmem:[%s3 + $0x3b0] sm:$0xff]
  %v1297 = vld [vmem:[%s3 + $0x3b8] sm:$0xff]
  %v1298 = vld [vmem:[%s3 + $0x3c0] sm:$0xff]
  %v1299 = vld [vmem:[%s3 + $0x3c8] sm:$0xff]
  %v1300 = vld [vmem:[%s3 + $0x3d0] sm:$0xff]
  %v1301 = vld [vmem:[%s3 + $0x3d8] sm:$0xff]
  %v1302 = vld [vmem:[%s3 + $0x3e0] sm:$0xff]
  %v1303 = vld [vmem:[%s3 + $0x3e8] sm:$0xff]
  %v1304 = vld [vmem:[%s3 + $0x3f0] sm:$0xff]
  %v1305 = vld [vmem:[%s3 + $0x3f8] sm:$0xff]
  %v1306 = vld [vmem:[%s4] sm:$0x3]
  %v1308 = vlaneseq
  %v1309 = vshrl.u32 %v1308, 7
  %v1310 = vsub.s32 0, %v1309
  %v1311 = vrot.slane %v1306, %v1310
  %v1312 = vlaneseq
  %v1313 = vshrl.u32 %v1312, 7
  %v1314 = vsub.s32 1, %v1313
  %v1315 = vrot.slane %v1306, %v1314
  %1318 = vmatprep.subr.mxu0 %v1179
  %1319 = vmatpush1.msra.mxu0 %v1178
  %1320 = vmatprep.subr.mxu0 %v1181
  %1321 = vmatpush1.msra.mxu0 %v1180
  %1322 = vmatprep.subr.mxu0 %v1183
  %1323 = vmatpush1.msra.mxu0 %v1182
  %1324 = vmatprep.subr.mxu0 %v1185
  %1325 = vmatpush1.msra.mxu0 %v1184
  %1326 = vmatprep.subr.mxu0 %v1187
  %1327 = vmatpush1.msra.mxu0 %v1186
  %1328 = vmatprep.subr.mxu0 %v1189
  %1329 = vmatpush1.msra.mxu0 %v1188
  %1330 = vmatprep.subr.mxu0 %v1191
  %1331 = vmatpush1.msra.mxu0 %v1190
  %1332 = vmatprep.subr.mxu0 %v1193
  %1333 = vmatpush1.msra.mxu0 %v1192
  %1334 = vmatprep.subr.mxu0 %v1195
  %1335 = vmatpush1.msra.mxu0 %v1194
  %1336 = vmatprep.subr.mxu0 %v1197
  %1337 = vmatpush1.msra.mxu0 %v1196
  %1338 = vmatprep.subr.mxu0 %v1199
  %1339 = vmatpush1.msra.mxu0 %v1198
  %1340 = vmatprep.subr.mxu0 %v1201
  %1341 = vmatpush1.msra.mxu0 %v1200
  %1342 = vmatprep.subr.mxu0 %v1203
  %1343 = vmatpush1.msra.mxu0 %v1202
  %1344 = vmatprep.subr.mxu0 %v1205
  %1345 = vmatpush1.msra.mxu0 %v1204
  %1346 = vmatprep.subr.mxu0 %v1207
  %1347 = vmatpush1.msra.mxu0 %v1206
  %1348 = vmatprep.subr.mxu0 %v1209
  %1349 = vmatpush1.msra.mxu0 %v1208
  %1350 = vmatprep.subr.mxu0 %v1211
  %1351 = vmatpush1.msra.mxu0 %v1210
  %1352 = vmatprep.subr.mxu0 %v1213
  %1353 = vmatpush1.msra.mxu0 %v1212
  %1354 = vmatprep.subr.mxu0 %v1215
  %1355 = vmatpush1.msra.mxu0 %v1214
  %1356 = vmatprep.subr.mxu0 %v1217
  %1357 = vmatpush1.msra.mxu0 %v1216
  %1358 = vmatprep.subr.mxu0 %v1219
  %1359 = vmatpush1.msra.mxu0 %v1218
  %1360 = vmatprep.subr.mxu0 %v1221
  %1361 = vmatpush1.msra.mxu0 %v1220
  %1362 = vmatprep.subr.mxu0 %v1223
  %1363 = vmatpush1.msra.mxu0 %v1222
  %1364 = vmatprep.subr.mxu0 %v1225
  %1365 = vmatpush1.msra.mxu0 %v1224
  %1366 = vmatprep.subr.mxu0 %v1227
  %1367 = vmatpush1.msra.mxu0 %v1226
  %1368 = vmatprep.subr.mxu0 %v1229
  %1369 = vmatpush1.msra.mxu0 %v1228
  %1370 = vmatprep.subr.mxu0 %v1231
  %1371 = vmatpush1.msra.mxu0 %v1230
  %1372 = vmatprep.subr.mxu0 %v1233
  %1373 = vmatpush1.msra.mxu0 %v1232
  %1374 = vmatprep.subr.mxu0 %v1235
  %1375 = vmatpush1.msra.mxu0 %v1234
  %1376 = vmatprep.subr.mxu0 %v1237
  %1377 = vmatpush1.msra.mxu0 %v1236
  %1378 = vmatprep.subr.mxu0 %v1239
  %1379 = vmatpush1.msra.mxu0 %v1238
  %1380 = vmatprep.subr.mxu0 %v1241
  %1381 = vmatpush1.msra.mxu0 %v1240
  %1382 = vmatprep.mubr.f32.mxu0 %v1175
  %1383 = vmatmul.mubr.f32.gmra.mrb[0].mxu0 %v1174
  %v1384 = vpop.f32.mrb[0].mxu0
  %v1385 = vadd.f32 %v1311, %v1384
  %v1386 = vpop.f32.mrb[0].mxu0
  %v1387 = vadd.f32 %v1315, %v1386
  %1388 = vdwg.mxu0
  %1389 = vmatprep.subr.mxu0 %v1243
  %1390 = vmatpush1.msra.mxu0 %v1242
  %1391 = vmatprep.subr.mxu0 %v1245
  %1392 = vmatpush1.msra.mxu0 %v1244
  %1393 = vmatprep.subr.mxu0 %v1247
  %1394 = vmatpush1.msra.mxu0 %v1246
  %1395 = vmatprep.subr.mxu0 %v1249
  %1396 = vmatpush1.msra.mxu0 %v1248
  %1397 = vmatprep.subr.mxu0 %v1251
  %1398 = vmatpush1.msra.mxu0 %v1250
  %1399 = vmatprep.subr.mxu0 %v1253
  %1400 = vmatpush1.msra.mxu0 %v1252
  %1401 = vmatprep.subr.mxu0 %v1255
  %1402 = vmatpush1.msra.mxu0 %v1254
  %1403 = vmatprep.subr.mxu0 %v1257
  %1404 = vmatpush1.msra.mxu0 %v1256
  %1405 = vmatprep.subr.mxu0 %v1259
  %1406 = vmatpush1.msra.mxu0 %v1258
  %1407 = vmatprep.subr.mxu0 %v1261
  %1408 = vmatpush1.msra.mxu0 %v1260
  %1409 = vmatprep.subr.mxu0 %v1263
  %1410 = vmatpush1.msra.mxu0 %v1262
  %1411 = vmatprep.subr.mxu0 %v1265
  %1412 = vmatpush1.msra.mxu0 %v1264
  %1413 = vmatprep.subr.mxu0 %v1267
  %1414 = vmatpush1.msra.mxu0 %v1266
  %1415 = vmatprep.subr.mxu0 %v1269
  %1416 = vmatpush1.msra.mxu0 %v1268
  %1417 = vmatprep.subr.mxu0 %v1271
  %1418 = vmatpush1.msra.mxu0 %v1270
  %1419 = vmatprep.subr.mxu0 %v1273
  %1420 = vmatpush1.msra.mxu0 %v1272
  %1421 = vmatprep.subr.mxu0 %v1275
  %1422 = vmatpush1.msra.mxu0 %v1274
  %1423 = vmatprep.subr.mxu0 %v1277
  %1424 = vmatpush1.msra.mxu0 %v1276
  %1425 = vmatprep.subr.mxu0 %v1279
  %1426 = vmatpush1.msra.mxu0 %v1278
  %1427 = vmatprep.subr.mxu0 %v1281
  %1428 = vmatpush1.msra.mxu0 %v1280
  %1429 = vmatprep.subr.mxu0 %v1283
  %1430 = vmatpush1.msra.mxu0 %v1282
  %1431 = vmatprep.subr.mxu0 %v1285
  %1432 = vmatpush1.msra.mxu0 %v1284
  %1433 = vmatprep.subr.mxu0 %v1287
  %1434 = vmatpush1.msra.mxu0 %v1286
  %1435 = vmatprep.subr.mxu0 %v1289
  %1436 = vmatpush1.msra.mxu0 %v1288
  %1437 = vmatprep.subr.mxu0 %v1291
  %1438 = vmatpush1.msra.mxu0 %v1290
  %1439 = vmatprep.subr.mxu0 %v1293
  %1440 = vmatpush1.msra.mxu0 %v1292
  %1441 = vmatprep.subr.mxu0 %v1295
  %1442 = vmatpush1.msra.mxu0 %v1294
  %1443 = vmatprep.subr.mxu0 %v1297
  %1444 = vmatpush1.msra.mxu0 %v1296
  %1445 = vmatprep.subr.mxu0 %v1299
  %1446 = vmatpush1.msra.mxu0 %v1298
  %1447 = vmatprep.subr.mxu0 %v1301
  %1448 = vmatpush1.msra.mxu0 %v1300
  %1449 = vmatprep.subr.mxu0 %v1303
  %1450 = vmatpush1.msra.mxu0 %v1302
  %1451 = vmatprep.subr.mxu0 %v1305
  %1452 = vmatpush1.msra.mxu0 %v1304
  %1453 = vmatprep.mubr.f32.mxu0 %v1177
  %1454 = vmatmul.mubr.f32.gmra.mrb[0].mxu0 %v1176
  %v1455 = vpop.f32.mrb[0].mxu0
  %v1456 = vadd.f32 %v1385, %v1455
  %v1457 = vpop.f32.mrb[0].mxu0
  %v1458 = vadd.f32 %v1387, %v1457
  %1459 = vdwg.mxu0
  %v1460 = vmax.f32 %v1456, 0.0
  %v1461 = vmax.f32 %v1458, 0.0
  %v1462 = vld [vmem:[%s5] sm:$0xff]
  %v1463 = vld [vmem:[%s5 + $0x8] sm:$0xff]
  %v1464 = vld [vmem:[%s5 + $0x10] sm:$0xff]
  %v1465 = vld [vmem:[%s5 + $0x18] sm:$0xff]
  %v1466 = vld [vmem:[%s5 + $0x20] sm:$0xff]
  %v1467 = vld [vmem:[%s5 + $0x28] sm:$0xff]
  %v1468 = vld [vmem:[%s5 + $0x30] sm:$0xff]
  %v1469 = vld [vmem:[%s5 + $0x38] sm:$0xff]
  %v1470 = vld [vmem:[%s5 + $0x40] sm:$0xff]
  %v1471 = vld [vmem:[%s5 + $0x48] sm:$0xff]
  %v1472 = vld [vmem:[%s5 + $0x50] sm:$0xff]
  %v1473 = vld [vmem:[%s5 + $0x58] sm:$0xff]
  %v1474 = vld [vmem:[%s5 + $0x60] sm:$0xff]
  %v1475 = vld [vmem:[%s5 + $0x68] sm:$0xff]
  %v1476 = vld [vmem:[%s5 + $0x70] sm:$0xff]
  %v1477 = vld [vmem:[%s5 + $0x78] sm:$0xff]
  %v1478 = vld [vmem:[%s5 + $0x80] sm:$0xff]
  %v1479 = vld [vmem:[%s5 + $0x88] sm:$0xff]
  %v1480 = vld [vmem:[%s5 + $0x90] sm:$0xff]
  %v1481 = vld [vmem:[%s5 + $0x98] sm:$0xff]
  %v1482 = vld [vmem:[%s5 + $0xa0] sm:$0xff]
  %v1483 = vld [vmem:[%s5 + $0xa8] sm:$0xff]
  %v1484 = vld [vmem:[%s5 + $0xb0] sm:$0xff]
  %v1485 = vld [vmem:[%s5 + $0xb8] sm:$0xff]
  %v1486 = vld [vmem:[%s5 + $0xc0] sm:$0xff]
  %v1487 = vld [vmem:[%s5 + $0xc8] sm:$0xff]
  %v1488 = vld [vmem:[%s5 + $0xd0] sm:$0xff]
  %v1489 = vld [vmem:[%s5 + $0xd8] sm:$0xff]
  %v1490 = vld [vmem:[%s5 + $0xe0] sm:$0xff]
  %v1491 = vld [vmem:[%s5 + $0xe8] sm:$0xff]
  %v1492 = vld [vmem:[%s5 + $0xf0] sm:$0xff]
  %v1493 = vld [vmem:[%s5 + $0xf8] sm:$0xff]
  %v1494 = vld [vmem:[%s6] sm:$0x1]
  %v1496 = vlaneseq
  %v1497 = vshrl.u32 %v1496, 7
  %v1498 = vsub.s32 0, %v1497
  %v1499 = vrot.slane %v1494, %v1498
  %1501 = vmatprep.subr.mxu0 0.0
  %1502 = vmatpush1.msra.mxu0 %v1462
  %1503 = vmatprep.subr.mxu0 0.0
  %1504 = vmatpush1.msra.mxu0 %v1463
  %1505 = vmatprep.subr.mxu0 0.0
  %1506 = vmatpush1.msra.mxu0 %v1464
  %1507 = vmatprep.subr.mxu0 0.0
  %1508 = vmatpush1.msra.mxu0 %v1465
  %1509 = vmatprep.subr.mxu0 0.0
  %1510 = vmatpush1.msra.mxu0 %v1466
  %1511 = vmatprep.subr.mxu0 0.0
  %1512 = vmatpush1.msra.mxu0 %v1467
  %1513 = vmatprep.subr.mxu0 0.0
  %1514 = vmatpush1.msra.mxu0 %v1468
  %1515 = vmatprep.subr.mxu0 0.0
  %1516 = vmatpush1.msra.mxu0 %v1469
  %1517 = vmatprep.subr.mxu0 0.0
  %1518 = vmatpush1.msra.mxu0 %v1470
  %1519 = vmatprep.subr.mxu0 0.0
  %1520 = vmatpush1.msra.mxu0 %v1471
  %1521 = vmatprep.subr.mxu0 0.0
  %1522 = vmatpush1.msra.mxu0 %v1472
  %1523 = vmatprep.subr.mxu0 0.0
  %1524 = vmatpush1.msra.mxu0 %v1473
  %1525 = vmatprep.subr.mxu0 0.0
  %1526 = vmatpush1.msra.mxu0 %v1474
  %1527 = vmatprep.subr.mxu0 0.0
  %1528 = vmatpush1.msra.mxu0 %v1475
  %1529 = vmatprep.subr.mxu0 0.0
  %1530 = vmatpush1.msra.mxu0 %v1476
  %1531 = vmatprep.subr.mxu0 0.0
  %1532 = vmatpush1.msra.mxu0 %v1477
  %1533 = vmatprep.subr.mxu0 0.0
  %1534 = vmatpush1.msra.mxu0 %v1478
  %1535 = vmatprep.subr.mxu0 0.0
  %1536 = vmatpush1.msra.mxu0 %v1479
  %1537 = vmatprep.subr.mxu0 0.0
  %1538 = vmatpush1.msra.mxu0 %v1480
  %1539 = vmatprep.subr.mxu0 0.0
  %1540 = vmatpush1.msra.mxu0 %v1481
  %1541 = vmatprep.subr.mxu0 0.0
  %1542 = vmatpush1.msra.mxu0 %v1482
  %1543 = vmatprep.subr.mxu0 0.0
  %1544 = vmatpush1.msra.mxu0 %v1483
  %1545 = vmatprep.subr.mxu0 0.0
  %1546 = vmatpush1.msra.mxu0 %v1484
  %1547 = vmatprep.subr.mxu0 0.0
  %1548 = vmatpush1.msra.mxu0 %v1485
  %1549 = vmatprep.subr.mxu0 0.0
  %1550 = vmatpush1.msra.mxu0 %v1486
  %1551 = vmatprep.subr.mxu0 0.0
  %1552 = vmatpush1.msra.mxu0 %v1487
  %1553 = vmatprep.subr.mxu0 0.0
  %1554 = vmatpush1.msra.mxu0 %v1488
  %1555 = vmatprep.subr.mxu0 0.0
  %1556 = vmatpush1.msra.mxu0 %v1489
  %1557 = vmatprep.subr.mxu0 0.0
  %1558 = vmatpush1.msra.mxu0 %v1490
  %1559 = vmatprep.subr.mxu0 0.0
  %1560 = vmatpush1.msra.mxu0 %v1491
  %1561 = vmatprep.subr.mxu0 0.0
  %1562 = vmatpush1.msra.mxu0 %v1492
  %1563 = vmatprep.subr.mxu0 0.0
  %1564 = vmatpush1.msra.mxu0 %v1493
  %1565 = vmatprep.mubr.f32.mxu0 %v1461
  %1566 = vmatmul.mubr.f32.gmra.mrb[0].mxu0 %v1460
  %v1567 = vpop.f32.mrb[0].mxu0
  %v1568 = vadd.f32 %v1499, %v1567
  %v1569 = vpop.f32.mrb[0].mxu0
  %1570 = vdwg.mxu0
  %1571 = vst [vmem:[%s7] sm:$0x3] %v1568
  // Predicated region
  $region30: #{pointnet_pose_forward.3} parent=0 // pred_check
    _
  $region31: #{pointnet_pose_forward.3} parent=0 // pred_check_branch
    %1573 = sbr.rel (0) target = $region33
  $region32: #{pointnet_pose_forward.3} parent=0 // pred_region
    _
  $region33: #{pointnet_pose_forward.3} parent=0 // pred_fallthru
    _
  // Predicated region
  $region34: #{pointnet_pose_forward.3} parent=0 // pred_check
    _
  $region35: #{pointnet_pose_forward.3} parent=0 // pred_check_branch
    %1575 = sbr.rel (0) target = $region37
  $region36: #{pointnet_pose_forward.3} parent=0 // pred_region
    _
  $region37: #{pointnet_pose_forward.3} parent=0 // pred_fallthru
    _

</llo_original>
